<compile_context>
chip_gen: v7x
topology: tpu7x:2x2x1
jax: 0.10.0
libtpu: 0.0.40
codegen_flags: <defaults>
</compile_context>

<pallas_src>
import math

import jax
import jax.numpy as jnp
from jax.experimental import pallas as pl
from jax.experimental.pallas import tpu as pltpu


# Set to jnp.bfloat16 on v6e/v7x for ~2x MXU throughput and half the matmul
# operand DMA bytes (small numeric drift vs the f32 PyTorch reference).
_MXU_DTYPE = jnp.float32


# ----------------------------------------------------------------------------
# Pallas kernels.  All operate on pixel-major (rows, channels) blocks with the
# channel dim on the TPU lane axis.  Argument order (set by _tiled_call):
#   (*row-tiled inputs, *resident inputs, *row-tiled outputs, *accumulators)
# ----------------------------------------------------------------------------

def _stats_kernel(x_ref, stats_ref):
    """Accumulate per-channel [sum; sum_sq] (data-dependent Actnorm reduce)."""
    @pl.when(pl.program_id(0) == 0)
    def _init():
        stats_ref[...] = jnp.zeros_like(stats_ref)

    x = x_ref[...]
    s = jnp.sum(x, axis=0, keepdims=True)
    q = jnp.sum(x * x, axis=0, keepdims=True)
    stats_ref[...] += jnp.concatenate([s, q], axis=0)


def _matmul_bias_kernel(x_ref, w_ref, b_ref, o_ref):
    """y = x @ w + b  (flow-step Actnorm folded into the invertible 1x1 conv)."""
    o_ref[...] = jnp.dot(x_ref[...].astype(_MXU_DTYPE),
                         w_ref[...].astype(_MXU_DTYPE),
                         preferred_element_type=jnp.float32) + b_ref[...]


def _conv_stats_kernel(p_ref, w_ref, y_ref, stats_ref):
    """conv1 as im2col matmul, plus actnorm1 statistics of its output."""
    @pl.when(pl.program_id(0) == 0)
    def _init():
        stats_ref[...] = jnp.zeros_like(stats_ref)

    y = jnp.dot(p_ref[...].astype(_MXU_DTYPE), w_ref[...].astype(_MXU_DTYPE),
                preferred_element_type=jnp.float32)
    y_ref[...] = y
    s = jnp.sum(y, axis=0, keepdims=True)
    q = jnp.sum(y * y, axis=0, keepdims=True)
    stats_ref[...] += jnp.concatenate([s, q], axis=0)


def _norm_relu_matmul_stats_kernel(y1_ref, s1_ref, b1_ref, w_ref, y2_ref, stats_ref):
    """h = relu(actnorm1(y1)); y2 = conv2(h); accumulate actnorm2 statistics."""
    @pl.when(pl.program_id(0) == 0)
    def _init():
        stats_ref[...] = jnp.zeros_like(stats_ref)

    h = jnp.maximum(y1_ref[...] * s1_ref[...] + b1_ref[...], 0.0)
    y2 = jnp.dot(h.astype(_MXU_DTYPE), w_ref[...].astype(_MXU_DTYPE),
                 preferred_element_type=jnp.float32)
    y2_ref[...] = y2
    s = jnp.sum(y2, axis=0, keepdims=True)
    q = jnp.sum(y2 * y2, axis=0, keepdims=True)
    stats_ref[...] += jnp.concatenate([s, q], axis=0)


def _conv3_couple_kernel(p_ref, y_ref, s2_ref, b2_ref, wt_ref, ws_ref,
                         bt_ref, bs_ref, z_ref):
    """actnorm2-apply + relu on the im2col'd zero-padded conv2 output, conv3
    (exp(log_scale_factor) and bias folded into wt/ws/bt/bs), affine-coupling
    combine, and a lane-dense write of z = [z_a | x_b]."""
    half = wt_ref.shape[1]
    h = jnp.maximum(p_ref[...] * s2_ref[...] + b2_ref[...], 0.0)
    hm = h.astype(_MXU_DTYPE)
    t = jnp.dot(hm, wt_ref[...].astype(_MXU_DTYPE),
                preferred_element_type=jnp.float32) + bt_ref[...]
    sp = jnp.dot(hm, ws_ref[...].astype(_MXU_DTYPE),
                 preferred_element_type=jnp.float32) + bs_ref[...]
    s = 1.0 / (1.0 + jnp.exp(-(sp + 2.0)))          # sigmoid(s + 2)
    y = y_ref[...]
    za = jnp.clip(s * y[:, :half] + t, -1e9, 1e9)
    z_ref[...] = jnp.concatenate([za, y[:, half:]], axis=-1)


# ----------------------------------------------------------------------------
# Gridded pallas_call helper (pixel-axis tiling, resident weights, accumulators)
# ----------------------------------------------------------------------------

def _pick_block_rows(n_rows, row_bytes, resident_bytes,
                     vmem_budget=20 << 20, max_rows=2048):
    """Largest row tile that (double buffered) fits the VMEM budget, divides
    n_rows and keeps the sublane dim a multiple of 8 (or the full extent)."""
    avail = max(vmem_budget - 2 * resident_bytes, 1 << 20)
    cap = int(min(max(avail // max(2 * row_bytes, 1), 8), max_rows, n_rows))
    for t in range(cap, 0, -1):
        if n_rows % t == 0 and (t % 8 == 0 or t == n_rows):
            return t
    return n_rows


def _tiled_call(kernel, row_ins, full_ins, row_out_widths, acc_out_shapes,
                *, arbitrary, flops=0, transcendentals=0):
    n_rows = row_ins[0].shape[0]
    row_bytes = (sum(a.shape[1] * a.dtype.itemsize for a in row_ins)
                 + 4 * sum(row_out_widths))
    resident = (sum(a.size * a.dtype.itemsize for a in full_ins)
                + 4 * sum(math.prod(s) for s in acc_out_shapes))
    tm = _pick_block_rows(n_rows, row_bytes, resident)
    grid = (n_rows // tm,)

    in_specs = ([pl.BlockSpec((tm, a.shape[1]), lambda i: (i, 0)) for a in row_ins]
                + [pl.BlockSpec(a.shape, lambda i: (0, 0)) for a in full_ins])
    out_specs = tuple(
        [pl.BlockSpec((tm, w), lambda i: (i, 0)) for w in row_out_widths]
        + [pl.BlockSpec(s, lambda i: (0, 0)) for s in acc_out_shapes])
    out_shape = tuple(
        [jax.ShapeDtypeStruct((n_rows, w), jnp.float32) for w in row_out_widths]
        + [jax.ShapeDtypeStruct(s, jnp.float32) for s in acc_out_shapes])

    bytes_accessed = (sum(a.size * a.dtype.itemsize for a in row_ins)
                      + sum(a.size * a.dtype.itemsize for a in full_ins)
                      + 4 * n_rows * sum(row_out_widths)
                      + 4 * sum(math.prod(s) for s in acc_out_shapes))

    return pl.pallas_call(
        kernel,
        grid=grid,
        in_specs=in_specs,
        out_specs=out_specs,
        out_shape=out_shape,
        compiler_params=pltpu.CompilerParams(
            dimension_semantics=(("arbitrary",) if arbitrary else ("parallel",))),
        cost_estimate=pl.CostEstimate(flops=int(flops),
                                      transcendentals=int(transcendentals),
                                      bytes_accessed=int(bytes_accessed)),
    )(*row_ins, *full_ins)


def _stats_pass(x):
    N, C = x.shape
    (stats,) = _tiled_call(_stats_kernel, [x], [], [], [(2, C)],
                           arbitrary=True, flops=3 * N * C)
    return stats


def _matmul_bias_pass(x, w, b):
    N, K = x.shape
    Cout = w.shape[1]
    (y,) = _tiled_call(_matmul_bias_kernel, [x], [w, b], [Cout], [],
                       arbitrary=False, flops=2 * N * K * Cout)
    return y


def _conv_stats_pass(p, w):
    N, K = p.shape
    Cout = w.shape[1]
    y, stats = _tiled_call(_conv_stats_kernel, [p], [w], [Cout], [(2, Cout)],
                           arbitrary=True, flops=2 * N * K * Cout + 3 * N * Cout)
    return y, stats


def _norm_relu_matmul_stats_pass(y1, s1, b1, w):
    N, K = y1.shape
    Cout = w.shape[1]
    y2, stats = _tiled_call(_norm_relu_matmul_stats_kernel, [y1], [s1, b1, w],
                            [Cout], [(2, Cout)], arbitrary=True,
                            flops=2 * N * K * Cout + 6 * N * Cout)
    return y2, stats


def _conv3_couple_pass(p3, y2d, s2_9, b2_9, wt, ws, bt, bs):
    N, K = p3.shape
    C = y2d.shape[1]
    half = C // 2
    (z,) = _tiled_call(_conv3_couple_kernel, [p3, y2d],
                       [s2_9, b2_9, wt, ws, bt, bs], [C], [],
                       arbitrary=False,
                       flops=4 * N * K * half + 12 * N * half,
                       transcendentals=N * half)
    return z


# ----------------------------------------------------------------------------
# JAX glue: layout, squeeze, im2col, O(C) statistics finishing, params
# ----------------------------------------------------------------------------

def _finish_stats(stats, n):
    """[sum; sum_sq] -> (mean, 1/(std + 1e-6)); biased std like torch .std(_, False)."""
    mean = stats[0] / n
    var = jnp.maximum(stats[1] / n - mean * mean, 0.0)
    return mean, 1.0 / (jnp.sqrt(var) + 1e-6)


def _squeeze_nhwc(x):
    """NHWC squeeze with channel order c*4 + dy*2 + dx (matches torch NCHW squeeze)."""
    B, H, W, C = x.shape
    x = x.reshape(B, H // 2, 2, W // 2, 2, C)
    x = jnp.transpose(x, (0, 1, 3, 5, 2, 4))          # (B, H/2, W/2, C, 2, 2)
    return x.reshape(B, H // 2, W // 2, 4 * C)


def _im2col3x3(x_nhwc, pad):
    B, H, W, C = x_nhwc.shape
    if pad:
        xp = jnp.pad(x_nhwc, ((0, 0), (1, 1), (1, 1), (0, 0)))
        Ho, Wo = H, W
    else:
        xp = x_nhwc
        Ho, Wo = H - 2, W - 2
    cols = [xp[:, dy:dy + Ho, dx:dx + Wo, :] for dy in range(3) for dx in range(3)]
    return jnp.concatenate(cols, axis=-1).reshape(B * Ho * Wo, 9 * C)


def _conv_w_to_mat(w):  # (Cout, Cin, 3, 3) -> (9*Cin, Cout), tap-major rows
    return jnp.transpose(w, (2, 3, 1, 0)).reshape(-1, w.shape[0])


def _init_glow_params(key, in_channels, width, depth, n_levels):
    levels = []
    for i in range(n_levels):
        nc = in_channels * (2 ** i) * 4            # channels after squeeze
        half = nc // 2
        steps = []
        for _ in range(depth):
            key, k1, k2, k3 = jax.random.split(key, 4)
            # Invertible 1x1 conv: orthogonal init via QR of a random matrix.
            w = jnp.linalg.qr(jax.random.normal(k1, (nc, nc), jnp.float32))[0]
            # AffineCoupling convolutions.
            w1 = jax.random.normal(k2, (width, half, 3, 3), jnp.float32) / jnp.sqrt(9.0 * half)
            w2 = jax.random.normal(k3, (width, width, 1, 1), jnp.float32) / jnp.sqrt(float(width))
            w3 = jnp.zeros((nc, width, 3, 3), jnp.float32)   # zero-init per __init__
            b3 = jnp.zeros((nc,), jnp.float32)
            lsf = jnp.zeros((nc,), jnp.float32)
            # Permute conv3 output channels to [even (t) | odd (s)] and fold
            # exp(log_scale_factor) + bias into the weight columns (data independent).
            perm = jnp.concatenate([jnp.arange(0, nc, 2), jnp.arange(1, nc, 2)])
            w3mat = _conv_w_to_mat(w3)[:, perm]
            b3p, ef = b3[perm], jnp.exp(lsf)[perm]
            coupling = dict(
                w1mat=_conv_w_to_mat(w1),                 # (9*half, width)
                w2mat=jnp.transpose(w2[:, :, 0, 0]),      # (width, width)
                w3t=w3mat[:, :half] * ef[:half],
                w3s=w3mat[:, half:] * ef[half:],
                b3t=(b3p[:half] * ef[:half]).reshape(1, half),
                b3s=(b3p[half:] * ef[half:]).reshape(1, half),
            )
            steps.append(dict(w=w, coupling=coupling))
        levels.append(dict(steps=steps))
    return dict(levels=levels)


# ----------------------------------------------------------------------------
# Glow forward (module structure mirrored; hot compute in fused Pallas kernels)
# ----------------------------------------------------------------------------

def _flow_step(x2d, B, Hs, Ws, sp):
    N, C = x2d.shape
    half = C // 2
    cp = sp['coupling']
    width = cp['w1mat'].shape[1]

    # --- Actnorm (data-dependent init) folded into the invertible 1x1 conv ---
    m0, i0 = _finish_stats(_stats_pass(x2d), N)
    w_p = jnp.transpose(sp['w']) * i0[:, None]       # diag(1/scale) @ w^T
    b_p = (-(m0 @ w_p)).reshape(1, C)                # -(bias/scale) @ w^T
    y2d = _matmul_bias_pass(x2d, w_p, b_p)

    # --- AffineCoupling ---
    y_nhwc = y2d.reshape(B, Hs, Ws, C)
    p1 = _im2col3x3(y_nhwc[..., half:], pad=True)                 # conv1 input (x_b)
    y1, st1 = _conv_stats_pass(p1, cp['w1mat'])                   # conv1 + stats
    m1, i1 = _finish_stats(st1, N)
    y2, st2 = _norm_relu_matmul_stats_pass(                       # actnorm1+relu+conv2
        y1, i1.reshape(1, width), (-m1 * i1).reshape(1, width), cp['w2mat'])
    # actnorm2 statistics are over conv2's zero-padded (H+2, W+2) output: the
    # zero border contributes nothing to the sums, only to the pixel count.
    m2, i2 = _finish_stats(st2, B * (Hs + 2) * (Ws + 2))
    s2_9 = jnp.tile(i2, 9).reshape(1, 9 * width)
    b2_9 = jnp.tile(-m2 * i2, 9).reshape(1, 9 * width)
    # conv3 (valid 3x3 on the padded map) == im2col of the zero-padded conv2
    # output; actnorm2+relu is applied to the columns inside the kernel, which
    # reproduces the relu((0 - mean)/scale) border exactly without ever
    # materializing the padded h2 tensor.
    p3 = _im2col3x3(y2.reshape(B, Hs, Ws, width), pad=True)
    return _conv3_couple_pass(p3, y2d, s2_9, b2_9,
                              cp['w3t'], cp['w3s'], cp['b3t'], cp['b3s'])


def _flow_level(x_nhwc, lp):
    x = _squeeze_nhwc(x_nhwc)
    B, Hs, Ws, C = x.shape
    x2d = x.reshape(B * Hs * Ws, C)
    for sp in lp['steps']:
        x2d = _flow_step(x2d, B, Hs, Ws, sp)
    x = x2d.reshape(B, Hs, Ws, C)
    return x[..., :C // 2], x[..., C // 2:]          # Split: (x1, z2)


def glow_forward(x_nchw, params):
    # Preprocess (x - 0.5) fuses into the single boundary layout transpose;
    # everything downstream stays pixel-major NHWC / (N, C).
    x = jnp.transpose(x_nchw, (0, 2, 3, 1)) - 0.5
    zs = []
    for lp in params['levels']:
        x, z = _flow_level(x, lp)
        zs.append(jnp.transpose(z, (0, 3, 1, 2)))    # NCHW only at the boundary
    zs.append(jnp.transpose(x, (0, 3, 1, 2)))
    return zs


if __name__ == "__main__":
    key = jax.random.PRNGKey(0)
    kx, kp = jax.random.split(key)

    B, C, H, W = 2, 4, 16, 16
    width, depth, n_levels = 32, 2, 2

    x = jax.random.uniform(kx, (B, C, H, W), dtype=jnp.float32)  # image-like in [0,1)
    params = _init_glow_params(kp, C, width, depth, n_levels)

    fwd = jax.jit(glow_forward)
    zs = jax.block_until_ready(fwd(x, params))

    # sanity: expected multi-scale latent shapes
    assert zs[0].shape == (B, 8, 8, 8)
    assert zs[1].shape == (B, 16, 4, 4)
    assert zs[2].shape == (B, 16, 4, 4)
    assert all(bool(jnp.all(jnp.isfinite(z))) for z in zs)

    print("KERNEL_OK")
</pallas_src>

<mosaic_0001>
module attributes {stable_mosaic.version = 11 : i64} {
  func.func @_stats_kernel(%arg0: i32, %arg1: memref<128x16xf32, #tpu.memory_space<vmem>>, %arg2: memref<2x16xf32, #tpu.memory_space<vmem>>) attributes {dimension_semantics = [#tpu.dimension_semantics<arbitrary>], iteration_bounds = array<i64: 1>, scalar_prefetch = 0 : i64, scratch_operands = 0 : i64, tpu.core_type = #tpu.core_type<tc>, window_params = [{transform_indices = @transform_0, window_bounds = array<i64: 128, 16>}, {pipeline_mode = #tpu.pipeline_mode<synchronous>, transform_indices = @transform_1, window_bounds = array<i64: 2, 16>}]} {
    %c0_i32 = arith.constant 0 : i32
    %0 = arith.cmpi eq, %arg0, %c0_i32 : i32
    %1 = arith.extui %0 : i1 to i32
    %c0_i32_0 = arith.constant 0 : i32
    %2 = arith.cmpi ne, %1, %c0_i32_0 : i32
    scf.if %2 {
      %cst_7 = arith.constant 0.000000e+00 : f32
      %13 = vector.broadcast %cst_7 : f32 to vector<2x16xf32>
      %c0_8 = arith.constant 0 : index
      %c0_9 = arith.constant 0 : index
      %14 = vector.load %arg2[%c0_8, %c0_9] : memref<2x16xf32, #tpu.memory_space<vmem>>, vector<2x16xf32>
      tpu.vector_store %arg2[%c0_8, %c0_9], %13 {strides = array<i32>} : memref<2x16xf32, #tpu.memory_space<vmem>>, vector<2x16xf32>,
    } else {
    }
    %c0 = arith.constant 0 : index
    %c0_1 = arith.constant 0 : index
    %3 = vector.load %arg1[%c0, %c0_1] : memref<128x16xf32, #tpu.memory_space<vmem>>, vector<128x16xf32>
    %cst = arith.constant dense<0.000000e+00> : vector<16xf32>
    %4 = vector.multi_reduction <add>, %3, %cst [0] : vector<128x16xf32> to vector<16xf32>
    %5 = vector.shape_cast %4 : vector<16xf32> to vector<1x16xf32>
    %6 = arith.mulf %3, %3 : vector<128x16xf32>
    %cst_2 = arith.constant dense<0.000000e+00> : vector<16xf32>
    %7 = vector.multi_reduction <add>, %6, %cst_2 [0] : vector<128x16xf32> to vector<16xf32>
    %8 = vector.shape_cast %7 : vector<16xf32> to vector<1x16xf32>
    %c0_3 = arith.constant 0 : index
    %c0_4 = arith.constant 0 : index
    %9 = vector.load %arg2[%c0_3, %c0_4] : memref<2x16xf32, #tpu.memory_space<vmem>>, vector<2x16xf32>
    %10 = tpu.concatenate %5, %8 in 0 : vector<1x16xf32>, vector<1x16xf32> -> vector<2x16xf32>
    %11 = arith.addf %9, %10 : vector<2x16xf32>
    %c0_5 = arith.constant 0 : index
    %c0_6 = arith.constant 0 : index
    %12 = vector.load %arg2[%c0_5, %c0_6] : memref<2x16xf32, #tpu.memory_space<vmem>>, vector<2x16xf32>
    tpu.vector_store %arg2[%c0_5, %c0_6], %11 {strides = array<i32>} : memref<2x16xf32, #tpu.memory_space<vmem>>, vector<2x16xf32>,
    return
  }
  func.func @transform_0(%arg0: i32) -> (i32, i32) {
    %c0_i32 = arith.constant 0 : i32
    %c0_i32_0 = arith.constant 0 : i32
    return %arg0, %c0_i32 : i32, i32
  }
  func.func @transform_1(%arg0: i32) -> (i32, i32) {
    %c0_i32 = arith.constant 0 : i32
    %c0_i32_0 = arith.constant 0 : i32
    %c0_i32_1 = arith.constant 0 : i32
    return %c0_i32, %c0_i32_0 : i32, i32
  }
}

module attributes {stable_mosaic.version = 11 : i64} {
  func.func @_matmul_bias_kernel(%arg0: i32, %arg1: memref<128x16xf32, #tpu.memory_space<vmem>>, %arg2: memref<16x16xf32, #tpu.memory_space<vmem>>, %arg3: memref<1x16xf32, #tpu.memory_space<vmem>>, %arg4: memref<128x16xf32, #tpu.memory_space<vmem>>) attributes {dimension_semantics = [#tpu.dimension_semantics<parallel>], iteration_bounds = array<i64: 1>, scalar_prefetch = 0 : i64, scratch_operands = 0 : i64, tpu.core_type = #tpu.core_type<tc>, window_params = [{transform_indices = @transform_0, window_bounds = array<i64: 128, 16>}, {pipeline_mode = #tpu.pipeline_mode<synchronous>, transform_indices = @transform_1, window_bounds = array<i64: 16, 16>}, {pipeline_mode = #tpu.pipeline_mode<synchronous>, transform_indices = @transform_2, window_bounds = array<i64: 1, 16>}, {transform_indices = @transform_3, window_bounds = array<i64: 128, 16>}]} {
    %c0 = arith.constant 0 : index
    %c0_0 = arith.constant 0 : index
    %0 = vector.load %arg1[%c0, %c0_0] : memref<128x16xf32, #tpu.memory_space<vmem>>, vector<128x16xf32>
    %c0_1 = arith.constant 0 : index
    %c0_2 = arith.constant 0 : index
    %1 = vector.load %arg2[%c0_1, %c0_2] : memref<16x16xf32, #tpu.memory_space<vmem>>, vector<16x16xf32>
    %cst = arith.constant dense<0.000000e+00> : vector<128x16xf32>
    %2 = tpu.matmul %0, %1, %cst {dimension_numbers = #tpu.dot_dimension_numbers<[1], [0], [0], [1], [0, 0, 1, 1], [], []>} : vector<128x16xf32>, vector<16x16xf32>, vector<128x16xf32> -> vector<128x16xf32>
    %c0_3 = arith.constant 0 : index
    %c0_4 = arith.constant 0 : index
    %3 = vector.load %arg3[%c0_3, %c0_4] : memref<1x16xf32, #tpu.memory_space<vmem>>, vector<1x16xf32>
    %4 = vector.broadcast %3 : vector<1x16xf32> to vector<128x16xf32>
    %5 = arith.addf %2, %4 : vector<128x16xf32>
    %c0_5 = arith.constant 0 : index
    %c0_6 = arith.constant 0 : index
    %6 = vector.load %arg4[%c0_5, %c0_6] : memref<128x16xf32, #tpu.memory_space<vmem>>, vector<128x16xf32>
    tpu.vector_store %arg4[%c0_5, %c0_6], %5 {strides = array<i32>} : memref<128x16xf32, #tpu.memory_space<vmem>>, vector<128x16xf32>,
    return
  }
  func.func @transform_0(%arg0: i32) -> (i32, i32) {
    %c0_i32 = arith.constant 0 : i32
    %c0_i32_0 = arith.constant 0 : i32
    return %arg0, %c0_i32 : i32, i32
  }
  func.func @transform_1(%arg0: i32) -> (i32, i32) {
    %c0_i32 = arith.constant 0 : i32
    %c0_i32_0 = arith.constant 0 : i32
    %c0_i32_1 = arith.constant 0 : i32
    return %c0_i32, %c0_i32_0 : i32, i32
  }
  func.func @transform_2(%arg0: i32) -> (i32, i32) {
    %c0_i32 = arith.constant 0 : i32
    %c0_i32_0 = arith.constant 0 : i32
    %c0_i32_1 = arith.constant 0 : i32
    return %c0_i32, %c0_i32_0 : i32, i32
  }
  func.func @transform_3(%arg0: i32) -> (i32, i32) {
    %c0_i32 = arith.constant 0 : i32
    %c0_i32_0 = arith.constant 0 : i32
    return %arg0, %c0_i32 : i32, i32
  }
}

module attributes {stable_mosaic.version = 11 : i64} {
  func.func @_conv_stats_kernel(%arg0: i32, %arg1: memref<128x72xf32, #tpu.memory_space<vmem>>, %arg2: memref<72x32xf32, #tpu.memory_space<vmem>>, %arg3: memref<128x32xf32, #tpu.memory_space<vmem>>, %arg4: memref<2x32xf32, #tpu.memory_space<vmem>>) attributes {dimension_semantics = [#tpu.dimension_semantics<arbitrary>], iteration_bounds = array<i64: 1>, scalar_prefetch = 0 : i64, scratch_operands = 0 : i64, tpu.core_type = #tpu.core_type<tc>, window_params = [{transform_indices = @transform_0, window_bounds = array<i64: 128, 72>}, {pipeline_mode = #tpu.pipeline_mode<synchronous>, transform_indices = @transform_1, window_bounds = array<i64: 72, 32>}, {transform_indices = @transform_2, window_bounds = array<i64: 128, 32>}, {pipeline_mode = #tpu.pipeline_mode<synchronous>, transform_indices = @transform_3, window_bounds = array<i64: 2, 32>}]} {
    %c0_i32 = arith.constant 0 : i32
    %0 = arith.cmpi eq, %arg0, %c0_i32 : i32
    %1 = arith.extui %0 : i1 to i32
    %c0_i32_0 = arith.constant 0 : i32
    %2 = arith.cmpi ne, %1, %c0_i32_0 : i32
    scf.if %2 {
      %cst_12 = arith.constant 0.000000e+00 : f32
      %16 = vector.broadcast %cst_12 : f32 to vector<2x32xf32>
      %c0_13 = arith.constant 0 : index
      %c0_14 = arith.constant 0 : index
      %17 = vector.load %arg4[%c0_13, %c0_14] : memref<2x32xf32, #tpu.memory_space<vmem>>, vector<2x32xf32>
      tpu.vector_store %arg4[%c0_13, %c0_14], %16 {strides = array<i32>} : memref<2x32xf32, #tpu.memory_space<vmem>>, vector<2x32xf32>,
    } else {
    }
    %c0 = arith.constant 0 : index
    %c0_1 = arith.constant 0 : index
    %3 = vector.load %arg1[%c0, %c0_1] : memref<128x72xf32, #tpu.memory_space<vmem>>, vector<128x72xf32>
    %c0_2 = arith.constant 0 : index
    %c0_3 = arith.constant 0 : index
    %4 = vector.load %arg2[%c0_2, %c0_3] : memref<72x32xf32, #tpu.memory_space<vmem>>, vector<72x32xf32>
    %cst = arith.constant dense<0.000000e+00> : vector<128x32xf32>
    %5 = tpu.matmul %3, %4, %cst {dimension_numbers = #tpu.dot_dimension_numbers<[1], [0], [0], [1], [0, 0, 1, 1], [], []>} : vector<128x72xf32>, vector<72x32xf32>, vector<128x32xf32> -> vector<128x32xf32>
    %c0_4 = arith.constant 0 : index
    %c0_5 = arith.constant 0 : index
    %6 = vector.load %arg3[%c0_4, %c0_5] : memref<128x32xf32, #tpu.memory_space<vmem>>, vector<128x32xf32>
    tpu.vector_store %arg3[%c0_4, %c0_5], %5 {strides = array<i32>} : memref<128x32xf32, #tpu.memory_space<vmem>>, vector<128x32xf32>,
    %cst_6 = arith.constant dense<0.000000e+00> : vector<32xf32>
    %7 = vector.multi_reduction <add>, %5, %cst_6 [0] : vector<128x32xf32> to vector<32xf32>
    %8 = vector.shape_cast %7 : vector<32xf32> to vector<1x32xf32>
    %9 = arith.mulf %5, %5 : vector<128x32xf32>
    %cst_7 = arith.constant dense<0.000000e+00> : vector<32xf32>
    %10 = vector.multi_reduction <add>, %9, %cst_7 [0] : vector<128x32xf32> to vector<32xf32>
    %11 = vector.shape_cast %10 : vector<32xf32> to vector<1x32xf32>
    %c0_8 = arith.constant 0 : index
    %c0_9 = arith.constant 0 : index
    %12 = vector.load %arg4[%c0_8, %c0_9] : memref<2x32xf32, #tpu.memory_space<vmem>>, vector<2x32xf32>
    %13 = tpu.concatenate %8, %11 in 0 : vector<1x32xf32>, vector<1x32xf32> -> vector<2x32xf32>
    %14 = arith.addf %12, %13 : vector<2x32xf32>
    %c0_10 = arith.constant 0 : index
    %c0_11 = arith.constant 0 : index
    %15 = vector.load %arg4[%c0_10, %c0_11] : memref<2x32xf32, #tpu.memory_space<vmem>>, vector<2x32xf32>
    tpu.vector_store %arg4[%c0_10, %c0_11], %14 {strides = array<i32>} : memref<2x32xf32, #tpu.memory_space<vmem>>, vector<2x32xf32>,
    return
  }
  func.func @transform_0(%arg0: i32) -> (i32, i32) {
    %c0_i32 = arith.constant 0 : i32
    %c0_i32_0 = arith.constant 0 : i32
    return %arg0, %c0_i32 : i32, i32
  }
  func.func @transform_1(%arg0: i32) -> (i32, i32) {
    %c0_i32 = arith.constant 0 : i32
    %c0_i32_0 = arith.constant 0 : i32
    %c0_i32_1 = arith.constant 0 : i32
    return %c0_i32, %c0_i32_0 : i32, i32
  }
  func.func @transform_2(%arg0: i32) -> (i32, i32) {
    %c0_i32 = arith.constant 0 : i32
    %c0_i32_0 = arith.constant 0 : i32
    return %arg0, %c0_i32 : i32, i32
  }
  func.func @transform_3(%arg0: i32) -> (i32, i32) {
    %c0_i32 = arith.constant 0 : i32
    %c0_i32_0 = arith.constant 0 : i32
    %c0_i32_1 = arith.constant 0 : i32
    return %c0_i32, %c0_i32_0 : i32, i32
  }
}

module attributes {stable_mosaic.version = 11 : i64} {
  func.func @_norm_relu_matmul_stats_kernel(%arg0: i32, %arg1: memref<128x32xf32, #tpu.memory_space<vmem>>, %arg2: memref<1x32xf32, #tpu.memory_space<vmem>>, %arg3: memref<1x32xf32, #tpu.memory_space<vmem>>, %arg4: memref<32x32xf32, #tpu.memory_space<vmem>>, %arg5: memref<128x32xf32, #tpu.memory_space<vmem>>, %arg6: memref<2x32xf32, #tpu.memory_space<vmem>>) attributes {dimension_semantics = [#tpu.dimension_semantics<arbitrary>], iteration_bounds = array<i64: 1>, scalar_prefetch = 0 : i64, scratch_operands = 0 : i64, tpu.core_type = #tpu.core_type<tc>, window_params = [{transform_indices = @transform_0, window_bounds = array<i64: 128, 32>}, {pipeline_mode = #tpu.pipeline_mode<synchronous>, transform_indices = @transform_1, window_bounds = array<i64: 1, 32>}, {pipeline_mode = #tpu.pipeline_mode<synchronous>, transform_indices = @transform_2, window_bounds = array<i64: 1, 32>}, {pipeline_mode = #tpu.pipeline_mode<synchronous>, transform_indices = @transform_3, window_bounds = array<i64: 32, 32>}, {transform_indices = @transform_4, window_bounds = array<i64: 128, 32>}, {pipeline_mode = #tpu.pipeline_mode<synchronous>, transform_indices = @transform_5, window_bounds = array<i64: 2, 32>}]} {
    %c0_i32 = arith.constant 0 : i32
    %0 = arith.cmpi eq, %arg0, %c0_i32 : i32
    %1 = arith.extui %0 : i1 to i32
    %c0_i32_0 = arith.constant 0 : i32
    %2 = arith.cmpi ne, %1, %c0_i32_0 : i32
    scf.if %2 {
      %cst_17 = arith.constant 0.000000e+00 : f32
      %24 = vector.broadcast %cst_17 : f32 to vector<2x32xf32>
      %c0_18 = arith.constant 0 : index
      %c0_19 = arith.constant 0 : index
      %25 = vector.load %arg6[%c0_18, %c0_19] : memref<2x32xf32, #tpu.memory_space<vmem>>, vector<2x32xf32>
      tpu.vector_store %arg6[%c0_18, %c0_19], %24 {strides = array<i32>} : memref<2x32xf32, #tpu.memory_space<vmem>>, vector<2x32xf32>,
    } else {
    }
    %c0 = arith.constant 0 : index
    %c0_1 = arith.constant 0 : index
    %3 = vector.load %arg1[%c0, %c0_1] : memref<128x32xf32, #tpu.memory_space<vmem>>, vector<128x32xf32>
    %c0_2 = arith.constant 0 : index
    %c0_3 = arith.constant 0 : index
    %4 = vector.load %arg2[%c0_2, %c0_3] : memref<1x32xf32, #tpu.memory_space<vmem>>, vector<1x32xf32>
    %5 = vector.broadcast %4 : vector<1x32xf32> to vector<128x32xf32>
    %6 = arith.mulf %3, %5 : vector<128x32xf32>
    %c0_4 = arith.constant 0 : index
    %c0_5 = arith.constant 0 : index
    %7 = vector.load %arg3[%c0_4, %c0_5] : memref<1x32xf32, #tpu.memory_space<vmem>>, vector<1x32xf32>
    %8 = vector.broadcast %7 : vector<1x32xf32> to vector<128x32xf32>
    %9 = arith.addf %6, %8 : vector<128x32xf32>
    %cst = arith.constant 0.000000e+00 : f32
    %10 = vector.broadcast %cst : f32 to vector<128x32xf32>
    %11 = arith.maximumf %9, %10 : vector<128x32xf32>
    %c0_6 = arith.constant 0 : index
    %c0_7 = arith.constant 0 : index
    %12 = vector.load %arg4[%c0_6, %c0_7] : memref<32x32xf32, #tpu.memory_space<vmem>>, vector<32x32xf32>
    %cst_8 = arith.constant dense<0.000000e+00> : vector<128x32xf32>
    %13 = tpu.matmul %11, %12, %cst_8 {dimension_numbers = #tpu.dot_dimension_numbers<[1], [0], [0], [1], [0, 0, 1, 1], [], []>} : vector<128x32xf32>, vector<32x32xf32>, vector<128x32xf32> -> vector<128x32xf32>
    %c0_9 = arith.constant 0 : index
    %c0_10 = arith.constant 0 : index
    %14 = vector.load %arg5[%c0_9, %c0_10] : memref<128x32xf32, #tpu.memory_space<vmem>>, vector<128x32xf32>
    tpu.vector_store %arg5[%c0_9, %c0_10], %13 {strides = array<i32>} : memref<128x32xf32, #tpu.memory_space<vmem>>, vector<128x32xf32>,
    %cst_11 = arith.constant dense<0.000000e+00> : vector<32xf32>
    %15 = vector.multi_reduction <add>, %13, %cst_11 [0] : vector<128x32xf32> to vector<32xf32>
    %16 = vector.shape_cast %15 : vector<32xf32> to vector<1x32xf32>
    %17 = arith.mulf %13, %13 : vector<128x32xf32>
    %cst_12 = arith.constant dense<0.000000e+00> : vector<32xf32>
    %18 = vector.multi_reduction <add>, %17, %cst_12 [0] : vector<128x32xf32> to vector<32xf32>
    %19 = vector.shape_cast %18 : vector<32xf32> to vector<1x32xf32>
    %c0_13 = arith.constant 0 : index
    %c0_14 = arith.constant 0 : index
    %20 = vector.load %arg6[%c0_13, %c0_14] : memref<2x32xf32, #tpu.memory_space<vmem>>, vector<2x32xf32>
    %21 = tpu.concatenate %16, %19 in 0 : vector<1x32xf32>, vector<1x32xf32> -> vector<2x32xf32>
    %22 = arith.addf %20, %21 : vector<2x32xf32>
    %c0_15 = arith.constant 0 : index
    %c0_16 = arith.constant 0 : index
    %23 = vector.load %arg6[%c0_15, %c0_16] : memref<2x32xf32, #tpu.memory_space<vmem>>, vector<2x32xf32>
    tpu.vector_store %arg6[%c0_15, %c0_16], %22 {strides = array<i32>} : memref<2x32xf32, #tpu.memory_space<vmem>>, vector<2x32xf32>,
    return
  }
  func.func @transform_0(%arg0: i32) -> (i32, i32) {
    %c0_i32 = arith.constant 0 : i32
    %c0_i32_0 = arith.constant 0 : i32
    return %arg0, %c0_i32 : i32, i32
  }
  func.func @transform_1(%arg0: i32) -> (i32, i32) {
    %c0_i32 = arith.constant 0 : i32
    %c0_i32_0 = arith.constant 0 : i32
    %c0_i32_1 = arith.constant 0 : i32
    return %c0_i32, %c0_i32_0 : i32, i32
  }
  func.func @transform_2(%arg0: i32) -> (i32, i32) {
    %c0_i32 = arith.constant 0 : i32
    %c0_i32_0 = arith.constant 0 : i32
    %c0_i32_1 = arith.constant 0 : i32
    return %c0_i32, %c0_i32_0 : i32, i32
  }
  func.func @transform_3(%arg0: i32) -> (i32, i32) {
    %c0_i32 = arith.constant 0 : i32
    %c0_i32_0 = arith.constant 0 : i32
    %c0_i32_1 = arith.constant 0 : i32
    return %c0_i32, %c0_i32_0 : i32, i32
  }
  func.func @transform_4(%arg0: i32) -> (i32, i32) {
    %c0_i32 = arith.constant 0 : i32
    %c0_i32_0 = arith.constant 0 : i32
    return %arg0, %c0_i32 : i32, i32
  }
  func.func @transform_5(%arg0: i32) -> (i32, i32) {
    %c0_i32 = arith.constant 0 : i32
    %c0_i32_0 = arith.constant 0 : i32
    %c0_i32_1 = arith.constant 0 : i32
    return %c0_i32, %c0_i32_0 : i32, i32
  }
}

module attributes {stable_mosaic.version = 11 : i64} {
  func.func @_conv3_couple_kernel(%arg0: i32, %arg1: memref<128x288xf32, #tpu.memory_space<vmem>>, %arg2: memref<128x16xf32, #tpu.memory_space<vmem>>, %arg3: memref<1x288xf32, #tpu.memory_space<vmem>>, %arg4: memref<1x288xf32, #tpu.memory_space<vmem>>, %arg5: memref<288x8xf32, #tpu.memory_space<vmem>>, %arg6: memref<288x8xf32, #tpu.memory_space<vmem>>, %arg7: memref<1x8xf32, #tpu.memory_space<vmem>>, %arg8: memref<1x8xf32, #tpu.memory_space<vmem>>, %arg9: memref<128x16xf32, #tpu.memory_space<vmem>>) attributes {dimension_semantics = [#tpu.dimension_semantics<parallel>], iteration_bounds = array<i64: 1>, scalar_prefetch = 0 : i64, scratch_operands = 0 : i64, tpu.core_type = #tpu.core_type<tc>, window_params = [{transform_indices = @transform_0, window_bounds = array<i64: 128, 288>}, {transform_indices = @transform_1, window_bounds = array<i64: 128, 16>}, {pipeline_mode = #tpu.pipeline_mode<synchronous>, transform_indices = @transform_2, window_bounds = array<i64: 1, 288>}, {pipeline_mode = #tpu.pipeline_mode<synchronous>, transform_indices = @transform_3, window_bounds = array<i64: 1, 288>}, {pipeline_mode = #tpu.pipeline_mode<synchronous>, transform_indices = @transform_4, window_bounds = array<i64: 288, 8>}, {pipeline_mode = #tpu.pipeline_mode<synchronous>, transform_indices = @transform_5, window_bounds = array<i64: 288, 8>}, {pipeline_mode = #tpu.pipeline_mode<synchronous>, transform_indices = @transform_6, window_bounds = array<i64: 1, 8>}, {pipeline_mode = #tpu.pipeline_mode<synchronous>, transform_indices = @transform_7, window_bounds = array<i64: 1, 8>}, {transform_indices = @transform_8, window_bounds = array<i64: 128, 16>}]} {
    %c0 = arith.constant 0 : index
    %c0_0 = arith.constant 0 : index
    %0 = vector.load %arg1[%c0, %c0_0] : memref<128x288xf32, #tpu.memory_space<vmem>>, vector<128x288xf32>
    %c0_1 = arith.constant 0 : index
    %c0_2 = arith.constant 0 : index
    %1 = vector.load %arg3[%c0_1, %c0_2] : memref<1x288xf32, #tpu.memory_space<vmem>>, vector<1x288xf32>
    %2 = vector.broadcast %1 : vector<1x288xf32> to vector<128x288xf32>
    %3 = arith.mulf %0, %2 : vector<128x288xf32>
    %c0_3 = arith.constant 0 : index
    %c0_4 = arith.constant 0 : index
    %4 = vector.load %arg4[%c0_3, %c0_4] : memref<1x288xf32, #tpu.memory_space<vmem>>, vector<1x288xf32>
    %5 = vector.broadcast %4 : vector<1x288xf32> to vector<128x288xf32>
    %6 = arith.addf %3, %5 : vector<128x288xf32>
    %cst = arith.constant 0.000000e+00 : f32
    %7 = vector.broadcast %cst : f32 to vector<128x288xf32>
    %8 = arith.maximumf %6, %7 : vector<128x288xf32>
    %c0_5 = arith.constant 0 : index
    %c0_6 = arith.constant 0 : index
    %9 = vector.load %arg5[%c0_5, %c0_6] : memref<288x8xf32, #tpu.memory_space<vmem>>, vector<288x8xf32>
    %cst_7 = arith.constant dense<0.000000e+00> : vector<128x8xf32>
    %10 = tpu.matmul %8, %9, %cst_7 {dimension_numbers = #tpu.dot_dimension_numbers<[1], [0], [0], [1], [0, 0, 1, 1], [], []>} : vector<128x288xf32>, vector<288x8xf32>, vector<128x8xf32> -> vector<128x8xf32>
    %c0_8 = arith.constant 0 : index
    %c0_9 = arith.constant 0 : index
    %11 = vector.load %arg7[%c0_8, %c0_9] : memref<1x8xf32, #tpu.memory_space<vmem>>, vector<1x8xf32>
    %12 = vector.broadcast %11 : vector<1x8xf32> to vector<128x8xf32>
    %13 = arith.addf %10, %12 : vector<128x8xf32>
    %c0_10 = arith.constant 0 : index
    %c0_11 = arith.constant 0 : index
    %14 = vector.load %arg6[%c0_10, %c0_11] : memref<288x8xf32, #tpu.memory_space<vmem>>, vector<288x8xf32>
    %cst_12 = arith.constant dense<0.000000e+00> : vector<128x8xf32>
    %15 = tpu.matmul %8, %14, %cst_12 {dimension_numbers = #tpu.dot_dimension_numbers<[1], [0], [0], [1], [0, 0, 1, 1], [], []>} : vector<128x288xf32>, vector<288x8xf32>, vector<128x8xf32> -> vector<128x8xf32>
    %c0_13 = arith.constant 0 : index
    %c0_14 = arith.constant 0 : index
    %16 = vector.load %arg8[%c0_13, %c0_14] : memref<1x8xf32, #tpu.memory_space<vmem>>, vector<1x8xf32>
    %17 = vector.broadcast %16 : vector<1x8xf32> to vector<128x8xf32>
    %18 = arith.addf %15, %17 : vector<128x8xf32>
    %cst_15 = arith.constant 2.000000e+00 : f32
    %19 = vector.broadcast %cst_15 : f32 to vector<128x8xf32>
    %20 = arith.addf %18, %19 : vector<128x8xf32>
    %cst_16 = arith.constant 0.000000e+00 : f32
    %21 = vector.broadcast %cst_16 : f32 to vector<128x8xf32>
    %22 = arith.subf %21, %20 : vector<128x8xf32>
    %23 = math.exp %22 : vector<128x8xf32>
    %cst_17 = arith.constant 1.000000e+00 : f32
    %24 = vector.broadcast %cst_17 : f32 to vector<128x8xf32>
    %25 = arith.addf %24, %23 : vector<128x8xf32>
    %cst_18 = arith.constant 1.000000e+00 : f32
    %26 = vector.broadcast %cst_18 : f32 to vector<128x8xf32>
    %27 = arith.divf %26, %25 : vector<128x8xf32>
    %c0_19 = arith.constant 0 : index
    %c0_20 = arith.constant 0 : index
    %28 = vector.load %arg2[%c0_19, %c0_20] : memref<128x16xf32, #tpu.memory_space<vmem>>, vector<128x16xf32>
    %29 = vector.extract_strided_slice %28 {offsets = [0, 0], sizes = [128, 8], strides = [1, 1]} : vector<128x16xf32> to vector<128x8xf32>
    %30 = arith.mulf %27, %29 : vector<128x8xf32>
    %31 = arith.addf %30, %13 : vector<128x8xf32>
    %cst_21 = arith.constant -1.000000e+09 : f32
    %cst_22 = arith.constant 1.000000e+09 : f32
    %32 = vector.broadcast %cst_21 : f32 to vector<128x8xf32>
    %33 = arith.maximumf %32, %31 : vector<128x8xf32>
    %34 = vector.broadcast %cst_22 : f32 to vector<128x8xf32>
    %35 = arith.minimumf %34, %33 : vector<128x8xf32>
    %36 = vector.extract_strided_slice %28 {offsets = [0, 8], sizes = [128, 8], strides = [1, 1]} : vector<128x16xf32> to vector<128x8xf32>
    %37 = tpu.concatenate %35, %36 in 1 : vector<128x8xf32>, vector<128x8xf32> -> vector<128x16xf32>
    %c0_23 = arith.constant 0 : index
    %c0_24 = arith.constant 0 : index
    %38 = vector.load %arg9[%c0_23, %c0_24] : memref<128x16xf32, #tpu.memory_space<vmem>>, vector<128x16xf32>
    tpu.vector_store %arg9[%c0_23, %c0_24], %37 {strides = array<i32>} : memref<128x16xf32, #tpu.memory_space<vmem>>, vector<128x16xf32>,
    return
  }
  func.func @transform_0(%arg0: i32) -> (i32, i32) {
    %c0_i32 = arith.constant 0 : i32
    %c0_i32_0 = arith.constant 0 : i32
    return %arg0, %c0_i32 : i32, i32
  }
  func.func @transform_1(%arg0: i32) -> (i32, i32) {
    %c0_i32 = arith.constant 0 : i32
    %c0_i32_0 = arith.constant 0 : i32
    return %arg0, %c0_i32 : i32, i32
  }
  func.func @transform_2(%arg0: i32) -> (i32, i32) {
    %c0_i32 = arith.constant 0 : i32
    %c0_i32_0 = arith.constant 0 : i32
    %c0_i32_1 = arith.constant 0 : i32
    return %c0_i32, %c0_i32_0 : i32, i32
  }
  func.func @transform_3(%arg0: i32) -> (i32, i32) {
    %c0_i32 = arith.constant 0 : i32
    %c0_i32_0 = arith.constant 0 : i32
    %c0_i32_1 = arith.constant 0 : i32
    return %c0_i32, %c0_i32_0 : i32, i32
  }
  func.func @transform_4(%arg0: i32) -> (i32, i32) {
    %c0_i32 = arith.constant 0 : i32
    %c0_i32_0 = arith.constant 0 : i32
    %c0_i32_1 = arith.constant 0 : i32
    return %c0_i32, %c0_i32_0 : i32, i32
  }
  func.func @transform_5(%arg0: i32) -> (i32, i32) {
    %c0_i32 = arith.constant 0 : i32
    %c0_i32_0 = arith.constant 0 : i32
    %c0_i32_1 = arith.constant 0 : i32
    return %c0_i32, %c0_i32_0 : i32, i32
  }
  func.func @transform_6(%arg0: i32) -> (i32, i32) {
    %c0_i32 = arith.constant 0 : i32
    %c0_i32_0 = arith.constant 0 : i32
    %c0_i32_1 = arith.constant 0 : i32
    return %c0_i32, %c0_i32_0 : i32, i32
  }
  func.func @transform_7(%arg0: i32) -> (i32, i32) {
    %c0_i32 = arith.constant 0 : i32
    %c0_i32_0 = arith.constant 0 : i32
    %c0_i32_1 = arith.constant 0 : i32
    return %c0_i32, %c0_i32_0 : i32, i32
  }
  func.func @transform_8(%arg0: i32) -> (i32, i32) {
    %c0_i32 = arith.constant 0 : i32
    %c0_i32_0 = arith.constant 0 : i32
    return %arg0, %c0_i32 : i32, i32
  }
}

module attributes {stable_mosaic.version = 11 : i64} {
  func.func @_stats_kernel(%arg0: i32, %arg1: memref<32x32xf32, #tpu.memory_space<vmem>>, %arg2: memref<2x32xf32, #tpu.memory_space<vmem>>) attributes {dimension_semantics = [#tpu.dimension_semantics<arbitrary>], iteration_bounds = array<i64: 1>, scalar_prefetch = 0 : i64, scratch_operands = 0 : i64, tpu.core_type = #tpu.core_type<tc>, window_params = [{transform_indices = @transform_0, window_bounds = array<i64: 32, 32>}, {pipeline_mode = #tpu.pipeline_mode<synchronous>, transform_indices = @transform_1, window_bounds = array<i64: 2, 32>}]} {
    %c0_i32 = arith.constant 0 : i32
    %0 = arith.cmpi eq, %arg0, %c0_i32 : i32
    %1 = arith.extui %0 : i1 to i32
    %c0_i32_0 = arith.constant 0 : i32
    %2 = arith.cmpi ne, %1, %c0_i32_0 : i32
    scf.if %2 {
      %cst_7 = arith.constant 0.000000e+00 : f32
      %13 = vector.broadcast %cst_7 : f32 to vector<2x32xf32>
      %c0_8 = arith.constant 0 : index
      %c0_9 = arith.constant 0 : index
      %14 = vector.load %arg2[%c0_8, %c0_9] : memref<2x32xf32, #tpu.memory_space<vmem>>, vector<2x32xf32>
      tpu.vector_store %arg2[%c0_8, %c0_9], %13 {strides = array<i32>} : memref<2x32xf32, #tpu.memory_space<vmem>>, vector<2x32xf32>,
    } else {
    }
    %c0 = arith.constant 0 : index
    %c0_1 = arith.constant 0 : index
    %3 = vector.load %arg1[%c0, %c0_1] : memref<32x32xf32, #tpu.memory_space<vmem>>, vector<32x32xf32>
    %cst = arith.constant dense<0.000000e+00> : vector<32xf32>
    %4 = vector.multi_reduction <add>, %3, %cst [0] : vector<32x32xf32> to vector<32xf32>
    %5 = vector.shape_cast %4 : vector<32xf32> to vector<1x32xf32>
    %6 = arith.mulf %3, %3 : vector<32x32xf32>
    %cst_2 = arith.constant dense<0.000000e+00> : vector<32xf32>
    %7 = vector.multi_reduction <add>, %6, %cst_2 [0] : vector<32x32xf32> to vector<32xf32>
    %8 = vector.shape_cast %7 : vector<32xf32> to vector<1x32xf32>
    %c0_3 = arith.constant 0 : index
    %c0_4 = arith.constant 0 : index
    %9 = vector.load %arg2[%c0_3, %c0_4] : memref<2x32xf32, #tpu.memory_space<vmem>>, vector<2x32xf32>
    %10 = tpu.concatenate %5, %8 in 0 : vector<1x32xf32>, vector<1x32xf32> -> vector<2x32xf32>
    %11 = arith.addf %9, %10 : vector<2x32xf32>
    %c0_5 = arith.constant 0 : index
    %c0_6 = arith.constant 0 : index
    %12 = vector.load %arg2[%c0_5, %c0_6] : memref<2x32xf32, #tpu.memory_space<vmem>>, vector<2x32xf32>
    tpu.vector_store %arg2[%c0_5, %c0_6], %11 {strides = array<i32>} : memref<2x32xf32, #tpu.memory_space<vmem>>, vector<2x32xf32>,
    return
  }
  func.func @transform_0(%arg0: i32) -> (i32, i32) {
    %c0_i32 = arith.constant 0 : i32
    %c0_i32_0 = arith.constant 0 : i32
    return %arg0, %c0_i32 : i32, i32
  }
  func.func @transform_1(%arg0: i32) -> (i32, i32) {
    %c0_i32 = arith.constant 0 : i32
    %c0_i32_0 = arith.constant 0 : i32
    %c0_i32_1 = arith.constant 0 : i32
    return %c0_i32, %c0_i32_0 : i32, i32
  }
}

module attributes {stable_mosaic.version = 11 : i64} {
  func.func @_matmul_bias_kernel(%arg0: i32, %arg1: memref<32x32xf32, #tpu.memory_space<vmem>>, %arg2: memref<32x32xf32, #tpu.memory_space<vmem>>, %arg3: memref<1x32xf32, #tpu.memory_space<vmem>>, %arg4: memref<32x32xf32, #tpu.memory_space<vmem>>) attributes {dimension_semantics = [#tpu.dimension_semantics<parallel>], iteration_bounds = array<i64: 1>, scalar_prefetch = 0 : i64, scratch_operands = 0 : i64, tpu.core_type = #tpu.core_type<tc>, window_params = [{transform_indices = @transform_0, window_bounds = array<i64: 32, 32>}, {pipeline_mode = #tpu.pipeline_mode<synchronous>, transform_indices = @transform_1, window_bounds = array<i64: 32, 32>}, {pipeline_mode = #tpu.pipeline_mode<synchronous>, transform_indices = @transform_2, window_bounds = array<i64: 1, 32>}, {transform_indices = @transform_3, window_bounds = array<i64: 32, 32>}]} {
    %c0 = arith.constant 0 : index
    %c0_0 = arith.constant 0 : index
    %0 = vector.load %arg1[%c0, %c0_0] : memref<32x32xf32, #tpu.memory_space<vmem>>, vector<32x32xf32>
    %c0_1 = arith.constant 0 : index
    %c0_2 = arith.constant 0 : index
    %1 = vector.load %arg2[%c0_1, %c0_2] : memref<32x32xf32, #tpu.memory_space<vmem>>, vector<32x32xf32>
    %cst = arith.constant dense<0.000000e+00> : vector<32x32xf32>
    %2 = tpu.matmul %0, %1, %cst {dimension_numbers = #tpu.dot_dimension_numbers<[1], [0], [0], [1], [0, 0, 1, 1], [], []>} : vector<32x32xf32>, vector<32x32xf32>, vector<32x32xf32> -> vector<32x32xf32>
    %c0_3 = arith.constant 0 : index
    %c0_4 = arith.constant 0 : index
    %3 = vector.load %arg3[%c0_3, %c0_4] : memref<1x32xf32, #tpu.memory_space<vmem>>, vector<1x32xf32>
    %4 = vector.broadcast %3 : vector<1x32xf32> to vector<32x32xf32>
    %5 = arith.addf %2, %4 : vector<32x32xf32>
    %c0_5 = arith.constant 0 : index
    %c0_6 = arith.constant 0 : index
    %6 = vector.load %arg4[%c0_5, %c0_6] : memref<32x32xf32, #tpu.memory_space<vmem>>, vector<32x32xf32>
    tpu.vector_store %arg4[%c0_5, %c0_6], %5 {strides = array<i32>} : memref<32x32xf32, #tpu.memory_space<vmem>>, vector<32x32xf32>,
    return
  }
  func.func @transform_0(%arg0: i32) -> (i32, i32) {
    %c0_i32 = arith.constant 0 : i32
    %c0_i32_0 = arith.constant 0 : i32
    return %arg0, %c0_i32 : i32, i32
  }
  func.func @transform_1(%arg0: i32) -> (i32, i32) {
    %c0_i32 = arith.constant 0 : i32
    %c0_i32_0 = arith.constant 0 : i32
    %c0_i32_1 = arith.constant 0 : i32
    return %c0_i32, %c0_i32_0 : i32, i32
  }
  func.func @transform_2(%arg0: i32) -> (i32, i32) {
    %c0_i32 = arith.constant 0 : i32
    %c0_i32_0 = arith.constant 0 : i32
    %c0_i32_1 = arith.constant 0 : i32
    return %c0_i32, %c0_i32_0 : i32, i32
  }
  func.func @transform_3(%arg0: i32) -> (i32, i32) {
    %c0_i32 = arith.constant 0 : i32
    %c0_i32_0 = arith.constant 0 : i32
    return %arg0, %c0_i32 : i32, i32
  }
}

module attributes {stable_mosaic.version = 11 : i64} {
  func.func @_conv_stats_kernel(%arg0: i32, %arg1: memref<32x144xf32, #tpu.memory_space<vmem>>, %arg2: memref<144x32xf32, #tpu.memory_space<vmem>>, %arg3: memref<32x32xf32, #tpu.memory_space<vmem>>, %arg4: memref<2x32xf32, #tpu.memory_space<vmem>>) attributes {dimension_semantics = [#tpu.dimension_semantics<arbitrary>], iteration_bounds = array<i64: 1>, scalar_prefetch = 0 : i64, scratch_operands = 0 : i64, tpu.core_type = #tpu.core_type<tc>, window_params = [{transform_indices = @transform_0, window_bounds = array<i64: 32, 144>}, {pipeline_mode = #tpu.pipeline_mode<synchronous>, transform_indices = @transform_1, window_bounds = array<i64: 144, 32>}, {transform_indices = @transform_2, window_bounds = array<i64: 32, 32>}, {pipeline_mode = #tpu.pipeline_mode<synchronous>, transform_indices = @transform_3, window_bounds = array<i64: 2, 32>}]} {
    %c0_i32 = arith.constant 0 : i32
    %0 = arith.cmpi eq, %arg0, %c0_i32 : i32
    %1 = arith.extui %0 : i1 to i32
    %c0_i32_0 = arith.constant 0 : i32
    %2 = arith.cmpi ne, %1, %c0_i32_0 : i32
    scf.if %2 {
      %cst_12 = arith.constant 0.000000e+00 : f32
      %16 = vector.broadcast %cst_12 : f32 to vector<2x32xf32>
      %c0_13 = arith.constant 0 : index
      %c0_14 = arith.constant 0 : index
      %17 = vector.load %arg4[%c0_13, %c0_14] : memref<2x32xf32, #tpu.memory_space<vmem>>, vector<2x32xf32>
      tpu.vector_store %arg4[%c0_13, %c0_14], %16 {strides = array<i32>} : memref<2x32xf32, #tpu.memory_space<vmem>>, vector<2x32xf32>,
    } else {
    }
    %c0 = arith.constant 0 : index
    %c0_1 = arith.constant 0 : index
    %3 = vector.load %arg1[%c0, %c0_1] : memref<32x144xf32, #tpu.memory_space<vmem>>, vector<32x144xf32>
    %c0_2 = arith.constant 0 : index
    %c0_3 = arith.constant 0 : index
    %4 = vector.load %arg2[%c0_2, %c0_3] : memref<144x32xf32, #tpu.memory_space<vmem>>, vector<144x32xf32>
    %cst = arith.constant dense<0.000000e+00> : vector<32x32xf32>
    %5 = tpu.matmul %3, %4, %cst {dimension_numbers = #tpu.dot_dimension_numbers<[1], [0], [0], [1], [0, 0, 1, 1], [], []>} : vector<32x144xf32>, vector<144x32xf32>, vector<32x32xf32> -> vector<32x32xf32>
    %c0_4 = arith.constant 0 : index
    %c0_5 = arith.constant 0 : index
    %6 = vector.load %arg3[%c0_4, %c0_5] : memref<32x32xf32, #tpu.memory_space<vmem>>, vector<32x32xf32>
    tpu.vector_store %arg3[%c0_4, %c0_5], %5 {strides = array<i32>} : memref<32x32xf32, #tpu.memory_space<vmem>>, vector<32x32xf32>,
    %cst_6 = arith.constant dense<0.000000e+00> : vector<32xf32>
    %7 = vector.multi_reduction <add>, %5, %cst_6 [0] : vector<32x32xf32> to vector<32xf32>
    %8 = vector.shape_cast %7 : vector<32xf32> to vector<1x32xf32>
    %9 = arith.mulf %5, %5 : vector<32x32xf32>
    %cst_7 = arith.constant dense<0.000000e+00> : vector<32xf32>
    %10 = vector.multi_reduction <add>, %9, %cst_7 [0] : vector<32x32xf32> to vector<32xf32>
    %11 = vector.shape_cast %10 : vector<32xf32> to vector<1x32xf32>
    %c0_8 = arith.constant 0 : index
    %c0_9 = arith.constant 0 : index
    %12 = vector.load %arg4[%c0_8, %c0_9] : memref<2x32xf32, #tpu.memory_space<vmem>>, vector<2x32xf32>
    %13 = tpu.concatenate %8, %11 in 0 : vector<1x32xf32>, vector<1x32xf32> -> vector<2x32xf32>
    %14 = arith.addf %12, %13 : vector<2x32xf32>
    %c0_10 = arith.constant 0 : index
    %c0_11 = arith.constant 0 : index
    %15 = vector.load %arg4[%c0_10, %c0_11] : memref<2x32xf32, #tpu.memory_space<vmem>>, vector<2x32xf32>
    tpu.vector_store %arg4[%c0_10, %c0_11], %14 {strides = array<i32>} : memref<2x32xf32, #tpu.memory_space<vmem>>, vector<2x32xf32>,
    return
  }
  func.func @transform_0(%arg0: i32) -> (i32, i32) {
    %c0_i32 = arith.constant 0 : i32
    %c0_i32_0 = arith.constant 0 : i32
    return %arg0, %c0_i32 : i32, i32
  }
  func.func @transform_1(%arg0: i32) -> (i32, i32) {
    %c0_i32 = arith.constant 0 : i32
    %c0_i32_0 = arith.constant 0 : i32
    %c0_i32_1 = arith.constant 0 : i32
    return %c0_i32, %c0_i32_0 : i32, i32
  }
  func.func @transform_2(%arg0: i32) -> (i32, i32) {
    %c0_i32 = arith.constant 0 : i32
    %c0_i32_0 = arith.constant 0 : i32
    return %arg0, %c0_i32 : i32, i32
  }
  func.func @transform_3(%arg0: i32) -> (i32, i32) {
    %c0_i32 = arith.constant 0 : i32
    %c0_i32_0 = arith.constant 0 : i32
    %c0_i32_1 = arith.constant 0 : i32
    return %c0_i32, %c0_i32_0 : i32, i32
  }
}

module attributes {stable_mosaic.version = 11 : i64} {
  func.func @_norm_relu_matmul_stats_kernel(%arg0: i32, %arg1: memref<32x32xf32, #tpu.memory_space<vmem>>, %arg2: memref<1x32xf32, #tpu.memory_space<vmem>>, %arg3: memref<1x32xf32, #tpu.memory_space<vmem>>, %arg4: memref<32x32xf32, #tpu.memory_space<vmem>>, %arg5: memref<32x32xf32, #tpu.memory_space<vmem>>, %arg6: memref<2x32xf32, #tpu.memory_space<vmem>>) attributes {dimension_semantics = [#tpu.dimension_semantics<arbitrary>], iteration_bounds = array<i64: 1>, scalar_prefetch = 0 : i64, scratch_operands = 0 : i64, tpu.core_type = #tpu.core_type<tc>, window_params = [{transform_indices = @transform_0, window_bounds = array<i64: 32, 32>}, {pipeline_mode = #tpu.pipeline_mode<synchronous>, transform_indices = @transform_1, window_bounds = array<i64: 1, 32>}, {pipeline_mode = #tpu.pipeline_mode<synchronous>, transform_indices = @transform_2, window_bounds = array<i64: 1, 32>}, {pipeline_mode = #tpu.pipeline_mode<synchronous>, transform_indices = @transform_3, window_bounds = array<i64: 32, 32>}, {transform_indices = @transform_4, window_bounds = array<i64: 32, 32>}, {pipeline_mode = #tpu.pipeline_mode<synchronous>, transform_indices = @transform_5, window_bounds = array<i64: 2, 32>}]} {
    %c0_i32 = arith.constant 0 : i32
    %0 = arith.cmpi eq, %arg0, %c0_i32 : i32
    %1 = arith.extui %0 : i1 to i32
    %c0_i32_0 = arith.constant 0 : i32
    %2 = arith.cmpi ne, %1, %c0_i32_0 : i32
    scf.if %2 {
      %cst_17 = arith.constant 0.000000e+00 : f32
      %24 = vector.broadcast %cst_17 : f32 to vector<2x32xf32>
      %c0_18 = arith.constant 0 : index
      %c0_19 = arith.constant 0 : index
      %25 = vector.load %arg6[%c0_18, %c0_19] : memref<2x32xf32, #tpu.memory_space<vmem>>, vector<2x32xf32>
      tpu.vector_store %arg6[%c0_18, %c0_19], %24 {strides = array<i32>} : memref<2x32xf32, #tpu.memory_space<vmem>>, vector<2x32xf32>,
    } else {
    }
    %c0 = arith.constant 0 : index
    %c0_1 = arith.constant 0 : index
    %3 = vector.load %arg1[%c0, %c0_1] : memref<32x32xf32, #tpu.memory_space<vmem>>, vector<32x32xf32>
    %c0_2 = arith.constant 0 : index
    %c0_3 = arith.constant 0 : index
    %4 = vector.load %arg2[%c0_2, %c0_3] : memref<1x32xf32, #tpu.memory_space<vmem>>, vector<1x32xf32>
    %5 = vector.broadcast %4 : vector<1x32xf32> to vector<32x32xf32>
    %6 = arith.mulf %3, %5 : vector<32x32xf32>
    %c0_4 = arith.constant 0 : index
    %c0_5 = arith.constant 0 : index
    %7 = vector.load %arg3[%c0_4, %c0_5] : memref<1x32xf32, #tpu.memory_space<vmem>>, vector<1x32xf32>
    %8 = vector.broadcast %7 : vector<1x32xf32> to vector<32x32xf32>
    %9 = arith.addf %6, %8 : vector<32x32xf32>
    %cst = arith.constant 0.000000e+00 : f32
    %10 = vector.broadcast %cst : f32 to vector<32x32xf32>
    %11 = arith.maximumf %9, %10 : vector<32x32xf32>
    %c0_6 = arith.constant 0 : index
    %c0_7 = arith.constant 0 : index
    %12 = vector.load %arg4[%c0_6, %c0_7] : memref<32x32xf32, #tpu.memory_space<vmem>>, vector<32x32xf32>
    %cst_8 = arith.constant dense<0.000000e+00> : vector<32x32xf32>
    %13 = tpu.matmul %11, %12, %cst_8 {dimension_numbers = #tpu.dot_dimension_numbers<[1], [0], [0], [1], [0, 0, 1, 1], [], []>} : vector<32x32xf32>, vector<32x32xf32>, vector<32x32xf32> -> vector<32x32xf32>
    %c0_9 = arith.constant 0 : index
    %c0_10 = arith.constant 0 : index
    %14 = vector.load %arg5[%c0_9, %c0_10] : memref<32x32xf32, #tpu.memory_space<vmem>>, vector<32x32xf32>
    tpu.vector_store %arg5[%c0_9, %c0_10], %13 {strides = array<i32>} : memref<32x32xf32, #tpu.memory_space<vmem>>, vector<32x32xf32>,
    %cst_11 = arith.constant dense<0.000000e+00> : vector<32xf32>
    %15 = vector.multi_reduction <add>, %13, %cst_11 [0] : vector<32x32xf32> to vector<32xf32>
    %16 = vector.shape_cast %15 : vector<32xf32> to vector<1x32xf32>
    %17 = arith.mulf %13, %13 : vector<32x32xf32>
    %cst_12 = arith.constant dense<0.000000e+00> : vector<32xf32>
    %18 = vector.multi_reduction <add>, %17, %cst_12 [0] : vector<32x32xf32> to vector<32xf32>
    %19 = vector.shape_cast %18 : vector<32xf32> to vector<1x32xf32>
    %c0_13 = arith.constant 0 : index
    %c0_14 = arith.constant 0 : index
    %20 = vector.load %arg6[%c0_13, %c0_14] : memref<2x32xf32, #tpu.memory_space<vmem>>, vector<2x32xf32>
    %21 = tpu.concatenate %16, %19 in 0 : vector<1x32xf32>, vector<1x32xf32> -> vector<2x32xf32>
    %22 = arith.addf %20, %21 : vector<2x32xf32>
    %c0_15 = arith.constant 0 : index
    %c0_16 = arith.constant 0 : index
    %23 = vector.load %arg6[%c0_15, %c0_16] : memref<2x32xf32, #tpu.memory_space<vmem>>, vector<2x32xf32>
    tpu.vector_store %arg6[%c0_15, %c0_16], %22 {strides = array<i32>} : memref<2x32xf32, #tpu.memory_space<vmem>>, vector<2x32xf32>,
    return
  }
  func.func @transform_0(%arg0: i32) -> (i32, i32) {
    %c0_i32 = arith.constant 0 : i32
    %c0_i32_0 = arith.constant 0 : i32
    return %arg0, %c0_i32 : i32, i32
  }
  func.func @transform_1(%arg0: i32) -> (i32, i32) {
    %c0_i32 = arith.constant 0 : i32
    %c0_i32_0 = arith.constant 0 : i32
    %c0_i32_1 = arith.constant 0 : i32
    return %c0_i32, %c0_i32_0 : i32, i32
  }
  func.func @transform_2(%arg0: i32) -> (i32, i32) {
    %c0_i32 = arith.constant 0 : i32
    %c0_i32_0 = arith.constant 0 : i32
    %c0_i32_1 = arith.constant 0 : i32
    return %c0_i32, %c0_i32_0 : i32, i32
  }
  func.func @transform_3(%arg0: i32) -> (i32, i32) {
    %c0_i32 = arith.constant 0 : i32
    %c0_i32_0 = arith.constant 0 : i32
    %c0_i32_1 = arith.constant 0 : i32
    return %c0_i32, %c0_i32_0 : i32, i32
  }
  func.func @transform_4(%arg0: i32) -> (i32, i32) {
    %c0_i32 = arith.constant 0 : i32
    %c0_i32_0 = arith.constant 0 : i32
    return %arg0, %c0_i32 : i32, i32
  }
  func.func @transform_5(%arg0: i32) -> (i32, i32) {
    %c0_i32 = arith.constant 0 : i32
    %c0_i32_0 = arith.constant 0 : i32
    %c0_i32_1 = arith.constant 0 : i32
    return %c0_i32, %c0_i32_0 : i32, i32
  }
}

module attributes {stable_mosaic.version = 11 : i64} {
  func.func @_conv3_couple_kernel(%arg0: i32, %arg1: memref<32x288xf32, #tpu.memory_space<vmem>>, %arg2: memref<32x32xf32, #tpu.memory_space<vmem>>, %arg3: memref<1x288xf32, #tpu.memory_space<vmem>>, %arg4: memref<1x288xf32, #tpu.memory_space<vmem>>, %arg5: memref<288x16xf32, #tpu.memory_space<vmem>>, %arg6: memref<288x16xf32, #tpu.memory_space<vmem>>, %arg7: memref<1x16xf32, #tpu.memory_space<vmem>>, %arg8: memref<1x16xf32, #tpu.memory_space<vmem>>, %arg9: memref<32x32xf32, #tpu.memory_space<vmem>>) attributes {dimension_semantics = [#tpu.dimension_semantics<parallel>], iteration_bounds = array<i64: 1>, scalar_prefetch = 0 : i64, scratch_operands = 0 : i64, tpu.core_type = #tpu.core_type<tc>, window_params = [{transform_indices = @transform_0, window_bounds = array<i64: 32, 288>}, {transform_indices = @transform_1, window_bounds = array<i64: 32, 32>}, {pipeline_mode = #tpu.pipeline_mode<synchronous>, transform_indices = @transform_2, window_bounds = array<i64: 1, 288>}, {pipeline_mode = #tpu.pipeline_mode<synchronous>, transform_indices = @transform_3, window_bounds = array<i64: 1, 288>}, {pipeline_mode = #tpu.pipeline_mode<synchronous>, transform_indices = @transform_4, window_bounds = array<i64: 288, 16>}, {pipeline_mode = #tpu.pipeline_mode<synchronous>, transform_indices = @transform_5, window_bounds = array<i64: 288, 16>}, {pipeline_mode = #tpu.pipeline_mode<synchronous>, transform_indices = @transform_6, window_bounds = array<i64: 1, 16>}, {pipeline_mode = #tpu.pipeline_mode<synchronous>, transform_indices = @transform_7, window_bounds = array<i64: 1, 16>}, {transform_indices = @transform_8, window_bounds = array<i64: 32, 32>}]} {
    %c0 = arith.constant 0 : index
    %c0_0 = arith.constant 0 : index
    %0 = vector.load %arg1[%c0, %c0_0] : memref<32x288xf32, #tpu.memory_space<vmem>>, vector<32x288xf32>
    %c0_1 = arith.constant 0 : index
    %c0_2 = arith.constant 0 : index
    %1 = vector.load %arg3[%c0_1, %c0_2] : memref<1x288xf32, #tpu.memory_space<vmem>>, vector<1x288xf32>
    %2 = vector.broadcast %1 : vector<1x288xf32> to vector<32x288xf32>
    %3 = arith.mulf %0, %2 : vector<32x288xf32>
    %c0_3 = arith.constant 0 : index
    %c0_4 = arith.constant 0 : index
    %4 = vector.load %arg4[%c0_3, %c0_4] : memref<1x288xf32, #tpu.memory_space<vmem>>, vector<1x288xf32>
    %5 = vector.broadcast %4 : vector<1x288xf32> to vector<32x288xf32>
    %6 = arith.addf %3, %5 : vector<32x288xf32>
    %cst = arith.constant 0.000000e+00 : f32
    %7 = vector.broadcast %cst : f32 to vector<32x288xf32>
    %8 = arith.maximumf %6, %7 : vector<32x288xf32>
    %c0_5 = arith.constant 0 : index
    %c0_6 = arith.constant 0 : index
    %9 = vector.load %arg5[%c0_5, %c0_6] : memref<288x16xf32, #tpu.memory_space<vmem>>, vector<288x16xf32>
    %cst_7 = arith.constant dense<0.000000e+00> : vector<32x16xf32>
    %10 = tpu.matmul %8, %9, %cst_7 {dimension_numbers = #tpu.dot_dimension_numbers<[1], [0], [0], [1], [0, 0, 1, 1], [], []>} : vector<32x288xf32>, vector<288x16xf32>, vector<32x16xf32> -> vector<32x16xf32>
    %c0_8 = arith.constant 0 : index
    %c0_9 = arith.constant 0 : index
    %11 = vector.load %arg7[%c0_8, %c0_9] : memref<1x16xf32, #tpu.memory_space<vmem>>, vector<1x16xf32>
    %12 = vector.broadcast %11 : vector<1x16xf32> to vector<32x16xf32>
    %13 = arith.addf %10, %12 : vector<32x16xf32>
    %c0_10 = arith.constant 0 : index
    %c0_11 = arith.constant 0 : index
    %14 = vector.load %arg6[%c0_10, %c0_11] : memref<288x16xf32, #tpu.memory_space<vmem>>, vector<288x16xf32>
    %cst_12 = arith.constant dense<0.000000e+00> : vector<32x16xf32>
    %15 = tpu.matmul %8, %14, %cst_12 {dimension_numbers = #tpu.dot_dimension_numbers<[1], [0], [0], [1], [0, 0, 1, 1], [], []>} : vector<32x288xf32>, vector<288x16xf32>, vector<32x16xf32> -> vector<32x16xf32>
    %c0_13 = arith.constant 0 : index
    %c0_14 = arith.constant 0 : index
    %16 = vector.load %arg8[%c0_13, %c0_14] : memref<1x16xf32, #tpu.memory_space<vmem>>, vector<1x16xf32>
    %17 = vector.broadcast %16 : vector<1x16xf32> to vector<32x16xf32>
    %18 = arith.addf %15, %17 : vector<32x16xf32>
    %cst_15 = arith.constant 2.000000e+00 : f32
    %19 = vector.broadcast %cst_15 : f32 to vector<32x16xf32>
    %20 = arith.addf %18, %19 : vector<32x16xf32>
    %cst_16 = arith.constant 0.000000e+00 : f32
    %21 = vector.broadcast %cst_16 : f32 to vector<32x16xf32>
    %22 = arith.subf %21, %20 : vector<32x16xf32>
    %23 = math.exp %22 : vector<32x16xf32>
    %cst_17 = arith.constant 1.000000e+00 : f32
    %24 = vector.broadcast %cst_17 : f32 to vector<32x16xf32>
    %25 = arith.addf %24, %23 : vector<32x16xf32>
    %cst_18 = arith.constant 1.000000e+00 : f32
    %26 = vector.broadcast %cst_18 : f32 to vector<32x16xf32>
    %27 = arith.divf %26, %25 : vector<32x16xf32>
    %c0_19 = arith.constant 0 : index
    %c0_20 = arith.constant 0 : index
    %28 = vector.load %arg2[%c0_19, %c0_20] : memref<32x32xf32, #tpu.memory_space<vmem>>, vector<32x32xf32>
    %29 = vector.extract_strided_slice %28 {offsets = [0, 0], sizes = [32, 16], strides = [1, 1]} : vector<32x32xf32> to vector<32x16xf32>
    %30 = arith.mulf %27, %29 : vector<32x16xf32>
    %31 = arith.addf %30, %13 : vector<32x16xf32>
    %cst_21 = arith.constant -1.000000e+09 : f32
    %cst_22 = arith.constant 1.000000e+09 : f32
    %32 = vector.broadcast %cst_21 : f32 to vector<32x16xf32>
    %33 = arith.maximumf %32, %31 : vector<32x16xf32>
    %34 = vector.broadcast %cst_22 : f32 to vector<32x16xf32>
    %35 = arith.minimumf %34, %33 : vector<32x16xf32>
    %36 = vector.extract_strided_slice %28 {offsets = [0, 16], sizes = [32, 16], strides = [1, 1]} : vector<32x32xf32> to vector<32x16xf32>
    %37 = tpu.concatenate %35, %36 in 1 : vector<32x16xf32>, vector<32x16xf32> -> vector<32x32xf32>
    %c0_23 = arith.constant 0 : index
    %c0_24 = arith.constant 0 : index
    %38 = vector.load %arg9[%c0_23, %c0_24] : memref<32x32xf32, #tpu.memory_space<vmem>>, vector<32x32xf32>
    tpu.vector_store %arg9[%c0_23, %c0_24], %37 {strides = array<i32>} : memref<32x32xf32, #tpu.memory_space<vmem>>, vector<32x32xf32>,
    return
  }
  func.func @transform_0(%arg0: i32) -> (i32, i32) {
    %c0_i32 = arith.constant 0 : i32
    %c0_i32_0 = arith.constant 0 : i32
    return %arg0, %c0_i32 : i32, i32
  }
  func.func @transform_1(%arg0: i32) -> (i32, i32) {
    %c0_i32 = arith.constant 0 : i32
    %c0_i32_0 = arith.constant 0 : i32
    return %arg0, %c0_i32 : i32, i32
  }
  func.func @transform_2(%arg0: i32) -> (i32, i32) {
    %c0_i32 = arith.constant 0 : i32
    %c0_i32_0 = arith.constant 0 : i32
    %c0_i32_1 = arith.constant 0 : i32
    return %c0_i32, %c0_i32_0 : i32, i32
  }
  func.func @transform_3(%arg0: i32) -> (i32, i32) {
    %c0_i32 = arith.constant 0 : i32
    %c0_i32_0 = arith.constant 0 : i32
    %c0_i32_1 = arith.constant 0 : i32
    return %c0_i32, %c0_i32_0 : i32, i32
  }
  func.func @transform_4(%arg0: i32) -> (i32, i32) {
    %c0_i32 = arith.constant 0 : i32
    %c0_i32_0 = arith.constant 0 : i32
    %c0_i32_1 = arith.constant 0 : i32
    return %c0_i32, %c0_i32_0 : i32, i32
  }
  func.func @transform_5(%arg0: i32) -> (i32, i32) {
    %c0_i32 = arith.constant 0 : i32
    %c0_i32_0 = arith.constant 0 : i32
    %c0_i32_1 = arith.constant 0 : i32
    return %c0_i32, %c0_i32_0 : i32, i32
  }
  func.func @transform_6(%arg0: i32) -> (i32, i32) {
    %c0_i32 = arith.constant 0 : i32
    %c0_i32_0 = arith.constant 0 : i32
    %c0_i32_1 = arith.constant 0 : i32
    return %c0_i32, %c0_i32_0 : i32, i32
  }
  func.func @transform_7(%arg0: i32) -> (i32, i32) {
    %c0_i32 = arith.constant 0 : i32
    %c0_i32_0 = arith.constant 0 : i32
    %c0_i32_1 = arith.constant 0 : i32
    return %c0_i32, %c0_i32_0 : i32, i32
  }
  func.func @transform_8(%arg0: i32) -> (i32, i32) {
    %c0_i32 = arith.constant 0 : i32
    %c0_i32_0 = arith.constant 0 : i32
    return %arg0, %c0_i32 : i32, i32
  }
}

</mosaic_0001>

<llo_original>
// kernel: glow_forward.20
$region0: #{glow_forward.20}
  #allocation0 [shape = 'u32[]', space=smem, size = 0x4, offset = 0x4, fixed_abs, tag = 'smem constant byte address 0x4 - core index']
  #allocation1 [shape = 'u32[144,128]{1,0:T(1,128)}', space=vmem, size = 0x12000, scoped, tag = 'internal scratch']
  %s0 = inlined_call_operand.vmem [shape: f32[128,16], index: 0, kind: input, shape index: {}]
  %s1 = inlined_call_operand.vmem [shape: f32[2,16], index: 1, kind: output, shape index: {}]
  %s2 = sld [smem:[#allocation0]]
  $region18: #{glow_forward.20} parent=0
    _
  %s4 = ssub.s32 1, %s2
  %s5 = scalar_select 0, %s4, %s2
  // Predicated region
  $region2: #{glow_forward.20} parent=0 // pred_check
    _
  $region3: #{glow_forward.20} parent=0 // pred_check_branch
    %7 = sbr.rel (0) target = $region5
  $region4: #{glow_forward.20} parent=0 // pred_region
    _
  $region5: #{glow_forward.20} parent=0 // pred_fallthru
    _
  %p8 = scmp.eq.s32.totalorder 0, 0
  // Predicated region
  $region6: #{glow_forward.20} parent=0 // pred_check
    %p9 = pneg %p8
  $region7: #{glow_forward.20} parent=0 // pred_check_branch
    %11 = sbr.rel (%p9) target = $region9
  $region8: #{glow_forward.20} parent=0 // pred_region
    %vm12 = vcmask 123904
    %13 = vst.msk [vmem:[%s1] sm:$0x3] %vm12, 0.0
  $region9: #{glow_forward.20} parent=0 // pred_fallthru
    _
  %v14 = vld [vmem:[%s0] sm:$0xff]
  %v15 = vld [vmem:[%s0 + $0x8] sm:$0xff]
  %v16 = vld [vmem:[%s0 + $0x10] sm:$0xff]
  %v17 = vld [vmem:[%s0 + $0x18] sm:$0xff]
  %v18 = vld [vmem:[%s0 + $0x20] sm:$0xff]
  %v19 = vld [vmem:[%s0 + $0x28] sm:$0xff]
  %v20 = vld [vmem:[%s0 + $0x30] sm:$0xff]
  %v21 = vld [vmem:[%s0 + $0x38] sm:$0xff]
  %v22 = vld [vmem:[%s0 + $0x40] sm:$0xff]
  %v23 = vld [vmem:[%s0 + $0x48] sm:$0xff]
  %v24 = vld [vmem:[%s0 + $0x50] sm:$0xff]
  %v25 = vld [vmem:[%s0 + $0x58] sm:$0xff]
  %v26 = vld [vmem:[%s0 + $0x60] sm:$0xff]
  %v27 = vld [vmem:[%s0 + $0x68] sm:$0xff]
  %v28 = vld [vmem:[%s0 + $0x70] sm:$0xff]
  %v29 = vld [vmem:[%s0 + $0x78] sm:$0xff]
  %vm30 = vcmask 130048
  %v31 = vsel %vm30, %v14, 0.0
  %v32 = vsel %vm30, %v15, 0.0
  %v33 = vadd.f32 %v31, %v32
  %v34 = vsel %vm30, %v16, 0.0
  %v35 = vadd.f32 %v33, %v34
  %v36 = vsel %vm30, %v17, 0.0
  %v37 = vadd.f32 %v35, %v36
  %v38 = vsel %vm30, %v18, 0.0
  %v39 = vadd.f32 %v37, %v38
  %v40 = vsel %vm30, %v19, 0.0
  %v41 = vadd.f32 %v39, %v40
  %v42 = vsel %vm30, %v20, 0.0
  %v43 = vadd.f32 %v41, %v42
  %v44 = vsel %vm30, %v21, 0.0
  %v45 = vadd.f32 %v43, %v44
  %v46 = vsel %vm30, %v22, 0.0
  %v47 = vadd.f32 %v45, %v46
  %v48 = vsel %vm30, %v23, 0.0
  %v49 = vadd.f32 %v47, %v48
  %v50 = vsel %vm30, %v24, 0.0
  %v51 = vadd.f32 %v49, %v50
  %v52 = vsel %vm30, %v25, 0.0
  %v53 = vadd.f32 %v51, %v52
  %v54 = vsel %vm30, %v26, 0.0
  %v55 = vadd.f32 %v53, %v54
  %v56 = vsel %vm30, %v27, 0.0
  %v57 = vadd.f32 %v55, %v56
  %v58 = vsel %vm30, %v28, 0.0
  %v59 = vadd.f32 %v57, %v58
  %v60 = vsel %vm30, %v29, 0.0
  %v61 = vadd.f32 %v59, %v60
  %v62 = vrot.slane %v61, 4
  %v63 = vadd.f32 %v61, %v62
  %v64 = vrot.slane %v63, 2
  %v65 = vadd.f32 %v63, %v64
  %v66 = vrot.slane %v65, 1
  %v67 = vadd.f32 %v65, %v66
  %v68 = vmul.f32 %v14, %v14
  %v69 = vmul.f32 %v15, %v15
  %v70 = vmul.f32 %v16, %v16
  %v71 = vmul.f32 %v17, %v17
  %v72 = vmul.f32 %v18, %v18
  %v73 = vmul.f32 %v19, %v19
  %v74 = vmul.f32 %v20, %v20
  %v75 = vmul.f32 %v21, %v21
  %v76 = vmul.f32 %v22, %v22
  %v77 = vmul.f32 %v23, %v23
  %v78 = vmul.f32 %v24, %v24
  %v79 = vmul.f32 %v25, %v25
  %v80 = vmul.f32 %v26, %v26
  %v81 = vmul.f32 %v27, %v27
  %v82 = vmul.f32 %v28, %v28
  %v83 = vmul.f32 %v29, %v29
  %v84 = vsel %vm30, %v68, 0.0
  %v85 = vsel %vm30, %v69, 0.0
  %v86 = vadd.f32 %v84, %v85
  %v87 = vsel %vm30, %v70, 0.0
  %v88 = vadd.f32 %v86, %v87
  %v89 = vsel %vm30, %v71, 0.0
  %v90 = vadd.f32 %v88, %v89
  %v91 = vsel %vm30, %v72, 0.0
  %v92 = vadd.f32 %v90, %v91
  %v93 = vsel %vm30, %v73, 0.0
  %v94 = vadd.f32 %v92, %v93
  %v95 = vsel %vm30, %v74, 0.0
  %v96 = vadd.f32 %v94, %v95
  %v97 = vsel %vm30, %v75, 0.0
  %v98 = vadd.f32 %v96, %v97
  %v99 = vsel %vm30, %v76, 0.0
  %v100 = vadd.f32 %v98, %v99
  %v101 = vsel %vm30, %v77, 0.0
  %v102 = vadd.f32 %v100, %v101
  %v103 = vsel %vm30, %v78, 0.0
  %v104 = vadd.f32 %v102, %v103
  %v105 = vsel %vm30, %v79, 0.0
  %v106 = vadd.f32 %v104, %v105
  %v107 = vsel %vm30, %v80, 0.0
  %v108 = vadd.f32 %v106, %v107
  %v109 = vsel %vm30, %v81, 0.0
  %v110 = vadd.f32 %v108, %v109
  %v111 = vsel %vm30, %v82, 0.0
  %v112 = vadd.f32 %v110, %v111
  %v113 = vsel %vm30, %v83, 0.0
  %v114 = vadd.f32 %v112, %v113
  %v115 = vrot.slane %v114, 4
  %v116 = vadd.f32 %v114, %v115
  %v117 = vrot.slane %v116, 2
  %v118 = vadd.f32 %v116, %v117
  %v119 = vrot.slane %v118, 1
  %v120 = vadd.f32 %v118, %v119
  %v121 = vld [vmem:[%s1] sm:$0x3]
  %vm122 = vcmask 1040384
  %v123 = vsel %vm122, %v67, %v120
  %v124 = vadd.f32 %v121, %v123
  %vm125 = vcmask 123904
  %126 = vst.msk [vmem:[%s1] sm:$0x3] %vm125, %v124
  // Predicated region
  $region10: #{glow_forward.20} parent=0 // pred_check
    _
  $region11: #{glow_forward.20} parent=0 // pred_check_branch
    %128 = sbr.rel (0) target = $region13
  $region12: #{glow_forward.20} parent=0 // pred_region
    _
  $region13: #{glow_forward.20} parent=0 // pred_fallthru
    _
  // Predicated region
  $region14: #{glow_forward.20} parent=0 // pred_check
    _
  $region15: #{glow_forward.20} parent=0 // pred_check_branch
    %130 = sbr.rel (0) target = $region17
  $region16: #{glow_forward.20} parent=0 // pred_region
    _
  $region17: #{glow_forward.20} parent=0 // pred_fallthru
    _

// kernel: glow_forward.21
$region0: #{glow_forward.21}
  #allocation0 [shape = 'u32[]', space=smem, size = 0x4, offset = 0x4, fixed_abs, tag = 'smem constant byte address 0x4 - core index']
  #allocation1 [shape = 'u32[144,128]{1,0:T(1,128)}', space=vmem, size = 0x12000, scoped, tag = 'internal scratch']
  %s0 = inlined_call_operand.vmem [shape: f32[128,16], index: 0, kind: input, shape index: {}]
  %s1 = inlined_call_operand.vmem [shape: f32[16,16], index: 1, kind: input, shape index: {}]
  %s2 = inlined_call_operand.vmem [shape: f32[1,16], index: 2, kind: input, shape index: {}]
  %s3 = inlined_call_operand.vmem [shape: f32[128,16], index: 3, kind: output, shape index: {}]
  %s4 = sld [smem:[#allocation0]]
  $region22: #{glow_forward.21} parent=0
    _
  %s6 = ssub.s32 1, %s4
  %s7 = scalar_select 0, %s6, %s4
  // Predicated region
  $region2: #{glow_forward.21} parent=0 // pred_check
    _
  $region3: #{glow_forward.21} parent=0 // pred_check_branch
    %9 = sbr.rel (0) target = $region5
  $region4: #{glow_forward.21} parent=0 // pred_region
    _
  $region5: #{glow_forward.21} parent=0 // pred_fallthru
    _
  // Predicated region
  $region6: #{glow_forward.21} parent=0 // pred_check
    _
  $region7: #{glow_forward.21} parent=0 // pred_check_branch
    %11 = sbr.rel (0) target = $region9
  $region8: #{glow_forward.21} parent=0 // pred_region
    _
  $region9: #{glow_forward.21} parent=0 // pred_fallthru
    _
  // Predicated region
  $region10: #{glow_forward.21} parent=0 // pred_check
    _
  $region11: #{glow_forward.21} parent=0 // pred_check_branch
    %13 = sbr.rel (0) target = $region13
  $region12: #{glow_forward.21} parent=0 // pred_region
    _
  $region13: #{glow_forward.21} parent=0 // pred_fallthru
    _
  %v14 = vld [vmem:[%s0] sm:$0xff]
  %v15 = vld [vmem:[%s0 + $0x8] sm:$0xff]
  %v16 = vld [vmem:[%s0 + $0x10] sm:$0xff]
  %v17 = vld [vmem:[%s0 + $0x18] sm:$0xff]
  %v18 = vld [vmem:[%s0 + $0x20] sm:$0xff]
  %v19 = vld [vmem:[%s0 + $0x28] sm:$0xff]
  %v20 = vld [vmem:[%s0 + $0x30] sm:$0xff]
  %v21 = vld [vmem:[%s0 + $0x38] sm:$0xff]
  %v22 = vld [vmem:[%s0 + $0x40] sm:$0xff]
  %v23 = vld [vmem:[%s0 + $0x48] sm:$0xff]
  %v24 = vld [vmem:[%s0 + $0x50] sm:$0xff]
  %v25 = vld [vmem:[%s0 + $0x58] sm:$0xff]
  %v26 = vld [vmem:[%s0 + $0x60] sm:$0xff]
  %v27 = vld [vmem:[%s0 + $0x68] sm:$0xff]
  %v28 = vld [vmem:[%s0 + $0x70] sm:$0xff]
  %v29 = vld [vmem:[%s0 + $0x78] sm:$0xff]
  %v30 = vld [vmem:[%s1] sm:$0xff]
  %v31 = vld [vmem:[%s1 + $0x8] sm:$0xff]
  %v32 = vld [vmem:[%s2] sm:$0x1]
  %v34 = vlaneseq
  %v35 = vshrl.u32 %v34, 7
  %v36 = vsub.s32 0, %v35
  %v37 = vrot.slane %v32, %v36
  %vm39 = vcmask 130048
  %v41 = vsel %vm39, %v14, 0
  %v44 = vsel %vm39, %v15, 0
  %v47 = vsel %vm39, %v16, 0
  %v50 = vsel %vm39, %v17, 0
  %v53 = vsel %vm39, %v18, 0
  %v56 = vsel %vm39, %v19, 0
  %v59 = vsel %vm39, %v20, 0
  %v62 = vsel %vm39, %v21, 0
  %v65 = vsel %vm39, %v22, 0
  %v68 = vsel %vm39, %v23, 0
  %v71 = vsel %vm39, %v24, 0
  %v74 = vsel %vm39, %v25, 0
  %v77 = vsel %vm39, %v26, 0
  %v80 = vsel %vm39, %v27, 0
  %v83 = vsel %vm39, %v28, 0
  %v86 = vsel %vm39, %v29, 0
  %88 = vmatprep.subr.mxu0 0.0
  %89 = vmatpush1.msra.mxu0 %v30
  %90 = vmatprep.subr.mxu0 0.0
  %91 = vmatpush1.msra.mxu0 %v31
  %92 = vmatprep.subr.mxu0 0.0
  %93 = vmatpush1.msra.mxu0 0.0
  %94 = vmatprep.subr.mxu0 0.0
  %95 = vmatpush1.msra.mxu0 0.0
  %96 = vmatprep.subr.mxu0 0.0
  %97 = vmatpush1.msra.mxu0 0.0
  %98 = vmatprep.subr.mxu0 0.0
  %99 = vmatpush1.msra.mxu0 0.0
  %100 = vmatprep.subr.mxu0 0.0
  %101 = vmatpush1.msra.mxu0 0.0
  %102 = vmatprep.subr.mxu0 0.0
  %103 = vmatpush1.msra.mxu0 0.0
  %104 = vmatprep.subr.mxu0 0.0
  %105 = vmatpush1.msra.mxu0 0.0
  %106 = vmatprep.subr.mxu0 0.0
  %107 = vmatpush1.msra.mxu0 0.0
  %108 = vmatprep.subr.mxu0 0.0
  %109 = vmatpush1.msra.mxu0 0.0
  %110 = vmatprep.subr.mxu0 0.0
  %111 = vmatpush1.msra.mxu0 0.0
  %112 = vmatprep.subr.mxu0 0.0
  %113 = vmatpush1.msra.mxu0 0.0
  %114 = vmatprep.subr.mxu0 0.0
  %115 = vmatpush1.msra.mxu0 0.0
  %116 = vmatprep.subr.mxu0 0.0
  %117 = vmatpush1.msra.mxu0 0.0
  %118 = vmatprep.subr.mxu0 0.0
  %119 = vmatpush1.msra.mxu0 0.0
  %120 = vmatprep.subr.mxu0 0.0
  %121 = vmatpush1.msra.mxu0 0.0
  %122 = vmatprep.subr.mxu0 0.0
  %123 = vmatpush1.msra.mxu0 0.0
  %124 = vmatprep.subr.mxu0 0.0
  %125 = vmatpush1.msra.mxu0 0.0
  %126 = vmatprep.subr.mxu0 0.0
  %127 = vmatpush1.msra.mxu0 0.0
  %128 = vmatprep.subr.mxu0 0.0
  %129 = vmatpush1.msra.mxu0 0.0
  %130 = vmatprep.subr.mxu0 0.0
  %131 = vmatpush1.msra.mxu0 0.0
  %132 = vmatprep.subr.mxu0 0.0
  %133 = vmatpush1.msra.mxu0 0.0
  %134 = vmatprep.subr.mxu0 0.0
  %135 = vmatpush1.msra.mxu0 0.0
  %136 = vmatprep.subr.mxu0 0.0
  %137 = vmatpush1.msra.mxu0 0.0
  %138 = vmatprep.subr.mxu0 0.0
  %139 = vmatpush1.msra.mxu0 0.0
  %140 = vmatprep.subr.mxu0 0.0
  %141 = vmatpush1.msra.mxu0 0.0
  %142 = vmatprep.subr.mxu0 0.0
  %143 = vmatpush1.msra.mxu0 0.0
  %144 = vmatprep.subr.mxu0 0.0
  %145 = vmatpush1.msra.mxu0 0.0
  %146 = vmatprep.subr.mxu0 0.0
  %147 = vmatpush1.msra.mxu0 0.0
  %148 = vmatprep.subr.mxu0 0.0
  %149 = vmatpush1.msra.mxu0 0.0
  %150 = vmatprep.subr.mxu0 0.0
  %151 = vmatpush1.msra.mxu0 0.0
  %152 = vmatprep.mubr.f32.mxu0 0.0
  %153 = vmatmul.mubr.f32.gmra.mrb[0].mxu0 %v41
  %v154 = vpop.f32.mrb[0].mxu0
  %v155 = vadd.f32 %v37, %v154
  %v156 = vpop.f32.mrb[0].mxu0
  %157 = vmatprep.mubr.f32.mxu0 0.0
  %158 = vmatmul.mubr.f32.gmra.mrb[0].mxu0 %v44
  %v159 = vpop.f32.mrb[0].mxu0
  %v160 = vadd.f32 %v37, %v159
  %v161 = vpop.f32.mrb[0].mxu0
  %162 = vmatprep.mubr.f32.mxu0 0.0
  %163 = vmatmul.mubr.f32.gmra.mrb[0].mxu0 %v47
  %v164 = vpop.f32.mrb[0].mxu0
  %v165 = vadd.f32 %v37, %v164
  %v166 = vpop.f32.mrb[0].mxu0
  %167 = vmatprep.mubr.f32.mxu0 0.0
  %168 = vmatmul.mubr.f32.gmra.mrb[0].mxu0 %v50
  %v169 = vpop.f32.mrb[0].mxu0
  %v170 = vadd.f32 %v37, %v169
  %v171 = vpop.f32.mrb[0].mxu0
  %172 = vmatprep.mubr.f32.mxu0 0.0
  %173 = vmatmul.mubr.f32.gmra.mrb[0].mxu0 %v53
  %v174 = vpop.f32.mrb[0].mxu0
  %v175 = vadd.f32 %v37, %v174
  %v176 = vpop.f32.mrb[0].mxu0
  %177 = vmatprep.mubr.f32.mxu0 0.0
  %178 = vmatmul.mubr.f32.gmra.mrb[0].mxu0 %v56
  %v179 = vpop.f32.mrb[0].mxu0
  %v180 = vadd.f32 %v37, %v179
  %v181 = vpop.f32.mrb[0].mxu0
  %182 = vmatprep.mubr.f32.mxu0 0.0
  %183 = vmatmul.mubr.f32.gmra.mrb[0].mxu0 %v59
  %v184 = vpop.f32.mrb[0].mxu0
  %v185 = vadd.f32 %v37, %v184
  %v186 = vpop.f32.mrb[0].mxu0
  %187 = vmatprep.mubr.f32.mxu0 0.0
  %188 = vmatmul.mubr.f32.gmra.mrb[0].mxu0 %v62
  %v189 = vpop.f32.mrb[0].mxu0
  %v190 = vadd.f32 %v37, %v189
  %v191 = vpop.f32.mrb[0].mxu0
  %192 = vmatprep.mubr.f32.mxu0 0.0
  %193 = vmatmul.mubr.f32.gmra.mrb[0].mxu0 %v65
  %v194 = vpop.f32.mrb[0].mxu0
  %v195 = vadd.f32 %v37, %v194
  %v196 = vpop.f32.mrb[0].mxu0
  %197 = vmatprep.mubr.f32.mxu0 0.0
  %198 = vmatmul.mubr.f32.gmra.mrb[0].mxu0 %v68
  %v199 = vpop.f32.mrb[0].mxu0
  %v200 = vadd.f32 %v37, %v199
  %v201 = vpop.f32.mrb[0].mxu0
  %202 = vmatprep.mubr.f32.mxu0 0.0
  %203 = vmatmul.mubr.f32.gmra.mrb[0].mxu0 %v71
  %v204 = vpop.f32.mrb[0].mxu0
  %v205 = vadd.f32 %v37, %v204
  %v206 = vpop.f32.mrb[0].mxu0
  %207 = vmatprep.mubr.f32.mxu0 0.0
  %208 = vmatmul.mubr.f32.gmra.mrb[0].mxu0 %v74
  %v209 = vpop.f32.mrb[0].mxu0
  %v210 = vadd.f32 %v37, %v209
  %v211 = vpop.f32.mrb[0].mxu0
  %212 = vmatprep.mubr.f32.mxu0 0.0
  %213 = vmatmul.mubr.f32.gmra.mrb[0].mxu0 %v77
  %v214 = vpop.f32.mrb[0].mxu0
  %v215 = vadd.f32 %v37, %v214
  %v216 = vpop.f32.mrb[0].mxu0
  %217 = vmatprep.mubr.f32.mxu0 0.0
  %218 = vmatmul.mubr.f32.gmra.mrb[0].mxu0 %v80
  %v219 = vpop.f32.mrb[0].mxu0
  %v220 = vadd.f32 %v37, %v219
  %v221 = vpop.f32.mrb[0].mxu0
  %222 = vmatprep.mubr.f32.mxu0 0.0
  %223 = vmatmul.mubr.f32.gmra.mrb[0].mxu0 %v83
  %v224 = vpop.f32.mrb[0].mxu0
  %v225 = vadd.f32 %v37, %v224
  %v226 = vpop.f32.mrb[0].mxu0
  %227 = vmatprep.mubr.f32.mxu0 0.0
  %228 = vmatmul.mubr.f32.gmra.mrb[0].mxu0 %v86
  %v229 = vpop.f32.mrb[0].mxu0
  %v230 = vadd.f32 %v37, %v229
  %v231 = vpop.f32.mrb[0].mxu0
  %232 = vdwg.mxu0
  %233 = vst.msk [vmem:[%s3] sm:$0xff] %vm39, %v155
  %234 = vst.msk [vmem:[%s3 + $0x8] sm:$0xff] %vm39, %v160
  %235 = vst.msk [vmem:[%s3 + $0x10] sm:$0xff] %vm39, %v165
  %236 = vst.msk [vmem:[%s3 + $0x18] sm:$0xff] %vm39, %v170
  %237 = vst.msk [vmem:[%s3 + $0x20] sm:$0xff] %vm39, %v175
  %238 = vst.msk [vmem:[%s3 + $0x28] sm:$0xff] %vm39, %v180
  %239 = vst.msk [vmem:[%s3 + $0x30] sm:$0xff] %vm39, %v185
  %240 = vst.msk [vmem:[%s3 + $0x38] sm:$0xff] %vm39, %v190
  %241 = vst.msk [vmem:[%s3 + $0x40] sm:$0xff] %vm39, %v195
  %242 = vst.msk [vmem:[%s3 + $0x48] sm:$0xff] %vm39, %v200
  %243 = vst.msk [vmem:[%s3 + $0x50] sm:$0xff] %vm39, %v205
  %244 = vst.msk [vmem:[%s3 + $0x58] sm:$0xff] %vm39, %v210
  %245 = vst.msk [vmem:[%s3 + $0x60] sm:$0xff] %vm39, %v215
  %246 = vst.msk [vmem:[%s3 + $0x68] sm:$0xff] %vm39, %v220
  %247 = vst.msk [vmem:[%s3 + $0x70] sm:$0xff] %vm39, %v225
  %248 = vst.msk [vmem:[%s3 + $0x78] sm:$0xff] %vm39, %v230
  // Predicated region
  $region14: #{glow_forward.21} parent=0 // pred_check
    _
  $region15: #{glow_forward.21} parent=0 // pred_check_branch
    %250 = sbr.rel (0) target = $region17
  $region16: #{glow_forward.21} parent=0 // pred_region
    _
  $region17: #{glow_forward.21} parent=0 // pred_fallthru
    _
  // Predicated region
  $region18: #{glow_forward.21} parent=0 // pred_check
    _
  $region19: #{glow_forward.21} parent=0 // pred_check_branch
    %252 = sbr.rel (0) target = $region21
  $region20: #{glow_forward.21} parent=0 // pred_region
    _
  $region21: #{glow_forward.21} parent=0 // pred_fallthru
    _

// kernel: glow_forward.22
$region0: #{glow_forward.22}
  #allocation0 [shape = 'u32[]', space=smem, size = 0x4, offset = 0x4, fixed_abs, tag = 'smem constant byte address 0x4 - core index']
  #allocation1 [shape = 'u32[144,128]{1,0:T(1,128)}', space=vmem, size = 0x12000, scoped, tag = 'internal scratch']
  %s0 = inlined_call_operand.vmem [shape: f32[128,72], index: 0, kind: input, shape index: {}]
  %s1 = inlined_call_operand.vmem [shape: f32[72,32], index: 1, kind: input, shape index: {}]
  %s2 = inlined_call_operand.vmem [shape: f32[128,32], index: 2, kind: output, shape index: {0}]
  %s3 = inlined_call_operand.vmem [shape: f32[2,32], index: 3, kind: output, shape index: {1}]
  %4 = xla_tuple %s2, %s3
  %s5 = sld [smem:[#allocation0]]
  $region30: #{glow_forward.22} parent=0
    _
  %s7 = ssub.s32 1, %s5
  %s8 = scalar_select 0, %s7, %s5
  // Predicated region
  $region2: #{glow_forward.22} parent=0 // pred_check
    _
  $region3: #{glow_forward.22} parent=0 // pred_check_branch
    %10 = sbr.rel (0) target = $region5
  $region4: #{glow_forward.22} parent=0 // pred_region
    _
  $region5: #{glow_forward.22} parent=0 // pred_fallthru
    _
  // Predicated region
  $region6: #{glow_forward.22} parent=0 // pred_check
    _
  $region7: #{glow_forward.22} parent=0 // pred_check_branch
    %12 = sbr.rel (0) target = $region9
  $region8: #{glow_forward.22} parent=0 // pred_region
    _
  $region9: #{glow_forward.22} parent=0 // pred_fallthru
    _
  %p13 = scmp.eq.s32.totalorder 0, 0
  // Predicated region
  $region10: #{glow_forward.22} parent=0 // pred_check
    %p14 = pneg %p13
  $region11: #{glow_forward.22} parent=0 // pred_check_branch
    %16 = sbr.rel (%p14) target = $region13
  $region12: #{glow_forward.22} parent=0 // pred_region
    %vm17 = vcmask 254976
    %18 = vst.msk [vmem:[%s3] sm:$0x3] %vm17, 0.0
  $region13: #{glow_forward.22} parent=0 // pred_fallthru
    _
  %v19 = vld [vmem:[%s0] sm:$0xff]
  %v20 = vld [vmem:[%s0 + $0x8] sm:$0xff]
  %v21 = vld [vmem:[%s0 + $0x10] sm:$0xff]
  %v22 = vld [vmem:[%s0 + $0x18] sm:$0xff]
  %v23 = vld [vmem:[%s0 + $0x20] sm:$0xff]
  %v24 = vld [vmem:[%s0 + $0x28] sm:$0xff]
  %v25 = vld [vmem:[%s0 + $0x30] sm:$0xff]
  %v26 = vld [vmem:[%s0 + $0x38] sm:$0xff]
  %v27 = vld [vmem:[%s0 + $0x40] sm:$0xff]
  %v28 = vld [vmem:[%s0 + $0x48] sm:$0xff]
  %v29 = vld [vmem:[%s0 + $0x50] sm:$0xff]
  %v30 = vld [vmem:[%s0 + $0x58] sm:$0xff]
  %v31 = vld [vmem:[%s0 + $0x60] sm:$0xff]
  %v32 = vld [vmem:[%s0 + $0x68] sm:$0xff]
  %v33 = vld [vmem:[%s0 + $0x70] sm:$0xff]
  %v34 = vld [vmem:[%s0 + $0x78] sm:$0xff]
  %v35 = vld [vmem:[%s1] sm:$0xff]
  %v36 = vld [vmem:[%s1 + $0x8] sm:$0xff]
  %v37 = vld [vmem:[%s1 + $0x10] sm:$0xff]
  %v38 = vld [vmem:[%s1 + $0x18] sm:$0xff]
  %v39 = vld [vmem:[%s1 + $0x20] sm:$0xff]
  %v40 = vld [vmem:[%s1 + $0x28] sm:$0xff]
  %v41 = vld [vmem:[%s1 + $0x30] sm:$0xff]
  %v42 = vld [vmem:[%s1 + $0x38] sm:$0xff]
  %v43 = vld [vmem:[%s1 + $0x40] sm:$0xff]
  %vm44 = vcmask 588800
  %v46 = vsel %vm44, %v19, 0
  %v49 = vsel %vm44, %v20, 0
  %v52 = vsel %vm44, %v21, 0
  %v55 = vsel %vm44, %v22, 0
  %v58 = vsel %vm44, %v23, 0
  %v61 = vsel %vm44, %v24, 0
  %v64 = vsel %vm44, %v25, 0
  %v67 = vsel %vm44, %v26, 0
  %v70 = vsel %vm44, %v27, 0
  %v73 = vsel %vm44, %v28, 0
  %v76 = vsel %vm44, %v29, 0
  %v79 = vsel %vm44, %v30, 0
  %v82 = vsel %vm44, %v31, 0
  %v85 = vsel %vm44, %v32, 0
  %v88 = vsel %vm44, %v33, 0
  %v91 = vsel %vm44, %v34, 0
  %93 = vmatprep.subr.mxu0 0.0
  %94 = vmatpush1.msra.mxu0 %v35
  %95 = vmatprep.subr.mxu0 0.0
  %96 = vmatpush1.msra.mxu0 %v36
  %97 = vmatprep.subr.mxu0 0.0
  %98 = vmatpush1.msra.mxu0 %v37
  %99 = vmatprep.subr.mxu0 0.0
  %100 = vmatpush1.msra.mxu0 %v38
  %101 = vmatprep.subr.mxu0 0.0
  %102 = vmatpush1.msra.mxu0 %v39
  %103 = vmatprep.subr.mxu0 0.0
  %104 = vmatpush1.msra.mxu0 %v40
  %105 = vmatprep.subr.mxu0 0.0
  %106 = vmatpush1.msra.mxu0 %v41
  %107 = vmatprep.subr.mxu0 0.0
  %108 = vmatpush1.msra.mxu0 %v42
  %109 = vmatprep.subr.mxu0 0.0
  %110 = vmatpush1.msra.mxu0 %v43
  %111 = vmatprep.subr.mxu0 0.0
  %112 = vmatpush1.msra.mxu0 0.0
  %113 = vmatprep.subr.mxu0 0.0
  %114 = vmatpush1.msra.mxu0 0.0
  %115 = vmatprep.subr.mxu0 0.0
  %116 = vmatpush1.msra.mxu0 0.0
  %117 = vmatprep.subr.mxu0 0.0
  %118 = vmatpush1.msra.mxu0 0.0
  %119 = vmatprep.subr.mxu0 0.0
  %120 = vmatpush1.msra.mxu0 0.0
  %121 = vmatprep.subr.mxu0 0.0
  %122 = vmatpush1.msra.mxu0 0.0
  %123 = vmatprep.subr.mxu0 0.0
  %124 = vmatpush1.msra.mxu0 0.0
  %125 = vmatprep.subr.mxu0 0.0
  %126 = vmatpush1.msra.mxu0 0.0
  %127 = vmatprep.subr.mxu0 0.0
  %128 = vmatpush1.msra.mxu0 0.0
  %129 = vmatprep.subr.mxu0 0.0
  %130 = vmatpush1.msra.mxu0 0.0
  %131 = vmatprep.subr.mxu0 0.0
  %132 = vmatpush1.msra.mxu0 0.0
  %133 = vmatprep.subr.mxu0 0.0
  %134 = vmatpush1.msra.mxu0 0.0
  %135 = vmatprep.subr.mxu0 0.0
  %136 = vmatpush1.msra.mxu0 0.0
  %137 = vmatprep.subr.mxu0 0.0
  %138 = vmatpush1.msra.mxu0 0.0
  %139 = vmatprep.subr.mxu0 0.0
  %140 = vmatpush1.msra.mxu0 0.0
  %141 = vmatprep.subr.mxu0 0.0
  %142 = vmatpush1.msra.mxu0 0.0
  %143 = vmatprep.subr.mxu0 0.0
  %144 = vmatpush1.msra.mxu0 0.0
  %145 = vmatprep.subr.mxu0 0.0
  %146 = vmatpush1.msra.mxu0 0.0
  %147 = vmatprep.subr.mxu0 0.0
  %148 = vmatpush1.msra.mxu0 0.0
  %149 = vmatprep.subr.mxu0 0.0
  %150 = vmatpush1.msra.mxu0 0.0
  %151 = vmatprep.subr.mxu0 0.0
  %152 = vmatpush1.msra.mxu0 0.0
  %153 = vmatprep.subr.mxu0 0.0
  %154 = vmatpush1.msra.mxu0 0.0
  %155 = vmatprep.subr.mxu0 0.0
  %156 = vmatpush1.msra.mxu0 0.0
  %157 = vmatprep.mubr.f32.mxu0 0.0
  %158 = vmatmul.mubr.f32.gmra.mrb[0].mxu0 %v46
  %v159 = vpop.f32.mrb[0].mxu0
  %v160 = vadd.f32 0.0, %v159
  %v161 = vpop.f32.mrb[0].mxu0
  %162 = vmatprep.mubr.f32.mxu0 0.0
  %163 = vmatmul.mubr.f32.gmra.mrb[0].mxu0 %v49
  %v164 = vpop.f32.mrb[0].mxu0
  %v165 = vadd.f32 0.0, %v164
  %v166 = vpop.f32.mrb[0].mxu0
  %167 = vmatprep.mubr.f32.mxu0 0.0
  %168 = vmatmul.mubr.f32.gmra.mrb[0].mxu0 %v52
  %v169 = vpop.f32.mrb[0].mxu0
  %v170 = vadd.f32 0.0, %v169
  %v171 = vpop.f32.mrb[0].mxu0
  %172 = vmatprep.mubr.f32.mxu0 0.0
  %173 = vmatmul.mubr.f32.gmra.mrb[0].mxu0 %v55
  %v174 = vpop.f32.mrb[0].mxu0
  %v175 = vadd.f32 0.0, %v174
  %v176 = vpop.f32.mrb[0].mxu0
  %177 = vmatprep.mubr.f32.mxu0 0.0
  %178 = vmatmul.mubr.f32.gmra.mrb[0].mxu0 %v58
  %v179 = vpop.f32.mrb[0].mxu0
  %v180 = vadd.f32 0.0, %v179
  %v181 = vpop.f32.mrb[0].mxu0
  %182 = vmatprep.mubr.f32.mxu0 0.0
  %183 = vmatmul.mubr.f32.gmra.mrb[0].mxu0 %v61
  %v184 = vpop.f32.mrb[0].mxu0
  %v185 = vadd.f32 0.0, %v184
  %v186 = vpop.f32.mrb[0].mxu0
  %187 = vmatprep.mubr.f32.mxu0 0.0
  %188 = vmatmul.mubr.f32.gmra.mrb[0].mxu0 %v64
  %v189 = vpop.f32.mrb[0].mxu0
  %v190 = vadd.f32 0.0, %v189
  %v191 = vpop.f32.mrb[0].mxu0
  %192 = vmatprep.mubr.f32.mxu0 0.0
  %193 = vmatmul.mubr.f32.gmra.mrb[0].mxu0 %v67
  %v194 = vpop.f32.mrb[0].mxu0
  %v195 = vadd.f32 0.0, %v194
  %v196 = vpop.f32.mrb[0].mxu0
  %197 = vmatprep.mubr.f32.mxu0 0.0
  %198 = vmatmul.mubr.f32.gmra.mrb[0].mxu0 %v70
  %v199 = vpop.f32.mrb[0].mxu0
  %v200 = vadd.f32 0.0, %v199
  %v201 = vpop.f32.mrb[0].mxu0
  %202 = vmatprep.mubr.f32.mxu0 0.0
  %203 = vmatmul.mubr.f32.gmra.mrb[0].mxu0 %v73
  %v204 = vpop.f32.mrb[0].mxu0
  %v205 = vadd.f32 0.0, %v204
  %v206 = vpop.f32.mrb[0].mxu0
  %207 = vmatprep.mubr.f32.mxu0 0.0
  %208 = vmatmul.mubr.f32.gmra.mrb[0].mxu0 %v76
  %v209 = vpop.f32.mrb[0].mxu0
  %v210 = vadd.f32 0.0, %v209
  %v211 = vpop.f32.mrb[0].mxu0
  %212 = vmatprep.mubr.f32.mxu0 0.0
  %213 = vmatmul.mubr.f32.gmra.mrb[0].mxu0 %v79
  %v214 = vpop.f32.mrb[0].mxu0
  %v215 = vadd.f32 0.0, %v214
  %v216 = vpop.f32.mrb[0].mxu0
  %217 = vmatprep.mubr.f32.mxu0 0.0
  %218 = vmatmul.mubr.f32.gmra.mrb[0].mxu0 %v82
  %v219 = vpop.f32.mrb[0].mxu0
  %v220 = vadd.f32 0.0, %v219
  %v221 = vpop.f32.mrb[0].mxu0
  %222 = vmatprep.mubr.f32.mxu0 0.0
  %223 = vmatmul.mubr.f32.gmra.mrb[0].mxu0 %v85
  %v224 = vpop.f32.mrb[0].mxu0
  %v225 = vadd.f32 0.0, %v224
  %v226 = vpop.f32.mrb[0].mxu0
  %227 = vmatprep.mubr.f32.mxu0 0.0
  %228 = vmatmul.mubr.f32.gmra.mrb[0].mxu0 %v88
  %v229 = vpop.f32.mrb[0].mxu0
  %v230 = vadd.f32 0.0, %v229
  %v231 = vpop.f32.mrb[0].mxu0
  %232 = vmatprep.mubr.f32.mxu0 0.0
  %233 = vmatmul.mubr.f32.gmra.mrb[0].mxu0 %v91
  %v234 = vpop.f32.mrb[0].mxu0
  %v235 = vadd.f32 0.0, %v234
  %v236 = vpop.f32.mrb[0].mxu0
  %237 = vdwg.mxu0
  %vm238 = vcmask 261120
  %239 = vst.msk [vmem:[%s2] sm:$0xff] %vm238, %v160
  %240 = vst.msk [vmem:[%s2 + $0x8] sm:$0xff] %vm238, %v165
  %241 = vst.msk [vmem:[%s2 + $0x10] sm:$0xff] %vm238, %v170
  %242 = vst.msk [vmem:[%s2 + $0x18] sm:$0xff] %vm238, %v175
  %243 = vst.msk [vmem:[%s2 + $0x20] sm:$0xff] %vm238, %v180
  %244 = vst.msk [vmem:[%s2 + $0x28] sm:$0xff] %vm238, %v185
  %245 = vst.msk [vmem:[%s2 + $0x30] sm:$0xff] %vm238, %v190
  %246 = vst.msk [vmem:[%s2 + $0x38] sm:$0xff] %vm238, %v195
  %247 = vst.msk [vmem:[%s2 + $0x40] sm:$0xff] %vm238, %v200
  %248 = vst.msk [vmem:[%s2 + $0x48] sm:$0xff] %vm238, %v205
  %249 = vst.msk [vmem:[%s2 + $0x50] sm:$0xff] %vm238, %v210
  %250 = vst.msk [vmem:[%s2 + $0x58] sm:$0xff] %vm238, %v215
  %251 = vst.msk [vmem:[%s2 + $0x60] sm:$0xff] %vm238, %v220
  %252 = vst.msk [vmem:[%s2 + $0x68] sm:$0xff] %vm238, %v225
  %253 = vst.msk [vmem:[%s2 + $0x70] sm:$0xff] %vm238, %v230
  %254 = vst.msk [vmem:[%s2 + $0x78] sm:$0xff] %vm238, %v235
  %v255 = vsel %vm238, %v160, 0.0
  %v256 = vsel %vm238, %v165, 0.0
  %v257 = vadd.f32 %v255, %v256
  %v258 = vsel %vm238, %v170, 0.0
  %v259 = vadd.f32 %v257, %v258
  %v260 = vsel %vm238, %v175, 0.0
  %v261 = vadd.f32 %v259, %v260
  %v262 = vsel %vm238, %v180, 0.0
  %v263 = vadd.f32 %v261, %v262
  %v264 = vsel %vm238, %v185, 0.0
  %v265 = vadd.f32 %v263, %v264
  %v266 = vsel %vm238, %v190, 0.0
  %v267 = vadd.f32 %v265, %v266
  %v268 = vsel %vm238, %v195, 0.0
  %v269 = vadd.f32 %v267, %v268
  %v270 = vsel %vm238, %v200, 0.0
  %v271 = vadd.f32 %v269, %v270
  %v272 = vsel %vm238, %v205, 0.0
  %v273 = vadd.f32 %v271, %v272
  %v274 = vsel %vm238, %v210, 0.0
  %v275 = vadd.f32 %v273, %v274
  %v276 = vsel %vm238, %v215, 0.0
  %v277 = vadd.f32 %v275, %v276
  %v278 = vsel %vm238, %v220, 0.0
  %v279 = vadd.f32 %v277, %v278
  %v280 = vsel %vm238, %v225, 0.0
  %v281 = vadd.f32 %v279, %v280
  %v282 = vsel %vm238, %v230, 0.0
  %v283 = vadd.f32 %v281, %v282
  %v284 = vsel %vm238, %v235, 0.0
  %v285 = vadd.f32 %v283, %v284
  %v286 = vrot.slane %v285, 4
  %v287 = vadd.f32 %v285, %v286
  %v288 = vrot.slane %v287, 2
  %v289 = vadd.f32 %v287, %v288
  %v290 = vrot.slane %v289, 1
  %v291 = vadd.f32 %v289, %v290
  %v292 = vmul.f32 %v160, %v160
  %v293 = vmul.f32 %v165, %v165
  %v294 = vmul.f32 %v170, %v170
  %v295 = vmul.f32 %v175, %v175
  %v296 = vmul.f32 %v180, %v180
  %v297 = vmul.f32 %v185, %v185
  %v298 = vmul.f32 %v190, %v190
  %v299 = vmul.f32 %v195, %v195
  %v300 = vmul.f32 %v200, %v200
  %v301 = vmul.f32 %v205, %v205
  %v302 = vmul.f32 %v210, %v210
  %v303 = vmul.f32 %v215, %v215
  %v304 = vmul.f32 %v220, %v220
  %v305 = vmul.f32 %v225, %v225
  %v306 = vmul.f32 %v230, %v230
  %v307 = vmul.f32 %v235, %v235
  %v308 = vsel %vm238, %v292, 0.0
  %v309 = vsel %vm238, %v293, 0.0
  %v310 = vadd.f32 %v308, %v309
  %v311 = vsel %vm238, %v294, 0.0
  %v312 = vadd.f32 %v310, %v311
  %v313 = vsel %vm238, %v295, 0.0
  %v314 = vadd.f32 %v312, %v313
  %v315 = vsel %vm238, %v296, 0.0
  %v316 = vadd.f32 %v314, %v315
  %v317 = vsel %vm238, %v297, 0.0
  %v318 = vadd.f32 %v316, %v317
  %v319 = vsel %vm238, %v298, 0.0
  %v320 = vadd.f32 %v318, %v319
  %v321 = vsel %vm238, %v299, 0.0
  %v322 = vadd.f32 %v320, %v321
  %v323 = vsel %vm238, %v300, 0.0
  %v324 = vadd.f32 %v322, %v323
  %v325 = vsel %vm238, %v301, 0.0
  %v326 = vadd.f32 %v324, %v325
  %v327 = vsel %vm238, %v302, 0.0
  %v328 = vadd.f32 %v326, %v327
  %v329 = vsel %vm238, %v303, 0.0
  %v330 = vadd.f32 %v328, %v329
  %v331 = vsel %vm238, %v304, 0.0
  %v332 = vadd.f32 %v330, %v331
  %v333 = vsel %vm238, %v305, 0.0
  %v334 = vadd.f32 %v332, %v333
  %v335 = vsel %vm238, %v306, 0.0
  %v336 = vadd.f32 %v334, %v335
  %v337 = vsel %vm238, %v307, 0.0
  %v338 = vadd.f32 %v336, %v337
  %v339 = vrot.slane %v338, 4
  %v340 = vadd.f32 %v338, %v339
  %v341 = vrot.slane %v340, 2
  %v342 = vadd.f32 %v340, %v341
  %v343 = vrot.slane %v342, 1
  %v344 = vadd.f32 %v342, %v343
  %v345 = vld [vmem:[%s3] sm:$0x3]
  %vm346 = vcmask 1040384
  %v347 = vsel %vm346, %v291, %v344
  %v348 = vadd.f32 %v345, %v347
  %vm349 = vcmask 254976
  %350 = vst.msk [vmem:[%s3] sm:$0x3] %vm349, %v348
  // Predicated region
  $region14: #{glow_forward.22} parent=0 // pred_check
    _
  $region15: #{glow_forward.22} parent=0 // pred_check_branch
    %352 = sbr.rel (0) target = $region17
  $region16: #{glow_forward.22} parent=0 // pred_region
    _
  $region17: #{glow_forward.22} parent=0 // pred_fallthru
    _
  // Predicated region
  $region18: #{glow_forward.22} parent=0 // pred_check
    _
  $region19: #{glow_forward.22} parent=0 // pred_check_branch
    %354 = sbr.rel (0) target = $region21
  $region20: #{glow_forward.22} parent=0 // pred_region
    _
  $region21: #{glow_forward.22} parent=0 // pred_fallthru
    _
  // Predicated region
  $region22: #{glow_forward.22} parent=0 // pred_check
    _
  $region23: #{glow_forward.22} parent=0 // pred_check_branch
    %356 = sbr.rel (0) target = $region25
  $region24: #{glow_forward.22} parent=0 // pred_region
    _
  $region25: #{glow_forward.22} parent=0 // pred_fallthru
    _
  // Predicated region
  $region26: #{glow_forward.22} parent=0 // pred_check
    _
  $region27: #{glow_forward.22} parent=0 // pred_check_branch
    %358 = sbr.rel (0) target = $region29
  $region28: #{glow_forward.22} parent=0 // pred_region
    _
  $region29: #{glow_forward.22} parent=0 // pred_fallthru
    _

// kernel: tile.43
$region0: #{tile.43}
  #allocation0 [shape = 's32[1]{0}', space=sflag, size = 0x4, scoped, tag = 'scoped memory for tile.43']
  %s0 = inlined_call_operand.vmem [shape: f32[32], index: 0, kind: input, shape index: {}]
  %s1 = inlined_call_operand.vmem [shape: f32[9,32], index: 1, kind: output, shape index: {}]
  // Predicated region
  $region2: #{tile.43} parent=0 // pred_check
    _
  $region3: #{tile.43} parent=0 // pred_check_branch
    %3 = sbr.rel (0) target = $region5
  $region4: #{tile.43} parent=0 // pred_region
    _
  $region5: #{tile.43} parent=0 // pred_fallthru
    _
  %v4 = vld [vmem:[%s0] ss:$0 sm:$0xff]
  %5 = vst [vmem:[%s1] sm:$0xff] %v4
  %s6 = scalar_lea.vmem %s1, 8
  %7 = vst [vmem:[%s6] sm:$0xff] %v4

// kernel: tile.44
$region0: #{tile.44}
  %s0 = inlined_call_operand.vmem [shape: f32[9,32], index: 0, kind: input, shape index: {}]
  %s1 = inlined_call_operand.vmem [shape: f32[1,288], index: 1, kind: output, shape index: {}]
  $region1: #{tile.44} parent=0
    #allocation0 [shape = 'u8[12288]{0}', space=vmem, size = 0x3000, scoped, tag = 'scoped mem for output reshape']
    %v2 = vld [vmem:[%s0] ss:$4 sm:$0x7]
    %vm3 = vcmask 261120
    %4 = vst.msk [vmem:[#allocation0] ss:$8 sm:$0x7] %vm3, %v2
    %s5 = scalar_lea.vmem %s0, 3
    %s6 = smov 3
    %v7 = vld [vmem:[%s5] ss:$4 sm:%s6]
    %8 = vrot.lane.b32.xlu0 %v7, 96
    %v9 = vpop.permute.xlu0 %8
    %vm10 = vcmask 1048320
    %11 = vst.msk [vmem:[#allocation0] ss:$8 sm:$0x3] %vm10, %v9
    %s12 = scalar_lea.vmem %s0, 2
    %s13 = smov 3
    %v14 = vld [vmem:[%s12] ss:$4 sm:%s13]
    %15 = vrot.lane.b32.xlu0 %v14, 64
    %v16 = vpop.permute.xlu0 %15
    %vm17 = vcmask 785920
    %18 = vst.msk [vmem:[#allocation0] ss:$8 sm:$0x3] %vm17, %v16
    %s19 = scalar_lea.vmem %s0, 1
    %s20 = smov 3
    %v21 = vld [vmem:[%s19] ss:$4 sm:%s20]
    %22 = vrot.lane.b32.xlu0 %v21, 32
    %v23 = vpop.permute.xlu0 %22
    %vm24 = vcmask 523520
    %25 = vst.msk [vmem:[#allocation0] ss:$8 sm:$0x3] %vm24, %v23
    %s27 = sshllo.u32 0, 1
    %v29 = vld [vmem:[#allocation0] sm:%s27]
    %s30 = sshllo.u32 0, 1
    %31 = vst [vmem:[%s1] sm:%s30] %v29
    %s32 = scalar_lea.vmem [#allocation0], 8
    %v33 = vld [vmem:[%s32] sm:%s27]
    %s34 = sshllo.u32 0, 1
    %s35 = scalar_lea.vmem %s1, 1
    %36 = vst [vmem:[%s35] sm:%s34] %v33
    %s37 = scalar_lea.vmem [#allocation0], 16
    %v38 = vld [vmem:[%s37] sm:%s27]
    %s39 = sshllo.u32 0, 1
    %s40 = smul.addr 1, 2
    %s41 = scalar_lea.vmem %s1, %s40
    %42 = vst [vmem:[%s41] sm:%s39] %v38

// kernel: glow_forward.23
$region0: #{glow_forward.23}
  #allocation0 [shape = 'u32[]', space=smem, size = 0x4, offset = 0x4, fixed_abs, tag = 'smem constant byte address 0x4 - core index']
  #allocation1 [shape = 'u32[144,128]{1,0:T(1,128)}', space=vmem, size = 0x12000, scoped, tag = 'internal scratch']
  %s0 = inlined_call_operand.vmem [shape: f32[128,32], index: 0, kind: input, shape index: {}]
  %s1 = inlined_call_operand.vmem [shape: f32[1,32], index: 1, kind: input, shape index: {}]
  %s2 = inlined_call_operand.vmem [shape: f32[1,32], index: 2, kind: input, shape index: {}]
  %s3 = inlined_call_operand.vmem [shape: f32[32,32], index: 3, kind: input, shape index: {}]
  %s4 = inlined_call_operand.vmem [shape: f32[128,32], index: 4, kind: output, shape index: {0}]
  %s5 = inlined_call_operand.vmem [shape: f32[2,32], index: 5, kind: output, shape index: {1}]
  %6 = xla_tuple %s4, %s5
  %s7 = sld [smem:[#allocation0]]
  $region38: #{glow_forward.23} parent=0
    _
  %s9 = ssub.s32 1, %s7
  %s10 = scalar_select 0, %s9, %s7
  // Predicated region
  $region2: #{glow_forward.23} parent=0 // pred_check
    _
  $region3: #{glow_forward.23} parent=0 // pred_check_branch
    %12 = sbr.rel (0) target = $region5
  $region4: #{glow_forward.23} parent=0 // pred_region
    _
  $region5: #{glow_forward.23} parent=0 // pred_fallthru
    _
  // Predicated region
  $region6: #{glow_forward.23} parent=0 // pred_check
    _
  $region7: #{glow_forward.23} parent=0 // pred_check_branch
    %14 = sbr.rel (0) target = $region9
  $region8: #{glow_forward.23} parent=0 // pred_region
    _
  $region9: #{glow_forward.23} parent=0 // pred_fallthru
    _
  // Predicated region
  $region10: #{glow_forward.23} parent=0 // pred_check
    _
  $region11: #{glow_forward.23} parent=0 // pred_check_branch
    %16 = sbr.rel (0) target = $region13
  $region12: #{glow_forward.23} parent=0 // pred_region
    _
  $region13: #{glow_forward.23} parent=0 // pred_fallthru
    _
  // Predicated region
  $region14: #{glow_forward.23} parent=0 // pred_check
    _
  $region15: #{glow_forward.23} parent=0 // pred_check_branch
    %18 = sbr.rel (0) target = $region17
  $region16: #{glow_forward.23} parent=0 // pred_region
    _
  $region17: #{glow_forward.23} parent=0 // pred_fallthru
    _
  %p19 = scmp.eq.s32.totalorder 0, 0
  // Predicated region
  $region18: #{glow_forward.23} parent=0 // pred_check
    %p20 = pneg %p19
  $region19: #{glow_forward.23} parent=0 // pred_check_branch
    %22 = sbr.rel (%p20) target = $region21
  $region20: #{glow_forward.23} parent=0 // pred_region
    %vm23 = vcmask 254976
    %24 = vst.msk [vmem:[%s5] sm:$0x3] %vm23, 0.0
  $region21: #{glow_forward.23} parent=0 // pred_fallthru
    _
  %v25 = vld [vmem:[%s0] sm:$0xff]
  %v26 = vld [vmem:[%s0 + $0x8] sm:$0xff]
  %v27 = vld [vmem:[%s0 + $0x10] sm:$0xff]
  %v28 = vld [vmem:[%s0 + $0x18] sm:$0xff]
  %v29 = vld [vmem:[%s0 + $0x20] sm:$0xff]
  %v30 = vld [vmem:[%s0 + $0x28] sm:$0xff]
  %v31 = vld [vmem:[%s0 + $0x30] sm:$0xff]
  %v32 = vld [vmem:[%s0 + $0x38] sm:$0xff]
  %v33 = vld [vmem:[%s0 + $0x40] sm:$0xff]
  %v34 = vld [vmem:[%s0 + $0x48] sm:$0xff]
  %v35 = vld [vmem:[%s0 + $0x50] sm:$0xff]
  %v36 = vld [vmem:[%s0 + $0x58] sm:$0xff]
  %v37 = vld [vmem:[%s0 + $0x60] sm:$0xff]
  %v38 = vld [vmem:[%s0 + $0x68] sm:$0xff]
  %v39 = vld [vmem:[%s0 + $0x70] sm:$0xff]
  %v40 = vld [vmem:[%s0 + $0x78] sm:$0xff]
  %v41 = vld [vmem:[%s1] sm:$0x1]
  %v43 = vlaneseq
  %v44 = vshrl.u32 %v43, 7
  %v45 = vsub.s32 0, %v44
  %v46 = vrot.slane %v41, %v45
  %v48 = vmul.f32 %v25, %v46
  %v49 = vmul.f32 %v26, %v46
  %v50 = vmul.f32 %v27, %v46
  %v51 = vmul.f32 %v28, %v46
  %v52 = vmul.f32 %v29, %v46
  %v53 = vmul.f32 %v30, %v46
  %v54 = vmul.f32 %v31, %v46
  %v55 = vmul.f32 %v32, %v46
  %v56 = vmul.f32 %v33, %v46
  %v57 = vmul.f32 %v34, %v46
  %v58 = vmul.f32 %v35, %v46
  %v59 = vmul.f32 %v36, %v46
  %v60 = vmul.f32 %v37, %v46
  %v61 = vmul.f32 %v38, %v46
  %v62 = vmul.f32 %v39, %v46
  %v63 = vmul.f32 %v40, %v46
  %v64 = vld [vmem:[%s2] sm:$0x1]
  %v66 = vlaneseq
  %v67 = vshrl.u32 %v66, 7
  %v68 = vsub.s32 0, %v67
  %v69 = vrot.slane %v64, %v68
  %v71 = vadd.f32 %v48, %v69
  %v72 = vadd.f32 %v49, %v69
  %v73 = vadd.f32 %v50, %v69
  %v74 = vadd.f32 %v51, %v69
  %v75 = vadd.f32 %v52, %v69
  %v76 = vadd.f32 %v53, %v69
  %v77 = vadd.f32 %v54, %v69
  %v78 = vadd.f32 %v55, %v69
  %v79 = vadd.f32 %v56, %v69
  %v80 = vadd.f32 %v57, %v69
  %v81 = vadd.f32 %v58, %v69
  %v82 = vadd.f32 %v59, %v69
  %v83 = vadd.f32 %v60, %v69
  %v84 = vadd.f32 %v61, %v69
  %v85 = vadd.f32 %v62, %v69
  %v86 = vadd.f32 %v63, %v69
  %v87 = vmax.f32 %v71, 0.0
  %v88 = vmax.f32 %v72, 0.0
  %v89 = vmax.f32 %v73, 0.0
  %v90 = vmax.f32 %v74, 0.0
  %v91 = vmax.f32 %v75, 0.0
  %v92 = vmax.f32 %v76, 0.0
  %v93 = vmax.f32 %v77, 0.0
  %v94 = vmax.f32 %v78, 0.0
  %v95 = vmax.f32 %v79, 0.0
  %v96 = vmax.f32 %v80, 0.0
  %v97 = vmax.f32 %v81, 0.0
  %v98 = vmax.f32 %v82, 0.0
  %v99 = vmax.f32 %v83, 0.0
  %v100 = vmax.f32 %v84, 0.0
  %v101 = vmax.f32 %v85, 0.0
  %v102 = vmax.f32 %v86, 0.0
  %v103 = vld [vmem:[%s3] sm:$0xff]
  %v104 = vld [vmem:[%s3 + $0x8] sm:$0xff]
  %v105 = vld [vmem:[%s3 + $0x10] sm:$0xff]
  %v106 = vld [vmem:[%s3 + $0x18] sm:$0xff]
  %vm107 = vcmask 261120
  %v109 = vsel %vm107, %v87, 0
  %v112 = vsel %vm107, %v88, 0
  %v115 = vsel %vm107, %v89, 0
  %v118 = vsel %vm107, %v90, 0
  %v121 = vsel %vm107, %v91, 0
  %v124 = vsel %vm107, %v92, 0
  %v127 = vsel %vm107, %v93, 0
  %v130 = vsel %vm107, %v94, 0
  %v133 = vsel %vm107, %v95, 0
  %v136 = vsel %vm107, %v96, 0
  %v139 = vsel %vm107, %v97, 0
  %v142 = vsel %vm107, %v98, 0
  %v145 = vsel %vm107, %v99, 0
  %v148 = vsel %vm107, %v100, 0
  %v151 = vsel %vm107, %v101, 0
  %v154 = vsel %vm107, %v102, 0
  %156 = vmatprep.subr.mxu0 0.0
  %157 = vmatpush1.msra.mxu0 %v103
  %158 = vmatprep.subr.mxu0 0.0
  %159 = vmatpush1.msra.mxu0 %v104
  %160 = vmatprep.subr.mxu0 0.0
  %161 = vmatpush1.msra.mxu0 %v105
  %162 = vmatprep.subr.mxu0 0.0
  %163 = vmatpush1.msra.mxu0 %v106
  %164 = vmatprep.subr.mxu0 0.0
  %165 = vmatpush1.msra.mxu0 0.0
  %166 = vmatprep.subr.mxu0 0.0
  %167 = vmatpush1.msra.mxu0 0.0
  %168 = vmatprep.subr.mxu0 0.0
  %169 = vmatpush1.msra.mxu0 0.0
  %170 = vmatprep.subr.mxu0 0.0
  %171 = vmatpush1.msra.mxu0 0.0
  %172 = vmatprep.subr.mxu0 0.0
  %173 = vmatpush1.msra.mxu0 0.0
  %174 = vmatprep.subr.mxu0 0.0
  %175 = vmatpush1.msra.mxu0 0.0
  %176 = vmatprep.subr.mxu0 0.0
  %177 = vmatpush1.msra.mxu0 0.0
  %178 = vmatprep.subr.mxu0 0.0
  %179 = vmatpush1.msra.mxu0 0.0
  %180 = vmatprep.subr.mxu0 0.0
  %181 = vmatpush1.msra.mxu0 0.0
  %182 = vmatprep.subr.mxu0 0.0
  %183 = vmatpush1.msra.mxu0 0.0
  %184 = vmatprep.subr.mxu0 0.0
  %185 = vmatpush1.msra.mxu0 0.0
  %186 = vmatprep.subr.mxu0 0.0
  %187 = vmatpush1.msra.mxu0 0.0
  %188 = vmatprep.subr.mxu0 0.0
  %189 = vmatpush1.msra.mxu0 0.0
  %190 = vmatprep.subr.mxu0 0.0
  %191 = vmatpush1.msra.mxu0 0.0
  %192 = vmatprep.subr.mxu0 0.0
  %193 = vmatpush1.msra.mxu0 0.0
  %194 = vmatprep.subr.mxu0 0.0
  %195 = vmatpush1.msra.mxu0 0.0
  %196 = vmatprep.subr.mxu0 0.0
  %197 = vmatpush1.msra.mxu0 0.0
  %198 = vmatprep.subr.mxu0 0.0
  %199 = vmatpush1.msra.mxu0 0.0
  %200 = vmatprep.subr.mxu0 0.0
  %201 = vmatpush1.msra.mxu0 0.0
  %202 = vmatprep.subr.mxu0 0.0
  %203 = vmatpush1.msra.mxu0 0.0
  %204 = vmatprep.subr.mxu0 0.0
  %205 = vmatpush1.msra.mxu0 0.0
  %206 = vmatprep.subr.mxu0 0.0
  %207 = vmatpush1.msra.mxu0 0.0
  %208 = vmatprep.subr.mxu0 0.0
  %209 = vmatpush1.msra.mxu0 0.0
  %210 = vmatprep.subr.mxu0 0.0
  %211 = vmatpush1.msra.mxu0 0.0
  %212 = vmatprep.subr.mxu0 0.0
  %213 = vmatpush1.msra.mxu0 0.0
  %214 = vmatprep.subr.mxu0 0.0
  %215 = vmatpush1.msra.mxu0 0.0
  %216 = vmatprep.subr.mxu0 0.0
  %217 = vmatpush1.msra.mxu0 0.0
  %218 = vmatprep.subr.mxu0 0.0
  %219 = vmatpush1.msra.mxu0 0.0
  %220 = vmatprep.mubr.f32.mxu0 0.0
  %221 = vmatmul.mubr.f32.gmra.mrb[0].mxu0 %v109
  %v222 = vpop.f32.mrb[0].mxu0
  %v223 = vadd.f32 0.0, %v222
  %v224 = vpop.f32.mrb[0].mxu0
  %225 = vmatprep.mubr.f32.mxu0 0.0
  %226 = vmatmul.mubr.f32.gmra.mrb[0].mxu0 %v112
  %v227 = vpop.f32.mrb[0].mxu0
  %v228 = vadd.f32 0.0, %v227
  %v229 = vpop.f32.mrb[0].mxu0
  %230 = vmatprep.mubr.f32.mxu0 0.0
  %231 = vmatmul.mubr.f32.gmra.mrb[0].mxu0 %v115
  %v232 = vpop.f32.mrb[0].mxu0
  %v233 = vadd.f32 0.0, %v232
  %v234 = vpop.f32.mrb[0].mxu0
  %235 = vmatprep.mubr.f32.mxu0 0.0
  %236 = vmatmul.mubr.f32.gmra.mrb[0].mxu0 %v118
  %v237 = vpop.f32.mrb[0].mxu0
  %v238 = vadd.f32 0.0, %v237
  %v239 = vpop.f32.mrb[0].mxu0
  %240 = vmatprep.mubr.f32.mxu0 0.0
  %241 = vmatmul.mubr.f32.gmra.mrb[0].mxu0 %v121
  %v242 = vpop.f32.mrb[0].mxu0
  %v243 = vadd.f32 0.0, %v242
  %v244 = vpop.f32.mrb[0].mxu0
  %245 = vmatprep.mubr.f32.mxu0 0.0
  %246 = vmatmul.mubr.f32.gmra.mrb[0].mxu0 %v124
  %v247 = vpop.f32.mrb[0].mxu0
  %v248 = vadd.f32 0.0, %v247
  %v249 = vpop.f32.mrb[0].mxu0
  %250 = vmatprep.mubr.f32.mxu0 0.0
  %251 = vmatmul.mubr.f32.gmra.mrb[0].mxu0 %v127
  %v252 = vpop.f32.mrb[0].mxu0
  %v253 = vadd.f32 0.0, %v252
  %v254 = vpop.f32.mrb[0].mxu0
  %255 = vmatprep.mubr.f32.mxu0 0.0
  %256 = vmatmul.mubr.f32.gmra.mrb[0].mxu0 %v130
  %v257 = vpop.f32.mrb[0].mxu0
  %v258 = vadd.f32 0.0, %v257
  %v259 = vpop.f32.mrb[0].mxu0
  %260 = vmatprep.mubr.f32.mxu0 0.0
  %261 = vmatmul.mubr.f32.gmra.mrb[0].mxu0 %v133
  %v262 = vpop.f32.mrb[0].mxu0
  %v263 = vadd.f32 0.0, %v262
  %v264 = vpop.f32.mrb[0].mxu0
  %265 = vmatprep.mubr.f32.mxu0 0.0
  %266 = vmatmul.mubr.f32.gmra.mrb[0].mxu0 %v136
  %v267 = vpop.f32.mrb[0].mxu0
  %v268 = vadd.f32 0.0, %v267
  %v269 = vpop.f32.mrb[0].mxu0
  %270 = vmatprep.mubr.f32.mxu0 0.0
  %271 = vmatmul.mubr.f32.gmra.mrb[0].mxu0 %v139
  %v272 = vpop.f32.mrb[0].mxu0
  %v273 = vadd.f32 0.0, %v272
  %v274 = vpop.f32.mrb[0].mxu0
  %275 = vmatprep.mubr.f32.mxu0 0.0
  %276 = vmatmul.mubr.f32.gmra.mrb[0].mxu0 %v142
  %v277 = vpop.f32.mrb[0].mxu0
  %v278 = vadd.f32 0.0, %v277
  %v279 = vpop.f32.mrb[0].mxu0
  %280 = vmatprep.mubr.f32.mxu0 0.0
  %281 = vmatmul.mubr.f32.gmra.mrb[0].mxu0 %v145
  %v282 = vpop.f32.mrb[0].mxu0
  %v283 = vadd.f32 0.0, %v282
  %v284 = vpop.f32.mrb[0].mxu0
  %285 = vmatprep.mubr.f32.mxu0 0.0
  %286 = vmatmul.mubr.f32.gmra.mrb[0].mxu0 %v148
  %v287 = vpop.f32.mrb[0].mxu0
  %v288 = vadd.f32 0.0, %v287
  %v289 = vpop.f32.mrb[0].mxu0
  %290 = vmatprep.mubr.f32.mxu0 0.0
  %291 = vmatmul.mubr.f32.gmra.mrb[0].mxu0 %v151
  %v292 = vpop.f32.mrb[0].mxu0
  %v293 = vadd.f32 0.0, %v292
  %v294 = vpop.f32.mrb[0].mxu0
  %295 = vmatprep.mubr.f32.mxu0 0.0
  %296 = vmatmul.mubr.f32.gmra.mrb[0].mxu0 %v154
  %v297 = vpop.f32.mrb[0].mxu0
  %v298 = vadd.f32 0.0, %v297
  %v299 = vpop.f32.mrb[0].mxu0
  %300 = vdwg.mxu0
  %301 = vst.msk [vmem:[%s4] sm:$0xff] %vm107, %v223
  %302 = vst.msk [vmem:[%s4 + $0x8] sm:$0xff] %vm107, %v228
  %303 = vst.msk [vmem:[%s4 + $0x10] sm:$0xff] %vm107, %v233
  %304 = vst.msk [vmem:[%s4 + $0x18] sm:$0xff] %vm107, %v238
  %305 = vst.msk [vmem:[%s4 + $0x20] sm:$0xff] %vm107, %v243
  %306 = vst.msk [vmem:[%s4 + $0x28] sm:$0xff] %vm107, %v248
  %307 = vst.msk [vmem:[%s4 + $0x30] sm:$0xff] %vm107, %v253
  %308 = vst.msk [vmem:[%s4 + $0x38] sm:$0xff] %vm107, %v258
  %309 = vst.msk [vmem:[%s4 + $0x40] sm:$0xff] %vm107, %v263
  %310 = vst.msk [vmem:[%s4 + $0x48] sm:$0xff] %vm107, %v268
  %311 = vst.msk [vmem:[%s4 + $0x50] sm:$0xff] %vm107, %v273
  %312 = vst.msk [vmem:[%s4 + $0x58] sm:$0xff] %vm107, %v278
  %313 = vst.msk [vmem:[%s4 + $0x60] sm:$0xff] %vm107, %v283
  %314 = vst.msk [vmem:[%s4 + $0x68] sm:$0xff] %vm107, %v288
  %315 = vst.msk [vmem:[%s4 + $0x70] sm:$0xff] %vm107, %v293
  %316 = vst.msk [vmem:[%s4 + $0x78] sm:$0xff] %vm107, %v298
  %v317 = vsel %vm107, %v223, 0.0
  %v318 = vsel %vm107, %v228, 0.0
  %v319 = vadd.f32 %v317, %v318
  %v320 = vsel %vm107, %v233, 0.0
  %v321 = vadd.f32 %v319, %v320
  %v322 = vsel %vm107, %v238, 0.0
  %v323 = vadd.f32 %v321, %v322
  %v324 = vsel %vm107, %v243, 0.0
  %v325 = vadd.f32 %v323, %v324
  %v326 = vsel %vm107, %v248, 0.0
  %v327 = vadd.f32 %v325, %v326
  %v328 = vsel %vm107, %v253, 0.0
  %v329 = vadd.f32 %v327, %v328
  %v330 = vsel %vm107, %v258, 0.0
  %v331 = vadd.f32 %v329, %v330
  %v332 = vsel %vm107, %v263, 0.0
  %v333 = vadd.f32 %v331, %v332
  %v334 = vsel %vm107, %v268, 0.0
  %v335 = vadd.f32 %v333, %v334
  %v336 = vsel %vm107, %v273, 0.0
  %v337 = vadd.f32 %v335, %v336
  %v338 = vsel %vm107, %v278, 0.0
  %v339 = vadd.f32 %v337, %v338
  %v340 = vsel %vm107, %v283, 0.0
  %v341 = vadd.f32 %v339, %v340
  %v342 = vsel %vm107, %v288, 0.0
  %v343 = vadd.f32 %v341, %v342
  %v344 = vsel %vm107, %v293, 0.0
  %v345 = vadd.f32 %v343, %v344
  %v346 = vsel %vm107, %v298, 0.0
  %v347 = vadd.f32 %v345, %v346
  %v348 = vrot.slane %v347, 4
  %v349 = vadd.f32 %v347, %v348
  %v350 = vrot.slane %v349, 2
  %v351 = vadd.f32 %v349, %v350
  %v352 = vrot.slane %v351, 1
  %v353 = vadd.f32 %v351, %v352
  %v354 = vmul.f32 %v223, %v223
  %v355 = vmul.f32 %v228, %v228
  %v356 = vmul.f32 %v233, %v233
  %v357 = vmul.f32 %v238, %v238
  %v358 = vmul.f32 %v243, %v243
  %v359 = vmul.f32 %v248, %v248
  %v360 = vmul.f32 %v253, %v253
  %v361 = vmul.f32 %v258, %v258
  %v362 = vmul.f32 %v263, %v263
  %v363 = vmul.f32 %v268, %v268
  %v364 = vmul.f32 %v273, %v273
  %v365 = vmul.f32 %v278, %v278
  %v366 = vmul.f32 %v283, %v283
  %v367 = vmul.f32 %v288, %v288
  %v368 = vmul.f32 %v293, %v293
  %v369 = vmul.f32 %v298, %v298
  %v370 = vsel %vm107, %v354, 0.0
  %v371 = vsel %vm107, %v355, 0.0
  %v372 = vadd.f32 %v370, %v371
  %v373 = vsel %vm107, %v356, 0.0
  %v374 = vadd.f32 %v372, %v373
  %v375 = vsel %vm107, %v357, 0.0
  %v376 = vadd.f32 %v374, %v375
  %v377 = vsel %vm107, %v358, 0.0
  %v378 = vadd.f32 %v376, %v377
  %v379 = vsel %vm107, %v359, 0.0
  %v380 = vadd.f32 %v378, %v379
  %v381 = vsel %vm107, %v360, 0.0
  %v382 = vadd.f32 %v380, %v381
  %v383 = vsel %vm107, %v361, 0.0
  %v384 = vadd.f32 %v382, %v383
  %v385 = vsel %vm107, %v362, 0.0
  %v386 = vadd.f32 %v384, %v385
  %v387 = vsel %vm107, %v363, 0.0
  %v388 = vadd.f32 %v386, %v387
  %v389 = vsel %vm107, %v364, 0.0
  %v390 = vadd.f32 %v388, %v389
  %v391 = vsel %vm107, %v365, 0.0
  %v392 = vadd.f32 %v390, %v391
  %v393 = vsel %vm107, %v366, 0.0
  %v394 = vadd.f32 %v392, %v393
  %v395 = vsel %vm107, %v367, 0.0
  %v396 = vadd.f32 %v394, %v395
  %v397 = vsel %vm107, %v368, 0.0
  %v398 = vadd.f32 %v396, %v397
  %v399 = vsel %vm107, %v369, 0.0
  %v400 = vadd.f32 %v398, %v399
  %v401 = vrot.slane %v400, 4
  %v402 = vadd.f32 %v400, %v401
  %v403 = vrot.slane %v402, 2
  %v404 = vadd.f32 %v402, %v403
  %v405 = vrot.slane %v404, 1
  %v406 = vadd.f32 %v404, %v405
  %v407 = vld [vmem:[%s5] sm:$0x3]
  %vm408 = vcmask 1040384
  %v409 = vsel %vm408, %v353, %v406
  %v410 = vadd.f32 %v407, %v409
  %vm411 = vcmask 254976
  %412 = vst.msk [vmem:[%s5] sm:$0x3] %vm411, %v410
  // Predicated region
  $region22: #{glow_forward.23} parent=0 // pred_check
    _
  $region23: #{glow_forward.23} parent=0 // pred_check_branch
    %414 = sbr.rel (0) target = $region25
  $region24: #{glow_forward.23} parent=0 // pred_region
    _
  $region25: #{glow_forward.23} parent=0 // pred_fallthru
    _
  // Predicated region
  $region26: #{glow_forward.23} parent=0 // pred_check
    _
  $region27: #{glow_forward.23} parent=0 // pred_check_branch
    %416 = sbr.rel (0) target = $region29
  $region28: #{glow_forward.23} parent=0 // pred_region
    _
  $region29: #{glow_forward.23} parent=0 // pred_fallthru
    _
  // Predicated region
  $region30: #{glow_forward.23} parent=0 // pred_check
    _
  $region31: #{glow_forward.23} parent=0 // pred_check_branch
    %418 = sbr.rel (0) target = $region33
  $region32: #{glow_forward.23} parent=0 // pred_region
    _
  $region33: #{glow_forward.23} parent=0 // pred_fallthru
    _
  // Predicated region
  $region34: #{glow_forward.23} parent=0 // pred_check
    _
  $region35: #{glow_forward.23} parent=0 // pred_check_branch
    %420 = sbr.rel (0) target = $region37
  $region36: #{glow_forward.23} parent=0 // pred_region
    _
  $region37: #{glow_forward.23} parent=0 // pred_fallthru
    _

// kernel: glow_forward.30
$region0: #{glow_forward.30}
  #allocation0 [shape = 'u32[]', space=smem, size = 0x4, offset = 0x4, fixed_abs, tag = 'smem constant byte address 0x4 - core index']
  #allocation1 [shape = 'u32[144,128]{1,0:T(1,128)}', space=vmem, size = 0x12000, scoped, tag = 'internal scratch']
  %s0 = inlined_call_operand.vmem [shape: f32[32,32], index: 0, kind: input, shape index: {}]
  %s1 = inlined_call_operand.vmem [shape: f32[2,32], index: 1, kind: output, shape index: {}]
  %s2 = sld [smem:[#allocation0]]
  $region18: #{glow_forward.30} parent=0
    _
  %s4 = ssub.s32 1, %s2
  %s5 = scalar_select 0, %s4, %s2
  // Predicated region
  $region2: #{glow_forward.30} parent=0 // pred_check
    _
  $region3: #{glow_forward.30} parent=0 // pred_check_branch
    %7 = sbr.rel (0) target = $region5
  $region4: #{glow_forward.30} parent=0 // pred_region
    _
  $region5: #{glow_forward.30} parent=0 // pred_fallthru
    _
  %p8 = scmp.eq.s32.totalorder 0, 0
  // Predicated region
  $region6: #{glow_forward.30} parent=0 // pred_check
    %p9 = pneg %p8
  $region7: #{glow_forward.30} parent=0 // pred_check_branch
    %11 = sbr.rel (%p9) target = $region9
  $region8: #{glow_forward.30} parent=0 // pred_region
    %vm12 = vcmask 254976
    %13 = vst.msk [vmem:[%s1] sm:$0x3] %vm12, 0.0
  $region9: #{glow_forward.30} parent=0 // pred_fallthru
    _
  %v14 = vld [vmem:[%s0] sm:$0xff]
  %v15 = vld [vmem:[%s0 + $0x8] sm:$0xff]
  %v16 = vld [vmem:[%s0 + $0x10] sm:$0xff]
  %v17 = vld [vmem:[%s0 + $0x18] sm:$0xff]
  %vm18 = vcmask 261120
  %v19 = vsel %vm18, %v14, 0.0
  %v20 = vsel %vm18, %v15, 0.0
  %v21 = vadd.f32 %v19, %v20
  %v22 = vsel %vm18, %v16, 0.0
  %v23 = vadd.f32 %v21, %v22
  %v24 = vsel %vm18, %v17, 0.0
  %v25 = vadd.f32 %v23, %v24
  %v26 = vrot.slane %v25, 4
  %v27 = vadd.f32 %v25, %v26
  %v28 = vrot.slane %v27, 2
  %v29 = vadd.f32 %v27, %v28
  %v30 = vrot.slane %v29, 1
  %v31 = vadd.f32 %v29, %v30
  %v32 = vmul.f32 %v14, %v14
  %v33 = vmul.f32 %v15, %v15
  %v34 = vmul.f32 %v16, %v16
  %v35 = vmul.f32 %v17, %v17
  %v36 = vsel %vm18, %v32, 0.0
  %v37 = vsel %vm18, %v33, 0.0
  %v38 = vadd.f32 %v36, %v37
  %v39 = vsel %vm18, %v34, 0.0
  %v40 = vadd.f32 %v38, %v39
  %v41 = vsel %vm18, %v35, 0.0
  %v42 = vadd.f32 %v40, %v41
  %v43 = vrot.slane %v42, 4
  %v44 = vadd.f32 %v42, %v43
  %v45 = vrot.slane %v44, 2
  %v46 = vadd.f32 %v44, %v45
  %v47 = vrot.slane %v46, 1
  %v48 = vadd.f32 %v46, %v47
  %v49 = vld [vmem:[%s1] sm:$0x3]
  %vm50 = vcmask 1040384
  %v51 = vsel %vm50, %v31, %v48
  %v52 = vadd.f32 %v49, %v51
  %vm53 = vcmask 254976
  %54 = vst.msk [vmem:[%s1] sm:$0x3] %vm53, %v52
  // Predicated region
  $region10: #{glow_forward.30} parent=0 // pred_check
    _
  $region11: #{glow_forward.30} parent=0 // pred_check_branch
    %56 = sbr.rel (0) target = $region13
  $region12: #{glow_forward.30} parent=0 // pred_region
    _
  $region13: #{glow_forward.30} parent=0 // pred_fallthru
    _
  // Predicated region
  $region14: #{glow_forward.30} parent=0 // pred_check
    _
  $region15: #{glow_forward.30} parent=0 // pred_check_branch
    %58 = sbr.rel (0) target = $region17
  $region16: #{glow_forward.30} parent=0 // pred_region
    _
  $region17: #{glow_forward.30} parent=0 // pred_fallthru
    _

// kernel: glow_forward.24
$region0: #{glow_forward.24}
  #allocation0 [shape = 'u32[]', space=smem, size = 0x4, offset = 0x4, fixed_abs, tag = 'smem constant byte address 0x4 - core index']
  #allocation1 [shape = 'u32[144,128]{1,0:T(1,128)}', space=vmem, size = 0x12000, scoped, tag = 'internal scratch']
  %s0 = inlined_call_operand.vmem [shape: f32[128,288], index: 0, kind: input, shape index: {}]
  %s1 = inlined_call_operand.vmem [shape: f32[128,16], index: 1, kind: input, shape index: {}]
  %s2 = inlined_call_operand.vmem [shape: f32[1,288], index: 2, kind: input, shape index: {}]
  %s3 = inlined_call_operand.vmem [shape: f32[1,288], index: 3, kind: input, shape index: {}]
  %s4 = inlined_call_operand.vmem [shape: f32[288,8], index: 4, kind: input, shape index: {}]
  %s5 = inlined_call_operand.vmem [shape: f32[288,8], index: 5, kind: input, shape index: {}]
  %s6 = inlined_call_operand.vmem [shape: f32[1,8], index: 6, kind: input, shape index: {}]
  %s7 = inlined_call_operand.vmem [shape: f32[1,8], index: 7, kind: input, shape index: {}]
  %s8 = inlined_call_operand.vmem [shape: f32[128,16], index: 8, kind: output, shape index: {}]
  %s9 = sld [smem:[#allocation0]]
  $region42: #{glow_forward.24} parent=0
    _
  %s11 = ssub.s32 1, %s9
  %s12 = scalar_select 0, %s11, %s9
  // Predicated region
  $region2: #{glow_forward.24} parent=0 // pred_check
    _
  $region3: #{glow_forward.24} parent=0 // pred_check_branch
    %14 = sbr.rel (0) target = $region5
  $region4: #{glow_forward.24} parent=0 // pred_region
    _
  $region5: #{glow_forward.24} parent=0 // pred_fallthru
    _
  // Predicated region
  $region6: #{glow_forward.24} parent=0 // pred_check
    _
  $region7: #{glow_forward.24} parent=0 // pred_check_branch
    %16 = sbr.rel (0) target = $region9
  $region8: #{glow_forward.24} parent=0 // pred_region
    _
  $region9: #{glow_forward.24} parent=0 // pred_fallthru
    _
  // Predicated region
  $region10: #{glow_forward.24} parent=0 // pred_check
    _
  $region11: #{glow_forward.24} parent=0 // pred_check_branch
    %18 = sbr.rel (0) target = $region13
  $region12: #{glow_forward.24} parent=0 // pred_region
    _
  $region13: #{glow_forward.24} parent=0 // pred_fallthru
    _
  // Predicated region
  $region14: #{glow_forward.24} parent=0 // pred_check
    _
  $region15: #{glow_forward.24} parent=0 // pred_check_branch
    %20 = sbr.rel (0) target = $region17
  $region16: #{glow_forward.24} parent=0 // pred_region
    _
  $region17: #{glow_forward.24} parent=0 // pred_fallthru
    _
  // Predicated region
  $region18: #{glow_forward.24} parent=0 // pred_check
    _
  $region19: #{glow_forward.24} parent=0 // pred_check_branch
    %22 = sbr.rel (0) target = $region21
  $region20: #{glow_forward.24} parent=0 // pred_region
    _
  $region21: #{glow_forward.24} parent=0 // pred_fallthru
    _
  // Predicated region
  $region22: #{glow_forward.24} parent=0 // pred_check
    _
  $region23: #{glow_forward.24} parent=0 // pred_check_branch
    %24 = sbr.rel (0) target = $region25
  $region24: #{glow_forward.24} parent=0 // pred_region
    _
  $region25: #{glow_forward.24} parent=0 // pred_fallthru
    _
  // Predicated region
  $region26: #{glow_forward.24} parent=0 // pred_check
    _
  $region27: #{glow_forward.24} parent=0 // pred_check_branch
    %26 = sbr.rel (0) target = $region29
  $region28: #{glow_forward.24} parent=0 // pred_region
    _
  $region29: #{glow_forward.24} parent=0 // pred_fallthru
    _
  // Predicated region
  $region30: #{glow_forward.24} parent=0 // pred_check
    _
  $region31: #{glow_forward.24} parent=0 // pred_check_branch
    %28 = sbr.rel (0) target = $region33
  $region32: #{glow_forward.24} parent=0 // pred_region
    _
  $region33: #{glow_forward.24} parent=0 // pred_fallthru
    _
  %v29 = vld [vmem:[%s0] sm:$0xff]
  %v30 = vld [vmem:[%s0 + $0x8] sm:$0xff]
  %v31 = vld [vmem:[%s0 + $0x10] sm:$0xff]
  %v32 = vld [vmem:[%s0 + $0x18] sm:$0xff]
  %v33 = vld [vmem:[%s0 + $0x20] sm:$0xff]
  %v34 = vld [vmem:[%s0 + $0x28] sm:$0xff]
  %v35 = vld [vmem:[%s0 + $0x30] sm:$0xff]
  %v36 = vld [vmem:[%s0 + $0x38] sm:$0xff]
  %v37 = vld [vmem:[%s0 + $0x40] sm:$0xff]
  %v38 = vld [vmem:[%s0 + $0x48] sm:$0xff]
  %v39 = vld [vmem:[%s0 + $0x50] sm:$0xff]
  %v40 = vld [vmem:[%s0 + $0x58] sm:$0xff]
  %v41 = vld [vmem:[%s0 + $0x60] sm:$0xff]
  %v42 = vld [vmem:[%s0 + $0x68] sm:$0xff]
  %v43 = vld [vmem:[%s0 + $0x70] sm:$0xff]
  %v44 = vld [vmem:[%s0 + $0x78] sm:$0xff]
  %v45 = vld [vmem:[%s0 + $0x80] sm:$0xff]
  %v46 = vld [vmem:[%s0 + $0x88] sm:$0xff]
  %v47 = vld [vmem:[%s0 + $0x90] sm:$0xff]
  %v48 = vld [vmem:[%s0 + $0x98] sm:$0xff]
  %v49 = vld [vmem:[%s0 + $0xa0] sm:$0xff]
  %v50 = vld [vmem:[%s0 + $0xa8] sm:$0xff]
  %v51 = vld [vmem:[%s0 + $0xb0] sm:$0xff]
  %v52 = vld [vmem:[%s0 + $0xb8] sm:$0xff]
  %v53 = vld [vmem:[%s0 + $0xc0] sm:$0xff]
  %v54 = vld [vmem:[%s0 + $0xc8] sm:$0xff]
  %v55 = vld [vmem:[%s0 + $0xd0] sm:$0xff]
  %v56 = vld [vmem:[%s0 + $0xd8] sm:$0xff]
  %v57 = vld [vmem:[%s0 + $0xe0] sm:$0xff]
  %v58 = vld [vmem:[%s0 + $0xe8] sm:$0xff]
  %v59 = vld [vmem:[%s0 + $0xf0] sm:$0xff]
  %v60 = vld [vmem:[%s0 + $0xf8] sm:$0xff]
  %v61 = vld [vmem:[%s0 + $0x100] sm:$0xff]
  %v62 = vld [vmem:[%s0 + $0x108] sm:$0xff]
  %v63 = vld [vmem:[%s0 + $0x110] sm:$0xff]
  %v64 = vld [vmem:[%s0 + $0x118] sm:$0xff]
  %v65 = vld [vmem:[%s0 + $0x120] sm:$0xff]
  %v66 = vld [vmem:[%s0 + $0x128] sm:$0xff]
  %v67 = vld [vmem:[%s0 + $0x130] sm:$0xff]
  %v68 = vld [vmem:[%s0 + $0x138] sm:$0xff]
  %v69 = vld [vmem:[%s0 + $0x140] sm:$0xff]
  %v70 = vld [vmem:[%s0 + $0x148] sm:$0xff]
  %v71 = vld [vmem:[%s0 + $0x150] sm:$0xff]
  %v72 = vld [vmem:[%s0 + $0x158] sm:$0xff]
  %v73 = vld [vmem:[%s0 + $0x160] sm:$0xff]
  %v74 = vld [vmem:[%s0 + $0x168] sm:$0xff]
  %v75 = vld [vmem:[%s0 + $0x170] sm:$0xff]
  %v76 = vld [vmem:[%s0 + $0x178] sm:$0xff]
  %v77 = vld [vmem:[%s2] sm:$0x7]
  %v79 = vlaneseq
  %v80 = vshrl.u32 %v79, 7
  %v81 = vsub.s32 0, %v80
  %v82 = vrot.slane %v77, %v81
  %v83 = vlaneseq
  %v84 = vshrl.u32 %v83, 7
  %v85 = vsub.s32 1, %v84
  %v86 = vrot.slane %v77, %v85
  %v87 = vlaneseq
  %v88 = vshrl.u32 %v87, 7
  %v89 = vsub.s32 2, %v88
  %v90 = vrot.slane %v77, %v89
  %v94 = vmul.f32 %v29, %v82
  %v95 = vmul.f32 %v30, %v86
  %v96 = vmul.f32 %v31, %v90
  %v97 = vmul.f32 %v32, %v82
  %v98 = vmul.f32 %v33, %v86
  %v99 = vmul.f32 %v34, %v90
  %v100 = vmul.f32 %v35, %v82
  %v101 = vmul.f32 %v36, %v86
  %v102 = vmul.f32 %v37, %v90
  %v103 = vmul.f32 %v38, %v82
  %v104 = vmul.f32 %v39, %v86
  %v105 = vmul.f32 %v40, %v90
  %v106 = vmul.f32 %v41, %v82
  %v107 = vmul.f32 %v42, %v86
  %v108 = vmul.f32 %v43, %v90
  %v109 = vmul.f32 %v44, %v82
  %v110 = vmul.f32 %v45, %v86
  %v111 = vmul.f32 %v46, %v90
  %v112 = vmul.f32 %v47, %v82
  %v113 = vmul.f32 %v48, %v86
  %v114 = vmul.f32 %v49, %v90
  %v115 = vmul.f32 %v50, %v82
  %v116 = vmul.f32 %v51, %v86
  %v117 = vmul.f32 %v52, %v90
  %v118 = vmul.f32 %v53, %v82
  %v119 = vmul.f32 %v54, %v86
  %v120 = vmul.f32 %v55, %v90
  %v121 = vmul.f32 %v56, %v82
  %v122 = vmul.f32 %v57, %v86
  %v123 = vmul.f32 %v58, %v90
  %v124 = vmul.f32 %v59, %v82
  %v125 = vmul.f32 %v60, %v86
  %v126 = vmul.f32 %v61, %v90
  %v127 = vmul.f32 %v62, %v82
  %v128 = vmul.f32 %v63, %v86
  %v129 = vmul.f32 %v64, %v90
  %v130 = vmul.f32 %v65, %v82
  %v131 = vmul.f32 %v66, %v86
  %v132 = vmul.f32 %v67, %v90
  %v133 = vmul.f32 %v68, %v82
  %v134 = vmul.f32 %v69, %v86
  %v135 = vmul.f32 %v70, %v90
  %v136 = vmul.f32 %v71, %v82
  %v137 = vmul.f32 %v72, %v86
  %v138 = vmul.f32 %v73, %v90
  %v139 = vmul.f32 %v74, %v82
  %v140 = vmul.f32 %v75, %v86
  %v141 = vmul.f32 %v76, %v90
  %v142 = vld [vmem:[%s3] sm:$0x7]
  %v144 = vlaneseq
  %v145 = vshrl.u32 %v144, 7
  %v146 = vsub.s32 0, %v145
  %v147 = vrot.slane %v142, %v146
  %v148 = vlaneseq
  %v149 = vshrl.u32 %v148, 7
  %v150 = vsub.s32 1, %v149
  %v151 = vrot.slane %v142, %v150
  %v152 = vlaneseq
  %v153 = vshrl.u32 %v152, 7
  %v154 = vsub.s32 2, %v153
  %v155 = vrot.slane %v142, %v154
  %v159 = vadd.f32 %v94, %v147
  %v160 = vadd.f32 %v95, %v151
  %v161 = vadd.f32 %v96, %v155
  %v162 = vadd.f32 %v97, %v147
  %v163 = vadd.f32 %v98, %v151
  %v164 = vadd.f32 %v99, %v155
  %v165 = vadd.f32 %v100, %v147
  %v166 = vadd.f32 %v101, %v151
  %v167 = vadd.f32 %v102, %v155
  %v168 = vadd.f32 %v103, %v147
  %v169 = vadd.f32 %v104, %v151
  %v170 = vadd.f32 %v105, %v155
  %v171 = vadd.f32 %v106, %v147
  %v172 = vadd.f32 %v107, %v151
  %v173 = vadd.f32 %v108, %v155
  %v174 = vadd.f32 %v109, %v147
  %v175 = vadd.f32 %v110, %v151
  %v176 = vadd.f32 %v111, %v155
  %v177 = vadd.f32 %v112, %v147
  %v178 = vadd.f32 %v113, %v151
  %v179 = vadd.f32 %v114, %v155
  %v180 = vadd.f32 %v115, %v147
  %v181 = vadd.f32 %v116, %v151
  %v182 = vadd.f32 %v117, %v155
  %v183 = vadd.f32 %v118, %v147
  %v184 = vadd.f32 %v119, %v151
  %v185 = vadd.f32 %v120, %v155
  %v186 = vadd.f32 %v121, %v147
  %v187 = vadd.f32 %v122, %v151
  %v188 = vadd.f32 %v123, %v155
  %v189 = vadd.f32 %v124, %v147
  %v190 = vadd.f32 %v125, %v151
  %v191 = vadd.f32 %v126, %v155
  %v192 = vadd.f32 %v127, %v147
  %v193 = vadd.f32 %v128, %v151
  %v194 = vadd.f32 %v129, %v155
  %v195 = vadd.f32 %v130, %v147
  %v196 = vadd.f32 %v131, %v151
  %v197 = vadd.f32 %v132, %v155
  %v198 = vadd.f32 %v133, %v147
  %v199 = vadd.f32 %v134, %v151
  %v200 = vadd.f32 %v135, %v155
  %v201 = vadd.f32 %v136, %v147
  %v202 = vadd.f32 %v137, %v151
  %v203 = vadd.f32 %v138, %v155
  %v204 = vadd.f32 %v139, %v147
  %v205 = vadd.f32 %v140, %v151
  %v206 = vadd.f32 %v141, %v155
  %v207 = vmax.f32 %v159, 0.0
  %v208 = vmax.f32 %v160, 0.0
  %v209 = vmax.f32 %v161, 0.0
  %v210 = vmax.f32 %v162, 0.0
  %v211 = vmax.f32 %v163, 0.0
  %v212 = vmax.f32 %v164, 0.0
  %v213 = vmax.f32 %v165, 0.0
  %v214 = vmax.f32 %v166, 0.0
  %v215 = vmax.f32 %v167, 0.0
  %v216 = vmax.f32 %v168, 0.0
  %v217 = vmax.f32 %v169, 0.0
  %v218 = vmax.f32 %v170, 0.0
  %v219 = vmax.f32 %v171, 0.0
  %v220 = vmax.f32 %v172, 0.0
  %v221 = vmax.f32 %v173, 0.0
  %v222 = vmax.f32 %v174, 0.0
  %v223 = vmax.f32 %v175, 0.0
  %v224 = vmax.f32 %v176, 0.0
  %v225 = vmax.f32 %v177, 0.0
  %v226 = vmax.f32 %v178, 0.0
  %v227 = vmax.f32 %v179, 0.0
  %v228 = vmax.f32 %v180, 0.0
  %v229 = vmax.f32 %v181, 0.0
  %v230 = vmax.f32 %v182, 0.0
  %v231 = vmax.f32 %v183, 0.0
  %v232 = vmax.f32 %v184, 0.0
  %v233 = vmax.f32 %v185, 0.0
  %v234 = vmax.f32 %v186, 0.0
  %v235 = vmax.f32 %v187, 0.0
  %v236 = vmax.f32 %v188, 0.0
  %v237 = vmax.f32 %v189, 0.0
  %v238 = vmax.f32 %v190, 0.0
  %v239 = vmax.f32 %v191, 0.0
  %v240 = vmax.f32 %v192, 0.0
  %v241 = vmax.f32 %v193, 0.0
  %v242 = vmax.f32 %v194, 0.0
  %v243 = vmax.f32 %v195, 0.0
  %v244 = vmax.f32 %v196, 0.0
  %v245 = vmax.f32 %v197, 0.0
  %v246 = vmax.f32 %v198, 0.0
  %v247 = vmax.f32 %v199, 0.0
  %v248 = vmax.f32 %v200, 0.0
  %v249 = vmax.f32 %v201, 0.0
  %v250 = vmax.f32 %v202, 0.0
  %v251 = vmax.f32 %v203, 0.0
  %v252 = vmax.f32 %v204, 0.0
  %v253 = vmax.f32 %v205, 0.0
  %v254 = vmax.f32 %v206, 0.0
  %v255 = vld [vmem:[%s4] sm:$0xff]
  %v256 = vld [vmem:[%s4 + $0x8] sm:$0xff]
  %v257 = vld [vmem:[%s4 + $0x10] sm:$0xff]
  %v258 = vld [vmem:[%s4 + $0x18] sm:$0xff]
  %v259 = vld [vmem:[%s4 + $0x20] sm:$0xff]
  %v260 = vld [vmem:[%s4 + $0x28] sm:$0xff]
  %v261 = vld [vmem:[%s4 + $0x30] sm:$0xff]
  %v262 = vld [vmem:[%s4 + $0x38] sm:$0xff]
  %v263 = vld [vmem:[%s4 + $0x40] sm:$0xff]
  %v264 = vld [vmem:[%s4 + $0x48] sm:$0xff]
  %v265 = vld [vmem:[%s4 + $0x50] sm:$0xff]
  %v266 = vld [vmem:[%s4 + $0x58] sm:$0xff]
  %v267 = vld [vmem:[%s4 + $0x60] sm:$0xff]
  %v268 = vld [vmem:[%s4 + $0x68] sm:$0xff]
  %v269 = vld [vmem:[%s4 + $0x70] sm:$0xff]
  %v270 = vld [vmem:[%s4 + $0x78] sm:$0xff]
  %v271 = vld [vmem:[%s4 + $0x80] sm:$0xff]
  %v272 = vld [vmem:[%s4 + $0x88] sm:$0xff]
  %v273 = vld [vmem:[%s4 + $0x90] sm:$0xff]
  %v274 = vld [vmem:[%s4 + $0x98] sm:$0xff]
  %v275 = vld [vmem:[%s4 + $0xa0] sm:$0xff]
  %v276 = vld [vmem:[%s4 + $0xa8] sm:$0xff]
  %v277 = vld [vmem:[%s4 + $0xb0] sm:$0xff]
  %v278 = vld [vmem:[%s4 + $0xb8] sm:$0xff]
  %v279 = vld [vmem:[%s4 + $0xc0] sm:$0xff]
  %v280 = vld [vmem:[%s4 + $0xc8] sm:$0xff]
  %v281 = vld [vmem:[%s4 + $0xd0] sm:$0xff]
  %v282 = vld [vmem:[%s4 + $0xd8] sm:$0xff]
  %v283 = vld [vmem:[%s4 + $0xe0] sm:$0xff]
  %v284 = vld [vmem:[%s4 + $0xe8] sm:$0xff]
  %v285 = vld [vmem:[%s4 + $0xf0] sm:$0xff]
  %v286 = vld [vmem:[%s4 + $0xf8] sm:$0xff]
  %v287 = vld [vmem:[%s4 + $0x100] sm:$0xff]
  %v288 = vld [vmem:[%s4 + $0x108] sm:$0xff]
  %v289 = vld [vmem:[%s4 + $0x110] sm:$0xff]
  %v290 = vld [vmem:[%s4 + $0x118] sm:$0xff]
  %v291 = vld [vmem:[%s6] sm:$0x1]
  %v293 = vlaneseq
  %v294 = vshrl.u32 %v293, 7
  %v295 = vsub.s32 0, %v294
  %v296 = vrot.slane %v291, %v295
  %vm298 = vcmask 261120
  %v300 = vsel %vm298, %v209, 0
  %v303 = vsel %vm298, %v212, 0
  %v306 = vsel %vm298, %v215, 0
  %v309 = vsel %vm298, %v218, 0
  %v312 = vsel %vm298, %v221, 0
  %v315 = vsel %vm298, %v224, 0
  %v318 = vsel %vm298, %v227, 0
  %v321 = vsel %vm298, %v230, 0
  %v324 = vsel %vm298, %v233, 0
  %v327 = vsel %vm298, %v236, 0
  %v330 = vsel %vm298, %v239, 0
  %v333 = vsel %vm298, %v242, 0
  %v336 = vsel %vm298, %v245, 0
  %v339 = vsel %vm298, %v248, 0
  %v342 = vsel %vm298, %v251, 0
  %v345 = vsel %vm298, %v254, 0
  %347 = vmatprep.subr.mxu0 0.0
  %348 = vmatpush1.msra.mxu0 %v255
  %349 = vmatprep.subr.mxu0 0.0
  %350 = vmatpush1.msra.mxu0 %v256
  %351 = vmatprep.subr.mxu0 0.0
  %352 = vmatpush1.msra.mxu0 %v257
  %353 = vmatprep.subr.mxu0 0.0
  %354 = vmatpush1.msra.mxu0 %v258
  %355 = vmatprep.subr.mxu0 0.0
  %356 = vmatpush1.msra.mxu0 %v259
  %357 = vmatprep.subr.mxu0 0.0
  %358 = vmatpush1.msra.mxu0 %v260
  %359 = vmatprep.subr.mxu0 0.0
  %360 = vmatpush1.msra.mxu0 %v261
  %361 = vmatprep.subr.mxu0 0.0
  %362 = vmatpush1.msra.mxu0 %v262
  %363 = vmatprep.subr.mxu0 0.0
  %364 = vmatpush1.msra.mxu0 %v263
  %365 = vmatprep.subr.mxu0 0.0
  %366 = vmatpush1.msra.mxu0 %v264
  %367 = vmatprep.subr.mxu0 0.0
  %368 = vmatpush1.msra.mxu0 %v265
  %369 = vmatprep.subr.mxu0 0.0
  %370 = vmatpush1.msra.mxu0 %v266
  %371 = vmatprep.subr.mxu0 0.0
  %372 = vmatpush1.msra.mxu0 %v267
  %373 = vmatprep.subr.mxu0 0.0
  %374 = vmatpush1.msra.mxu0 %v268
  %375 = vmatprep.subr.mxu0 0.0
  %376 = vmatpush1.msra.mxu0 %v269
  %377 = vmatprep.subr.mxu0 0.0
  %378 = vmatpush1.msra.mxu0 %v270
  %379 = vmatprep.subr.mxu0 0.0
  %380 = vmatpush1.msra.mxu0 %v271
  %381 = vmatprep.subr.mxu0 0.0
  %382 = vmatpush1.msra.mxu0 %v272
  %383 = vmatprep.subr.mxu0 0.0
  %384 = vmatpush1.msra.mxu0 %v273
  %385 = vmatprep.subr.mxu0 0.0
  %386 = vmatpush1.msra.mxu0 %v274
  %387 = vmatprep.subr.mxu0 0.0
  %388 = vmatpush1.msra.mxu0 %v275
  %389 = vmatprep.subr.mxu0 0.0
  %390 = vmatpush1.msra.mxu0 %v276
  %391 = vmatprep.subr.mxu0 0.0
  %392 = vmatpush1.msra.mxu0 %v277
  %393 = vmatprep.subr.mxu0 0.0
  %394 = vmatpush1.msra.mxu0 %v278
  %395 = vmatprep.subr.mxu0 0.0
  %396 = vmatpush1.msra.mxu0 %v279
  %397 = vmatprep.subr.mxu0 0.0
  %398 = vmatpush1.msra.mxu0 %v280
  %399 = vmatprep.subr.mxu0 0.0
  %400 = vmatpush1.msra.mxu0 %v281
  %401 = vmatprep.subr.mxu0 0.0
  %402 = vmatpush1.msra.mxu0 %v282
  %403 = vmatprep.subr.mxu0 0.0
  %404 = vmatpush1.msra.mxu0 %v283
  %405 = vmatprep.subr.mxu0 0.0
  %406 = vmatpush1.msra.mxu0 %v284
  %407 = vmatprep.subr.mxu0 0.0
  %408 = vmatpush1.msra.mxu0 %v285
  %409 = vmatprep.subr.mxu0 0.0
  %410 = vmatpush1.msra.mxu0 %v286
  %411 = vmatprep.mubr.f32.mxu0 %v208
  %412 = vmatmul.mubr.f32.gmra.mrb[0].mxu0 %v207
  %v413 = vpop.f32.mrb[0].mxu0
  %v414 = vadd.f32 %v296, %v413
  %v415 = vpop.f32.mrb[0].mxu0
  %416 = vmatprep.mubr.f32.mxu0 %v211
  %417 = vmatmul.mubr.f32.gmra.mrb[0].mxu0 %v210
  %v418 = vpop.f32.mrb[0].mxu0
  %v419 = vadd.f32 %v296, %v418
  %v420 = vpop.f32.mrb[0].mxu0
  %421 = vmatprep.mubr.f32.mxu0 %v214
  %422 = vmatmul.mubr.f32.gmra.mrb[0].mxu0 %v213
  %v423 = vpop.f32.mrb[0].mxu0
  %v424 = vadd.f32 %v296, %v423
  %v425 = vpop.f32.mrb[0].mxu0
  %426 = vmatprep.mubr.f32.mxu0 %v217
  %427 = vmatmul.mubr.f32.gmra.mrb[0].mxu0 %v216
  %v428 = vpop.f32.mrb[0].mxu0
  %v429 = vadd.f32 %v296, %v428
  %v430 = vpop.f32.mrb[0].mxu0
  %431 = vmatprep.mubr.f32.mxu0 %v220
  %432 = vmatmul.mubr.f32.gmra.mrb[0].mxu0 %v219
  %v433 = vpop.f32.mrb[0].mxu0
  %v434 = vadd.f32 %v296, %v433
  %v435 = vpop.f32.mrb[0].mxu0
  %436 = vmatprep.mubr.f32.mxu0 %v223
  %437 = vmatmul.mubr.f32.gmra.mrb[0].mxu0 %v222
  %v438 = vpop.f32.mrb[0].mxu0
  %v439 = vadd.f32 %v296, %v438
  %v440 = vpop.f32.mrb[0].mxu0
  %441 = vmatprep.mubr.f32.mxu0 %v226
  %442 = vmatmul.mubr.f32.gmra.mrb[0].mxu0 %v225
  %v443 = vpop.f32.mrb[0].mxu0
  %v444 = vadd.f32 %v296, %v443
  %v445 = vpop.f32.mrb[0].mxu0
  %446 = vmatprep.mubr.f32.mxu0 %v229
  %447 = vmatmul.mubr.f32.gmra.mrb[0].mxu0 %v228
  %v448 = vpop.f32.mrb[0].mxu0
  %v449 = vadd.f32 %v296, %v448
  %v450 = vpop.f32.mrb[0].mxu0
  %451 = vmatprep.mubr.f32.mxu0 %v232
  %452 = vmatmul.mubr.f32.gmra.mrb[0].mxu0 %v231
  %v453 = vpop.f32.mrb[0].mxu0
  %v454 = vadd.f32 %v296, %v453
  %v455 = vpop.f32.mrb[0].mxu0
  %456 = vmatprep.mubr.f32.mxu0 %v235
  %457 = vmatmul.mubr.f32.gmra.mrb[0].mxu0 %v234
  %v458 = vpop.f32.mrb[0].mxu0
  %v459 = vadd.f32 %v296, %v458
  %v460 = vpop.f32.mrb[0].mxu0
  %461 = vmatprep.mubr.f32.mxu0 %v238
  %462 = vmatmul.mubr.f32.gmra.mrb[0].mxu0 %v237
  %v463 = vpop.f32.mrb[0].mxu0
  %v464 = vadd.f32 %v296, %v463
  %v465 = vpop.f32.mrb[0].mxu0
  %466 = vmatprep.mubr.f32.mxu0 %v241
  %467 = vmatmul.mubr.f32.gmra.mrb[0].mxu0 %v240
  %v468 = vpop.f32.mrb[0].mxu0
  %v469 = vadd.f32 %v296, %v468
  %v470 = vpop.f32.mrb[0].mxu0
  %471 = vmatprep.mubr.f32.mxu0 %v244
  %472 = vmatmul.mubr.f32.gmra.mrb[0].mxu0 %v243
  %v473 = vpop.f32.mrb[0].mxu0
  %v474 = vadd.f32 %v296, %v473
  %v475 = vpop.f32.mrb[0].mxu0
  %476 = vmatprep.mubr.f32.mxu0 %v247
  %477 = vmatmul.mubr.f32.gmra.mrb[0].mxu0 %v246
  %v478 = vpop.f32.mrb[0].mxu0
  %v479 = vadd.f32 %v296, %v478
  %v480 = vpop.f32.mrb[0].mxu0
  %481 = vmatprep.mubr.f32.mxu0 %v250
  %482 = vmatmul.mubr.f32.gmra.mrb[0].mxu0 %v249
  %v483 = vpop.f32.mrb[0].mxu0
  %v484 = vadd.f32 %v296, %v483
  %v485 = vpop.f32.mrb[0].mxu0
  %486 = vmatprep.mubr.f32.mxu0 %v253
  %487 = vmatmul.mubr.f32.gmra.mrb[0].mxu0 %v252
  %v488 = vpop.f32.mrb[0].mxu0
  %v489 = vadd.f32 %v296, %v488
  %v490 = vpop.f32.mrb[0].mxu0
  %491 = vdwg.mxu0
  %492 = vmatprep.subr.mxu0 0.0
  %493 = vmatpush1.msra.mxu0 %v287
  %494 = vmatprep.subr.mxu0 0.0
  %495 = vmatpush1.msra.mxu0 %v288
  %496 = vmatprep.subr.mxu0 0.0
  %497 = vmatpush1.msra.mxu0 %v289
  %498 = vmatprep.subr.mxu0 0.0
  %499 = vmatpush1.msra.mxu0 %v290
  %500 = vmatprep.subr.mxu0 0.0
  %501 = vmatpush1.msra.mxu0 0.0
  %502 = vmatprep.subr.mxu0 0.0
  %503 = vmatpush1.msra.mxu0 0.0
  %504 = vmatprep.subr.mxu0 0.0
  %505 = vmatpush1.msra.mxu0 0.0
  %506 = vmatprep.subr.mxu0 0.0
  %507 = vmatpush1.msra.mxu0 0.0
  %508 = vmatprep.subr.mxu0 0.0
  %509 = vmatpush1.msra.mxu0 0.0
  %510 = vmatprep.subr.mxu0 0.0
  %511 = vmatpush1.msra.mxu0 0.0
  %512 = vmatprep.subr.mxu0 0.0
  %513 = vmatpush1.msra.mxu0 0.0
  %514 = vmatprep.subr.mxu0 0.0
  %515 = vmatpush1.msra.mxu0 0.0
  %516 = vmatprep.subr.mxu0 0.0
  %517 = vmatpush1.msra.mxu0 0.0
  %518 = vmatprep.subr.mxu0 0.0
  %519 = vmatpush1.msra.mxu0 0.0
  %520 = vmatprep.subr.mxu0 0.0
  %521 = vmatpush1.msra.mxu0 0.0
  %522 = vmatprep.subr.mxu0 0.0
  %523 = vmatpush1.msra.mxu0 0.0
  %524 = vmatprep.subr.mxu0 0.0
  %525 = vmatpush1.msra.mxu0 0.0
  %526 = vmatprep.subr.mxu0 0.0
  %527 = vmatpush1.msra.mxu0 0.0
  %528 = vmatprep.subr.mxu0 0.0
  %529 = vmatpush1.msra.mxu0 0.0
  %530 = vmatprep.subr.mxu0 0.0
  %531 = vmatpush1.msra.mxu0 0.0
  %532 = vmatprep.subr.mxu0 0.0
  %533 = vmatpush1.msra.mxu0 0.0
  %534 = vmatprep.subr.mxu0 0.0
  %535 = vmatpush1.msra.mxu0 0.0
  %536 = vmatprep.subr.mxu0 0.0
  %537 = vmatpush1.msra.mxu0 0.0
  %538 = vmatprep.subr.mxu0 0.0
  %539 = vmatpush1.msra.mxu0 0.0
  %540 = vmatprep.subr.mxu0 0.0
  %541 = vmatpush1.msra.mxu0 0.0
  %542 = vmatprep.subr.mxu0 0.0
  %543 = vmatpush1.msra.mxu0 0.0
  %544 = vmatprep.subr.mxu0 0.0
  %545 = vmatpush1.msra.mxu0 0.0
  %546 = vmatprep.subr.mxu0 0.0
  %547 = vmatpush1.msra.mxu0 0.0
  %548 = vmatprep.subr.mxu0 0.0
  %549 = vmatpush1.msra.mxu0 0.0
  %550 = vmatprep.subr.mxu0 0.0
  %551 = vmatpush1.msra.mxu0 0.0
  %552 = vmatprep.subr.mxu0 0.0
  %553 = vmatpush1.msra.mxu0 0.0
  %554 = vmatprep.subr.mxu0 0.0
  %555 = vmatpush1.msra.mxu0 0.0
  %556 = vmatprep.mubr.f32.mxu0 0.0
  %557 = vmatmul.mubr.f32.gmra.mrb[0].mxu0 %v300
  %v558 = vpop.f32.mrb[0].mxu0
  %v559 = vadd.f32 %v414, %v558
  %v560 = vpop.f32.mrb[0].mxu0
  %561 = vmatprep.mubr.f32.mxu0 0.0
  %562 = vmatmul.mubr.f32.gmra.mrb[0].mxu0 %v303
  %v563 = vpop.f32.mrb[0].mxu0
  %v564 = vadd.f32 %v419, %v563
  %v565 = vpop.f32.mrb[0].mxu0
  %566 = vmatprep.mubr.f32.mxu0 0.0
  %567 = vmatmul.mubr.f32.gmra.mrb[0].mxu0 %v306
  %v568 = vpop.f32.mrb[0].mxu0
  %v569 = vadd.f32 %v424, %v568
  %v570 = vpop.f32.mrb[0].mxu0
  %571 = vmatprep.mubr.f32.mxu0 0.0
  %572 = vmatmul.mubr.f32.gmra.mrb[0].mxu0 %v309
  %v573 = vpop.f32.mrb[0].mxu0
  %v574 = vadd.f32 %v429, %v573
  %v575 = vpop.f32.mrb[0].mxu0
  %576 = vmatprep.mubr.f32.mxu0 0.0
  %577 = vmatmul.mubr.f32.gmra.mrb[0].mxu0 %v312
  %v578 = vpop.f32.mrb[0].mxu0
  %v579 = vadd.f32 %v434, %v578
  %v580 = vpop.f32.mrb[0].mxu0
  %581 = vmatprep.mubr.f32.mxu0 0.0
  %582 = vmatmul.mubr.f32.gmra.mrb[0].mxu0 %v315
  %v583 = vpop.f32.mrb[0].mxu0
  %v584 = vadd.f32 %v439, %v583
  %v585 = vpop.f32.mrb[0].mxu0
  %586 = vmatprep.mubr.f32.mxu0 0.0
  %587 = vmatmul.mubr.f32.gmra.mrb[0].mxu0 %v318
  %v588 = vpop.f32.mrb[0].mxu0
  %v589 = vadd.f32 %v444, %v588
  %v590 = vpop.f32.mrb[0].mxu0
  %591 = vmatprep.mubr.f32.mxu0 0.0
  %592 = vmatmul.mubr.f32.gmra.mrb[0].mxu0 %v321
  %v593 = vpop.f32.mrb[0].mxu0
  %v594 = vadd.f32 %v449, %v593
  %v595 = vpop.f32.mrb[0].mxu0
  %596 = vmatprep.mubr.f32.mxu0 0.0
  %597 = vmatmul.mubr.f32.gmra.mrb[0].mxu0 %v324
  %v598 = vpop.f32.mrb[0].mxu0
  %v599 = vadd.f32 %v454, %v598
  %v600 = vpop.f32.mrb[0].mxu0
  %601 = vmatprep.mubr.f32.mxu0 0.0
  %602 = vmatmul.mubr.f32.gmra.mrb[0].mxu0 %v327
  %v603 = vpop.f32.mrb[0].mxu0
  %v604 = vadd.f32 %v459, %v603
  %v605 = vpop.f32.mrb[0].mxu0
  %606 = vmatprep.mubr.f32.mxu0 0.0
  %607 = vmatmul.mubr.f32.gmra.mrb[0].mxu0 %v330
  %v608 = vpop.f32.mrb[0].mxu0
  %v609 = vadd.f32 %v464, %v608
  %v610 = vpop.f32.mrb[0].mxu0
  %611 = vmatprep.mubr.f32.mxu0 0.0
  %612 = vmatmul.mubr.f32.gmra.mrb[0].mxu0 %v333
  %v613 = vpop.f32.mrb[0].mxu0
  %v614 = vadd.f32 %v469, %v613
  %v615 = vpop.f32.mrb[0].mxu0
  %616 = vmatprep.mubr.f32.mxu0 0.0
  %617 = vmatmul.mubr.f32.gmra.mrb[0].mxu0 %v336
  %v618 = vpop.f32.mrb[0].mxu0
  %v619 = vadd.f32 %v474, %v618
  %v620 = vpop.f32.mrb[0].mxu0
  %621 = vmatprep.mubr.f32.mxu0 0.0
  %622 = vmatmul.mubr.f32.gmra.mrb[0].mxu0 %v339
  %v623 = vpop.f32.mrb[0].mxu0
  %v624 = vadd.f32 %v479, %v623
  %v625 = vpop.f32.mrb[0].mxu0
  %626 = vmatprep.mubr.f32.mxu0 0.0
  %627 = vmatmul.mubr.f32.gmra.mrb[0].mxu0 %v342
  %v628 = vpop.f32.mrb[0].mxu0
  %v629 = vadd.f32 %v484, %v628
  %v630 = vpop.f32.mrb[0].mxu0
  %631 = vmatprep.mubr.f32.mxu0 0.0
  %632 = vmatmul.mubr.f32.gmra.mrb[0].mxu0 %v345
  %v633 = vpop.f32.mrb[0].mxu0
  %v634 = vadd.f32 %v489, %v633
  %v635 = vpop.f32.mrb[0].mxu0
  %636 = vdwg.mxu0
  %v637 = vld [vmem:[%s5] sm:$0xff]
  %v638 = vld [vmem:[%s5 + $0x8] sm:$0xff]
  %v639 = vld [vmem:[%s5 + $0x10] sm:$0xff]
  %v640 = vld [vmem:[%s5 + $0x18] sm:$0xff]
  %v641 = vld [vmem:[%s5 + $0x20] sm:$0xff]
  %v642 = vld [vmem:[%s5 + $0x28] sm:$0xff]
  %v643 = vld [vmem:[%s5 + $0x30] sm:$0xff]
  %v644 = vld [vmem:[%s5 + $0x38] sm:$0xff]
  %v645 = vld [vmem:[%s5 + $0x40] sm:$0xff]
  %v646 = vld [vmem:[%s5 + $0x48] sm:$0xff]
  %v647 = vld [vmem:[%s5 + $0x50] sm:$0xff]
  %v648 = vld [vmem:[%s5 + $0x58] sm:$0xff]
  %v649 = vld [vmem:[%s5 + $0x60] sm:$0xff]
  %v650 = vld [vmem:[%s5 + $0x68] sm:$0xff]
  %v651 = vld [vmem:[%s5 + $0x70] sm:$0xff]
  %v652 = vld [vmem:[%s5 + $0x78] sm:$0xff]
  %v653 = vld [vmem:[%s5 + $0x80] sm:$0xff]
  %v654 = vld [vmem:[%s5 + $0x88] sm:$0xff]
  %v655 = vld [vmem:[%s5 + $0x90] sm:$0xff]
  %v656 = vld [vmem:[%s5 + $0x98] sm:$0xff]
  %v657 = vld [vmem:[%s5 + $0xa0] sm:$0xff]
  %v658 = vld [vmem:[%s5 + $0xa8] sm:$0xff]
  %v659 = vld [vmem:[%s5 + $0xb0] sm:$0xff]
  %v660 = vld [vmem:[%s5 + $0xb8] sm:$0xff]
  %v661 = vld [vmem:[%s5 + $0xc0] sm:$0xff]
  %v662 = vld [vmem:[%s5 + $0xc8] sm:$0xff]
  %v663 = vld [vmem:[%s5 + $0xd0] sm:$0xff]
  %v664 = vld [vmem:[%s5 + $0xd8] sm:$0xff]
  %v665 = vld [vmem:[%s5 + $0xe0] sm:$0xff]
  %v666 = vld [vmem:[%s5 + $0xe8] sm:$0xff]
  %v667 = vld [vmem:[%s5 + $0xf0] sm:$0xff]
  %v668 = vld [vmem:[%s5 + $0xf8] sm:$0xff]
  %v669 = vld [vmem:[%s5 + $0x100] sm:$0xff]
  %v670 = vld [vmem:[%s5 + $0x108] sm:$0xff]
  %v671 = vld [vmem:[%s5 + $0x110] sm:$0xff]
  %v672 = vld [vmem:[%s5 + $0x118] sm:$0xff]
  %v673 = vld [vmem:[%s7] sm:$0x1]
  %v675 = vlaneseq
  %v676 = vshrl.u32 %v675, 7
  %v677 = vsub.s32 0, %v676
  %v678 = vrot.slane %v673, %v677
  %680 = vmatprep.subr.mxu0 0.0
  %681 = vmatpush1.msra.mxu0 %v637
  %682 = vmatprep.subr.mxu0 0.0
  %683 = vmatpush1.msra.mxu0 %v638
  %684 = vmatprep.subr.mxu0 0.0
  %685 = vmatpush1.msra.mxu0 %v639
  %686 = vmatprep.subr.mxu0 0.0
  %687 = vmatpush1.msra.mxu0 %v640
  %688 = vmatprep.subr.mxu0 0.0
  %689 = vmatpush1.msra.mxu0 %v641
  %690 = vmatprep.subr.mxu0 0.0
  %691 = vmatpush1.msra.mxu0 %v642
  %692 = vmatprep.subr.mxu0 0.0
  %693 = vmatpush1.msra.mxu0 %v643
  %694 = vmatprep.subr.mxu0 0.0
  %695 = vmatpush1.msra.mxu0 %v644
  %696 = vmatprep.subr.mxu0 0.0
  %697 = vmatpush1.msra.mxu0 %v645
  %698 = vmatprep.subr.mxu0 0.0
  %699 = vmatpush1.msra.mxu0 %v646
  %700 = vmatprep.subr.mxu0 0.0
  %701 = vmatpush1.msra.mxu0 %v647
  %702 = vmatprep.subr.mxu0 0.0
  %703 = vmatpush1.msra.mxu0 %v648
  %704 = vmatprep.subr.mxu0 0.0
  %705 = vmatpush1.msra.mxu0 %v649
  %706 = vmatprep.subr.mxu0 0.0
  %707 = vmatpush1.msra.mxu0 %v650
  %708 = vmatprep.subr.mxu0 0.0
  %709 = vmatpush1.msra.mxu0 %v651
  %710 = vmatprep.subr.mxu0 0.0
  %711 = vmatpush1.msra.mxu0 %v652
  %712 = vmatprep.subr.mxu0 0.0
  %713 = vmatpush1.msra.mxu0 %v653
  %714 = vmatprep.subr.mxu0 0.0
  %715 = vmatpush1.msra.mxu0 %v654
  %716 = vmatprep.subr.mxu0 0.0
  %717 = vmatpush1.msra.mxu0 %v655
  %718 = vmatprep.subr.mxu0 0.0
  %719 = vmatpush1.msra.mxu0 %v656
  %720 = vmatprep.subr.mxu0 0.0
  %721 = vmatpush1.msra.mxu0 %v657
  %722 = vmatprep.subr.mxu0 0.0
  %723 = vmatpush1.msra.mxu0 %v658
  %724 = vmatprep.subr.mxu0 0.0
  %725 = vmatpush1.msra.mxu0 %v659
  %726 = vmatprep.subr.mxu0 0.0
  %727 = vmatpush1.msra.mxu0 %v660
  %728 = vmatprep.subr.mxu0 0.0
  %729 = vmatpush1.msra.mxu0 %v661
  %730 = vmatprep.subr.mxu0 0.0
  %731 = vmatpush1.msra.mxu0 %v662
  %732 = vmatprep.subr.mxu0 0.0
  %733 = vmatpush1.msra.mxu0 %v663
  %734 = vmatprep.subr.mxu0 0.0
  %735 = vmatpush1.msra.mxu0 %v664
  %736 = vmatprep.subr.mxu0 0.0
  %737 = vmatpush1.msra.mxu0 %v665
  %738 = vmatprep.subr.mxu0 0.0
  %739 = vmatpush1.msra.mxu0 %v666
  %740 = vmatprep.subr.mxu0 0.0
  %741 = vmatpush1.msra.mxu0 %v667
  %742 = vmatprep.subr.mxu0 0.0
  %743 = vmatpush1.msra.mxu0 %v668
  %744 = vmatprep.mubr.f32.mxu0 %v208
  %745 = vmatmul.mubr.f32.gmra.mrb[0].mxu0 %v207
  %v746 = vpop.f32.mrb[0].mxu0
  %v747 = vadd.f32 %v678, %v746
  %v748 = vpop.f32.mrb[0].mxu0
  %749 = vmatprep.mubr.f32.mxu0 %v211
  %750 = vmatmul.mubr.f32.gmra.mrb[0].mxu0 %v210
  %v751 = vpop.f32.mrb[0].mxu0
  %v752 = vadd.f32 %v678, %v751
  %v753 = vpop.f32.mrb[0].mxu0
  %754 = vmatprep.mubr.f32.mxu0 %v214
  %755 = vmatmul.mubr.f32.gmra.mrb[0].mxu0 %v213
  %v756 = vpop.f32.mrb[0].mxu0
  %v757 = vadd.f32 %v678, %v756
  %v758 = vpop.f32.mrb[0].mxu0
  %759 = vmatprep.mubr.f32.mxu0 %v217
  %760 = vmatmul.mubr.f32.gmra.mrb[0].mxu0 %v216
  %v761 = vpop.f32.mrb[0].mxu0
  %v762 = vadd.f32 %v678, %v761
  %v763 = vpop.f32.mrb[0].mxu0
  %764 = vmatprep.mubr.f32.mxu0 %v220
  %765 = vmatmul.mubr.f32.gmra.mrb[0].mxu0 %v219
  %v766 = vpop.f32.mrb[0].mxu0
  %v767 = vadd.f32 %v678, %v766
  %v768 = vpop.f32.mrb[0].mxu0
  %769 = vmatprep.mubr.f32.mxu0 %v223
  %770 = vmatmul.mubr.f32.gmra.mrb[0].mxu0 %v222
  %v771 = vpop.f32.mrb[0].mxu0
  %v772 = vadd.f32 %v678, %v771
  %v773 = vpop.f32.mrb[0].mxu0
  %774 = vmatprep.mubr.f32.mxu0 %v226
  %775 = vmatmul.mubr.f32.gmra.mrb[0].mxu0 %v225
  %v776 = vpop.f32.mrb[0].mxu0
  %v777 = vadd.f32 %v678, %v776
  %v778 = vpop.f32.mrb[0].mxu0
  %779 = vmatprep.mubr.f32.mxu0 %v229
  %780 = vmatmul.mubr.f32.gmra.mrb[0].mxu0 %v228
  %v781 = vpop.f32.mrb[0].mxu0
  %v782 = vadd.f32 %v678, %v781
  %v783 = vpop.f32.mrb[0].mxu0
  %784 = vmatprep.mubr.f32.mxu0 %v232
  %785 = vmatmul.mubr.f32.gmra.mrb[0].mxu0 %v231
  %v786 = vpop.f32.mrb[0].mxu0
  %v787 = vadd.f32 %v678, %v786
  %v788 = vpop.f32.mrb[0].mxu0
  %789 = vmatprep.mubr.f32.mxu0 %v235
  %790 = vmatmul.mubr.f32.gmra.mrb[0].mxu0 %v234
  %v791 = vpop.f32.mrb[0].mxu0
  %v792 = vadd.f32 %v678, %v791
  %v793 = vpop.f32.mrb[0].mxu0
  %794 = vmatprep.mubr.f32.mxu0 %v238
  %795 = vmatmul.mubr.f32.gmra.mrb[0].mxu0 %v237
  %v796 = vpop.f32.mrb[0].mxu0
  %v797 = vadd.f32 %v678, %v796
  %v798 = vpop.f32.mrb[0].mxu0
  %799 = vmatprep.mubr.f32.mxu0 %v241
  %800 = vmatmul.mubr.f32.gmra.mrb[0].mxu0 %v240
  %v801 = vpop.f32.mrb[0].mxu0
  %v802 = vadd.f32 %v678, %v801
  %v803 = vpop.f32.mrb[0].mxu0
  %804 = vmatprep.mubr.f32.mxu0 %v244
  %805 = vmatmul.mubr.f32.gmra.mrb[0].mxu0 %v243
  %v806 = vpop.f32.mrb[0].mxu0
  %v807 = vadd.f32 %v678, %v806
  %v808 = vpop.f32.mrb[0].mxu0
  %809 = vmatprep.mubr.f32.mxu0 %v247
  %810 = vmatmul.mubr.f32.gmra.mrb[0].mxu0 %v246
  %v811 = vpop.f32.mrb[0].mxu0
  %v812 = vadd.f32 %v678, %v811
  %v813 = vpop.f32.mrb[0].mxu0
  %814 = vmatprep.mubr.f32.mxu0 %v250
  %815 = vmatmul.mubr.f32.gmra.mrb[0].mxu0 %v249
  %v816 = vpop.f32.mrb[0].mxu0
  %v817 = vadd.f32 %v678, %v816
  %v818 = vpop.f32.mrb[0].mxu0
  %819 = vmatprep.mubr.f32.mxu0 %v253
  %820 = vmatmul.mubr.f32.gmra.mrb[0].mxu0 %v252
  %v821 = vpop.f32.mrb[0].mxu0
  %v822 = vadd.f32 %v678, %v821
  %v823 = vpop.f32.mrb[0].mxu0
  %824 = vdwg.mxu0
  %825 = vmatprep.subr.mxu0 0.0
  %826 = vmatpush1.msra.mxu0 %v669
  %827 = vmatprep.subr.mxu0 0.0
  %828 = vmatpush1.msra.mxu0 %v670
  %829 = vmatprep.subr.mxu0 0.0
  %830 = vmatpush1.msra.mxu0 %v671
  %831 = vmatprep.subr.mxu0 0.0
  %832 = vmatpush1.msra.mxu0 %v672
  %833 = vmatprep.subr.mxu0 0.0
  %834 = vmatpush1.msra.mxu0 0.0
  %835 = vmatprep.subr.mxu0 0.0
  %836 = vmatpush1.msra.mxu0 0.0
  %837 = vmatprep.subr.mxu0 0.0
  %838 = vmatpush1.msra.mxu0 0.0
  %839 = vmatprep.subr.mxu0 0.0
  %840 = vmatpush1.msra.mxu0 0.0
  %841 = vmatprep.subr.mxu0 0.0
  %842 = vmatpush1.msra.mxu0 0.0
  %843 = vmatprep.subr.mxu0 0.0
  %844 = vmatpush1.msra.mxu0 0.0
  %845 = vmatprep.subr.mxu0 0.0
  %846 = vmatpush1.msra.mxu0 0.0
  %847 = vmatprep.subr.mxu0 0.0
  %848 = vmatpush1.msra.mxu0 0.0
  %849 = vmatprep.subr.mxu0 0.0
  %850 = vmatpush1.msra.mxu0 0.0
  %851 = vmatprep.subr.mxu0 0.0
  %852 = vmatpush1.msra.mxu0 0.0
  %853 = vmatprep.subr.mxu0 0.0
  %854 = vmatpush1.msra.mxu0 0.0
  %855 = vmatprep.subr.mxu0 0.0
  %856 = vmatpush1.msra.mxu0 0.0
  %857 = vmatprep.subr.mxu0 0.0
  %858 = vmatpush1.msra.mxu0 0.0
  %859 = vmatprep.subr.mxu0 0.0
  %860 = vmatpush1.msra.mxu0 0.0
  %861 = vmatprep.subr.mxu0 0.0
  %862 = vmatpush1.msra.mxu0 0.0
  %863 = vmatprep.subr.mxu0 0.0
  %864 = vmatpush1.msra.mxu0 0.0
  %865 = vmatprep.subr.mxu0 0.0
  %866 = vmatpush1.msra.mxu0 0.0
  %867 = vmatprep.subr.mxu0 0.0
  %868 = vmatpush1.msra.mxu0 0.0
  %869 = vmatprep.subr.mxu0 0.0
  %870 = vmatpush1.msra.mxu0 0.0
  %871 = vmatprep.subr.mxu0 0.0
  %872 = vmatpush1.msra.mxu0 0.0
  %873 = vmatprep.subr.mxu0 0.0
  %874 = vmatpush1.msra.mxu0 0.0
  %875 = vmatprep.subr.mxu0 0.0
  %876 = vmatpush1.msra.mxu0 0.0
  %877 = vmatprep.subr.mxu0 0.0
  %878 = vmatpush1.msra.mxu0 0.0
  %879 = vmatprep.subr.mxu0 0.0
  %880 = vmatpush1.msra.mxu0 0.0
  %881 = vmatprep.subr.mxu0 0.0
  %882 = vmatpush1.msra.mxu0 0.0
  %883 = vmatprep.subr.mxu0 0.0
  %884 = vmatpush1.msra.mxu0 0.0
  %885 = vmatprep.subr.mxu0 0.0
  %886 = vmatpush1.msra.mxu0 0.0
  %887 = vmatprep.subr.mxu0 0.0
  %888 = vmatpush1.msra.mxu0 0.0
  %889 = vmatprep.mubr.f32.mxu0 0.0
  %890 = vmatmul.mubr.f32.gmra.mrb[0].mxu0 %v300
  %v891 = vpop.f32.mrb[0].mxu0
  %v892 = vadd.f32 %v747, %v891
  %v893 = vpop.f32.mrb[0].mxu0
  %894 = vmatprep.mubr.f32.mxu0 0.0
  %895 = vmatmul.mubr.f32.gmra.mrb[0].mxu0 %v303
  %v896 = vpop.f32.mrb[0].mxu0
  %v897 = vadd.f32 %v752, %v896
  %v898 = vpop.f32.mrb[0].mxu0
  %899 = vmatprep.mubr.f32.mxu0 0.0
  %900 = vmatmul.mubr.f32.gmra.mrb[0].mxu0 %v306
  %v901 = vpop.f32.mrb[0].mxu0
  %v902 = vadd.f32 %v757, %v901
  %v903 = vpop.f32.mrb[0].mxu0
  %904 = vmatprep.mubr.f32.mxu0 0.0
  %905 = vmatmul.mubr.f32.gmra.mrb[0].mxu0 %v309
  %v906 = vpop.f32.mrb[0].mxu0
  %v907 = vadd.f32 %v762, %v906
  %v908 = vpop.f32.mrb[0].mxu0
  %909 = vmatprep.mubr.f32.mxu0 0.0
  %910 = vmatmul.mubr.f32.gmra.mrb[0].mxu0 %v312
  %v911 = vpop.f32.mrb[0].mxu0
  %v912 = vadd.f32 %v767, %v911
  %v913 = vpop.f32.mrb[0].mxu0
  %914 = vmatprep.mubr.f32.mxu0 0.0
  %915 = vmatmul.mubr.f32.gmra.mrb[0].mxu0 %v315
  %v916 = vpop.f32.mrb[0].mxu0
  %v917 = vadd.f32 %v772, %v916
  %v918 = vpop.f32.mrb[0].mxu0
  %919 = vmatprep.mubr.f32.mxu0 0.0
  %920 = vmatmul.mubr.f32.gmra.mrb[0].mxu0 %v318
  %v921 = vpop.f32.mrb[0].mxu0
  %v922 = vadd.f32 %v777, %v921
  %v923 = vpop.f32.mrb[0].mxu0
  %924 = vmatprep.mubr.f32.mxu0 0.0
  %925 = vmatmul.mubr.f32.gmra.mrb[0].mxu0 %v321
  %v926 = vpop.f32.mrb[0].mxu0
  %v927 = vadd.f32 %v782, %v926
  %v928 = vpop.f32.mrb[0].mxu0
  %929 = vmatprep.mubr.f32.mxu0 0.0
  %930 = vmatmul.mubr.f32.gmra.mrb[0].mxu0 %v324
  %v931 = vpop.f32.mrb[0].mxu0
  %v932 = vadd.f32 %v787, %v931
  %v933 = vpop.f32.mrb[0].mxu0
  %934 = vmatprep.mubr.f32.mxu0 0.0
  %935 = vmatmul.mubr.f32.gmra.mrb[0].mxu0 %v327
  %v936 = vpop.f32.mrb[0].mxu0
  %v937 = vadd.f32 %v792, %v936
  %v938 = vpop.f32.mrb[0].mxu0
  %939 = vmatprep.mubr.f32.mxu0 0.0
  %940 = vmatmul.mubr.f32.gmra.mrb[0].mxu0 %v330
  %v941 = vpop.f32.mrb[0].mxu0
  %v942 = vadd.f32 %v797, %v941
  %v943 = vpop.f32.mrb[0].mxu0
  %944 = vmatprep.mubr.f32.mxu0 0.0
  %945 = vmatmul.mubr.f32.gmra.mrb[0].mxu0 %v333
  %v946 = vpop.f32.mrb[0].mxu0
  %v947 = vadd.f32 %v802, %v946
  %v948 = vpop.f32.mrb[0].mxu0
  %949 = vmatprep.mubr.f32.mxu0 0.0
  %950 = vmatmul.mubr.f32.gmra.mrb[0].mxu0 %v336
  %v951 = vpop.f32.mrb[0].mxu0
  %v952 = vadd.f32 %v807, %v951
  %v953 = vpop.f32.mrb[0].mxu0
  %954 = vmatprep.mubr.f32.mxu0 0.0
  %955 = vmatmul.mubr.f32.gmra.mrb[0].mxu0 %v339
  %v956 = vpop.f32.mrb[0].mxu0
  %v957 = vadd.f32 %v812, %v956
  %v958 = vpop.f32.mrb[0].mxu0
  %959 = vmatprep.mubr.f32.mxu0 0.0
  %960 = vmatmul.mubr.f32.gmra.mrb[0].mxu0 %v342
  %v961 = vpop.f32.mrb[0].mxu0
  %v962 = vadd.f32 %v817, %v961
  %v963 = vpop.f32.mrb[0].mxu0
  %964 = vmatprep.mubr.f32.mxu0 0.0
  %965 = vmatmul.mubr.f32.gmra.mrb[0].mxu0 %v345
  %v966 = vpop.f32.mrb[0].mxu0
  %v967 = vadd.f32 %v822, %v966
  %v968 = vpop.f32.mrb[0].mxu0
  %969 = vdwg.mxu0
  %v970 = vadd.f32 %v892, 2.0
  %v971 = vadd.f32 %v897, 2.0
  %v972 = vadd.f32 %v902, 2.0
  %v973 = vadd.f32 %v907, 2.0
  %v974 = vadd.f32 %v912, 2.0
  %v975 = vadd.f32 %v917, 2.0
  %v976 = vadd.f32 %v922, 2.0
  %v977 = vadd.f32 %v927, 2.0
  %v978 = vadd.f32 %v932, 2.0
  %v979 = vadd.f32 %v937, 2.0
  %v980 = vadd.f32 %v942, 2.0
  %v981 = vadd.f32 %v947, 2.0
  %v982 = vadd.f32 %v952, 2.0
  %v983 = vadd.f32 %v957, 2.0
  %v984 = vadd.f32 %v962, 2.0
  %v985 = vadd.f32 %v967, 2.0
  %v986 = vsub.f32 0.0, %v970
  %v987 = vsub.f32 0.0, %v971
  %v988 = vsub.f32 0.0, %v972
  %v989 = vsub.f32 0.0, %v973
  %v990 = vsub.f32 0.0, %v974
  %v991 = vsub.f32 0.0, %v975
  %v992 = vsub.f32 0.0, %v976
  %v993 = vsub.f32 0.0, %v977
  %v994 = vsub.f32 0.0, %v978
  %v995 = vsub.f32 0.0, %v979
  %v996 = vsub.f32 0.0, %v980
  %v997 = vsub.f32 0.0, %v981
  %v998 = vsub.f32 0.0, %v982
  %v999 = vsub.f32 0.0, %v983
  %v1000 = vsub.f32 0.0, %v984
  %v1001 = vsub.f32 0.0, %v985
  %v1002 = vmul.f32 %v986, 1.442695
  %v1003 = vpow.pop %v1002
  %v1004 = vmul.f32 %v987, 1.442695
  %v1005 = vpow.pop %v1004
  %v1006 = vmul.f32 %v988, 1.442695
  %v1007 = vpow.pop %v1006
  %v1008 = vmul.f32 %v989, 1.442695
  %v1009 = vpow.pop %v1008
  %v1010 = vmul.f32 %v990, 1.442695
  %v1011 = vpow.pop %v1010
  %v1012 = vmul.f32 %v991, 1.442695
  %v1013 = vpow.pop %v1012
  %v1014 = vmul.f32 %v992, 1.442695
  %v1015 = vpow.pop %v1014
  %v1016 = vmul.f32 %v993, 1.442695
  %v1017 = vpow.pop %v1016
  %v1018 = vmul.f32 %v994, 1.442695
  %v1019 = vpow.pop %v1018
  %v1020 = vmul.f32 %v995, 1.442695
  %v1021 = vpow.pop %v1020
  %v1022 = vmul.f32 %v996, 1.442695
  %v1023 = vpow.pop %v1022
  %v1024 = vmul.f32 %v997, 1.442695
  %v1025 = vpow.pop %v1024
  %v1026 = vmul.f32 %v998, 1.442695
  %v1027 = vpow.pop %v1026
  %v1028 = vmul.f32 %v999, 1.442695
  %v1029 = vpow.pop %v1028
  %v1030 = vmul.f32 %v1000, 1.442695
  %v1031 = vpow.pop %v1030
  %v1032 = vmul.f32 %v1001, 1.442695
  %v1033 = vpow.pop %v1032
  %v1034 = vadd.f32 %v1003, 1.0
  %v1035 = vadd.f32 %v1005, 1.0
  %v1036 = vadd.f32 %v1007, 1.0
  %v1037 = vadd.f32 %v1009, 1.0
  %v1038 = vadd.f32 %v1011, 1.0
  %v1039 = vadd.f32 %v1013, 1.0
  %v1040 = vadd.f32 %v1015, 1.0
  %v1041 = vadd.f32 %v1017, 1.0
  %v1042 = vadd.f32 %v1019, 1.0
  %v1043 = vadd.f32 %v1021, 1.0
  %v1044 = vadd.f32 %v1023, 1.0
  %v1045 = vadd.f32 %v1025, 1.0
  %v1046 = vadd.f32 %v1027, 1.0
  %v1047 = vadd.f32 %v1029, 1.0
  %v1048 = vadd.f32 %v1031, 1.0
  %v1049 = vadd.f32 %v1033, 1.0
  %v1050 = vrcp.pop %v1034
  %v1051 = vmul.f32 1.0, %v1050
  %v1052 = vrcp.pop %v1035
  %v1053 = vmul.f32 1.0, %v1052
  %v1054 = vrcp.pop %v1036
  %v1055 = vmul.f32 1.0, %v1054
  %v1056 = vrcp.pop %v1037
  %v1057 = vmul.f32 1.0, %v1056
  %v1058 = vrcp.pop %v1038
  %v1059 = vmul.f32 1.0, %v1058
  %v1060 = vrcp.pop %v1039
  %v1061 = vmul.f32 1.0, %v1060
  %v1062 = vrcp.pop %v1040
  %v1063 = vmul.f32 1.0, %v1062
  %v1064 = vrcp.pop %v1041
  %v1065 = vmul.f32 1.0, %v1064
  %v1066 = vrcp.pop %v1042
  %v1067 = vmul.f32 1.0, %v1066
  %v1068 = vrcp.pop %v1043
  %v1069 = vmul.f32 1.0, %v1068
  %v1070 = vrcp.pop %v1044
  %v1071 = vmul.f32 1.0, %v1070
  %v1072 = vrcp.pop %v1045
  %v1073 = vmul.f32 1.0, %v1072
  %v1074 = vrcp.pop %v1046
  %v1075 = vmul.f32 1.0, %v1074
  %v1076 = vrcp.pop %v1047
  %v1077 = vmul.f32 1.0, %v1076
  %v1078 = vrcp.pop %v1048
  %v1079 = vmul.f32 1.0, %v1078
  %v1080 = vrcp.pop %v1049
  %v1081 = vmul.f32 1.0, %v1080
  %v1082 = vld [vmem:[%s1] sm:$0xff]
  %v1083 = vld [vmem:[%s1 + $0x8] sm:$0xff]
  %v1084 = vld [vmem:[%s1 + $0x10] sm:$0xff]
  %v1085 = vld [vmem:[%s1 + $0x18] sm:$0xff]
  %v1086 = vld [vmem:[%s1 + $0x20] sm:$0xff]
  %v1087 = vld [vmem:[%s1 + $0x28] sm:$0xff]
  %v1088 = vld [vmem:[%s1 + $0x30] sm:$0xff]
  %v1089 = vld [vmem:[%s1 + $0x38] sm:$0xff]
  %v1090 = vld [vmem:[%s1 + $0x40] sm:$0xff]
  %v1091 = vld [vmem:[%s1 + $0x48] sm:$0xff]
  %v1092 = vld [vmem:[%s1 + $0x50] sm:$0xff]
  %v1093 = vld [vmem:[%s1 + $0x58] sm:$0xff]
  %v1094 = vld [vmem:[%s1 + $0x60] sm:$0xff]
  %v1095 = vld [vmem:[%s1 + $0x68] sm:$0xff]
  %v1096 = vld [vmem:[%s1 + $0x70] sm:$0xff]
  %v1097 = vld [vmem:[%s1 + $0x78] sm:$0xff]
  %v1098 = vmul.f32 %v1051, %v1082
  %v1099 = vmul.f32 %v1053, %v1083
  %v1100 = vmul.f32 %v1055, %v1084
  %v1101 = vmul.f32 %v1057, %v1085
  %v1102 = vmul.f32 %v1059, %v1086
  %v1103 = vmul.f32 %v1061, %v1087
  %v1104 = vmul.f32 %v1063, %v1088
  %v1105 = vmul.f32 %v1065, %v1089
  %v1106 = vmul.f32 %v1067, %v1090
  %v1107 = vmul.f32 %v1069, %v1091
  %v1108 = vmul.f32 %v1071, %v1092
  %v1109 = vmul.f32 %v1073, %v1093
  %v1110 = vmul.f32 %v1075, %v1094
  %v1111 = vmul.f32 %v1077, %v1095
  %v1112 = vmul.f32 %v1079, %v1096
  %v1113 = vmul.f32 %v1081, %v1097
  %v1114 = vadd.f32 %v1098, %v559
  %v1115 = vadd.f32 %v1099, %v564
  %v1116 = vadd.f32 %v1100, %v569
  %v1117 = vadd.f32 %v1101, %v574
  %v1118 = vadd.f32 %v1102, %v579
  %v1119 = vadd.f32 %v1103, %v584
  %v1120 = vadd.f32 %v1104, %v589
  %v1121 = vadd.f32 %v1105, %v594
  %v1122 = vadd.f32 %v1106, %v599
  %v1123 = vadd.f32 %v1107, %v604
  %v1124 = vadd.f32 %v1108, %v609
  %v1125 = vadd.f32 %v1109, %v614
  %v1126 = vadd.f32 %v1110, %v619
  %v1127 = vadd.f32 %v1111, %v624
  %v1128 = vadd.f32 %v1112, %v629
  %v1129 = vadd.f32 %v1113, %v634
  %v1130 = vmax.f32 %v1114, -1e+09
  %v1131 = vmax.f32 %v1115, -1e+09
  %v1132 = vmax.f32 %v1116, -1e+09
  %v1133 = vmax.f32 %v1117, -1e+09
  %v1134 = vmax.f32 %v1118, -1e+09
  %v1135 = vmax.f32 %v1119, -1e+09
  %v1136 = vmax.f32 %v1120, -1e+09
  %v1137 = vmax.f32 %v1121, -1e+09
  %v1138 = vmax.f32 %v1122, -1e+09
  %v1139 = vmax.f32 %v1123, -1e+09
  %v1140 = vmax.f32 %v1124, -1e+09
  %v1141 = vmax.f32 %v1125, -1e+09
  %v1142 = vmax.f32 %v1126, -1e+09
  %v1143 = vmax.f32 %v1127, -1e+09
  %v1144 = vmax.f32 %v1128, -1e+09
  %v1145 = vmax.f32 %v1129, -1e+09
  %v1146 = vmin.f32 %v1130, 1e+09
  %v1147 = vmin.f32 %v1131, 1e+09
  %v1148 = vmin.f32 %v1132, 1e+09
  %v1149 = vmin.f32 %v1133, 1e+09
  %v1150 = vmin.f32 %v1134, 1e+09
  %v1151 = vmin.f32 %v1135, 1e+09
  %v1152 = vmin.f32 %v1136, 1e+09
  %v1153 = vmin.f32 %v1137, 1e+09
  %v1154 = vmin.f32 %v1138, 1e+09
  %v1155 = vmin.f32 %v1139, 1e+09
  %v1156 = vmin.f32 %v1140, 1e+09
  %v1157 = vmin.f32 %v1141, 1e+09
  %v1158 = vmin.f32 %v1142, 1e+09
  %v1159 = vmin.f32 %v1143, 1e+09
  %v1160 = vmin.f32 %v1144, 1e+09
  %v1161 = vmin.f32 %v1145, 1e+09
  %vm1162 = vcmask 64512
  %v1163 = vsel %vm1162, %v1146, %v1082
  %v1164 = vsel %vm1162, %v1147, %v1083
  %v1165 = vsel %vm1162, %v1148, %v1084
  %v1166 = vsel %vm1162, %v1149, %v1085
  %v1167 = vsel %vm1162, %v1150, %v1086
  %v1168 = vsel %vm1162, %v1151, %v1087
  %v1169 = vsel %vm1162, %v1152, %v1088
  %v1170 = vsel %vm1162, %v1153, %v1089
  %v1171 = vsel %vm1162, %v1154, %v1090
  %v1172 = vsel %vm1162, %v1155, %v1091
  %v1173 = vsel %vm1162, %v1156, %v1092
  %v1174 = vsel %vm1162, %v1157, %v1093
  %v1175 = vsel %vm1162, %v1158, %v1094
  %v1176 = vsel %vm1162, %v1159, %v1095
  %v1177 = vsel %vm1162, %v1160, %v1096
  %v1178 = vsel %vm1162, %v1161, %v1097
  %vm1179 = vcmask 130048
  %1180 = vst.msk [vmem:[%s8] sm:$0xff] %vm1179, %v1163
  %1181 = vst.msk [vmem:[%s8 + $0x8] sm:$0xff] %vm1179, %v1164
  %1182 = vst.msk [vmem:[%s8 + $0x10] sm:$0xff] %vm1179, %v1165
  %1183 = vst.msk [vmem:[%s8 + $0x18] sm:$0xff] %vm1179, %v1166
  %1184 = vst.msk [vmem:[%s8 + $0x20] sm:$0xff] %vm1179, %v1167
  %1185 = vst.msk [vmem:[%s8 + $0x28] sm:$0xff] %vm1179, %v1168
  %1186 = vst.msk [vmem:[%s8 + $0x30] sm:$0xff] %vm1179, %v1169
  %1187 = vst.msk [vmem:[%s8 + $0x38] sm:$0xff] %vm1179, %v1170
  %1188 = vst.msk [vmem:[%s8 + $0x40] sm:$0xff] %vm1179, %v1171
  %1189 = vst.msk [vmem:[%s8 + $0x48] sm:$0xff] %vm1179, %v1172
  %1190 = vst.msk [vmem:[%s8 + $0x50] sm:$0xff] %vm1179, %v1173
  %1191 = vst.msk [vmem:[%s8 + $0x58] sm:$0xff] %vm1179, %v1174
  %1192 = vst.msk [vmem:[%s8 + $0x60] sm:$0xff] %vm1179, %v1175
  %1193 = vst.msk [vmem:[%s8 + $0x68] sm:$0xff] %vm1179, %v1176
  %1194 = vst.msk [vmem:[%s8 + $0x70] sm:$0xff] %vm1179, %v1177
  %1195 = vst.msk [vmem:[%s8 + $0x78] sm:$0xff] %vm1179, %v1178
  // Predicated region
  $region34: #{glow_forward.24} parent=0 // pred_check
    _
  $region35: #{glow_forward.24} parent=0 // pred_check_branch
    %1197 = sbr.rel (0) target = $region37
  $region36: #{glow_forward.24} parent=0 // pred_region
    _
  $region37: #{glow_forward.24} parent=0 // pred_fallthru
    _
  // Predicated region
  $region38: #{glow_forward.24} parent=0 // pred_check
    _
  $region39: #{glow_forward.24} parent=0 // pred_check_branch
    %1199 = sbr.rel (0) target = $region41
  $region40: #{glow_forward.24} parent=0 // pred_region
    _
  $region41: #{glow_forward.24} parent=0 // pred_fallthru
    _

// kernel: glow_forward.31
$region0: #{glow_forward.31}
  #allocation0 [shape = 'u32[]', space=smem, size = 0x4, offset = 0x4, fixed_abs, tag = 'smem constant byte address 0x4 - core index']
  #allocation1 [shape = 'u32[144,128]{1,0:T(1,128)}', space=vmem, size = 0x12000, scoped, tag = 'internal scratch']
  %s0 = inlined_call_operand.vmem [shape: f32[32,32], index: 0, kind: input, shape index: {}]
  %s1 = inlined_call_operand.vmem [shape: f32[32,32], index: 1, kind: input, shape index: {}]
  %s2 = inlined_call_operand.vmem [shape: f32[1,32], index: 2, kind: input, shape index: {}]
  %s3 = inlined_call_operand.vmem [shape: f32[32,32], index: 3, kind: output, shape index: {}]
  %s4 = sld [smem:[#allocation0]]
  $region22: #{glow_forward.31} parent=0
    _
  %s6 = ssub.s32 1, %s4
  %s7 = scalar_select 0, %s6, %s4
  // Predicated region
  $region2: #{glow_forward.31} parent=0 // pred_check
    _
  $region3: #{glow_forward.31} parent=0 // pred_check_branch
    %9 = sbr.rel (0) target = $region5
  $region4: #{glow_forward.31} parent=0 // pred_region
    _
  $region5: #{glow_forward.31} parent=0 // pred_fallthru
    _
  // Predicated region
  $region6: #{glow_forward.31} parent=0 // pred_check
    _
  $region7: #{glow_forward.31} parent=0 // pred_check_branch
    %11 = sbr.rel (0) target = $region9
  $region8: #{glow_forward.31} parent=0 // pred_region
    _
  $region9: #{glow_forward.31} parent=0 // pred_fallthru
    _
  // Predicated region
  $region10: #{glow_forward.31} parent=0 // pred_check
    _
  $region11: #{glow_forward.31} parent=0 // pred_check_branch
    %13 = sbr.rel (0) target = $region13
  $region12: #{glow_forward.31} parent=0 // pred_region
    _
  $region13: #{glow_forward.31} parent=0 // pred_fallthru
    _
  %v14 = vld [vmem:[%s0] sm:$0xff]
  %v15 = vld [vmem:[%s0 + $0x8] sm:$0xff]
  %v16 = vld [vmem:[%s0 + $0x10] sm:$0xff]
  %v17 = vld [vmem:[%s0 + $0x18] sm:$0xff]
  %v18 = vld [vmem:[%s1] sm:$0xff]
  %v19 = vld [vmem:[%s1 + $0x8] sm:$0xff]
  %v20 = vld [vmem:[%s1 + $0x10] sm:$0xff]
  %v21 = vld [vmem:[%s1 + $0x18] sm:$0xff]
  %v22 = vld [vmem:[%s2] sm:$0x1]
  %v24 = vlaneseq
  %v25 = vshrl.u32 %v24, 7
  %v26 = vsub.s32 0, %v25
  %v27 = vrot.slane %v22, %v26
  %vm29 = vcmask 261120
  %v31 = vsel %vm29, %v14, 0
  %v34 = vsel %vm29, %v15, 0
  %v37 = vsel %vm29, %v16, 0
  %v40 = vsel %vm29, %v17, 0
  %42 = vmatprep.subr.mxu0 0.0
  %43 = vmatpush1.msra.mxu0 %v18
  %44 = vmatprep.subr.mxu0 0.0
  %45 = vmatpush1.msra.mxu0 %v19
  %46 = vmatprep.subr.mxu0 0.0
  %47 = vmatpush1.msra.mxu0 %v20
  %48 = vmatprep.subr.mxu0 0.0
  %49 = vmatpush1.msra.mxu0 %v21
  %50 = vmatprep.subr.mxu0 0.0
  %51 = vmatpush1.msra.mxu0 0.0
  %52 = vmatprep.subr.mxu0 0.0
  %53 = vmatpush1.msra.mxu0 0.0
  %54 = vmatprep.subr.mxu0 0.0
  %55 = vmatpush1.msra.mxu0 0.0
  %56 = vmatprep.subr.mxu0 0.0
  %57 = vmatpush1.msra.mxu0 0.0
  %58 = vmatprep.subr.mxu0 0.0
  %59 = vmatpush1.msra.mxu0 0.0
  %60 = vmatprep.subr.mxu0 0.0
  %61 = vmatpush1.msra.mxu0 0.0
  %62 = vmatprep.subr.mxu0 0.0
  %63 = vmatpush1.msra.mxu0 0.0
  %64 = vmatprep.subr.mxu0 0.0
  %65 = vmatpush1.msra.mxu0 0.0
  %66 = vmatprep.subr.mxu0 0.0
  %67 = vmatpush1.msra.mxu0 0.0
  %68 = vmatprep.subr.mxu0 0.0
  %69 = vmatpush1.msra.mxu0 0.0
  %70 = vmatprep.subr.mxu0 0.0
  %71 = vmatpush1.msra.mxu0 0.0
  %72 = vmatprep.subr.mxu0 0.0
  %73 = vmatpush1.msra.mxu0 0.0
  %74 = vmatprep.subr.mxu0 0.0
  %75 = vmatpush1.msra.mxu0 0.0
  %76 = vmatprep.subr.mxu0 0.0
  %77 = vmatpush1.msra.mxu0 0.0
  %78 = vmatprep.subr.mxu0 0.0
  %79 = vmatpush1.msra.mxu0 0.0
  %80 = vmatprep.subr.mxu0 0.0
  %81 = vmatpush1.msra.mxu0 0.0
  %82 = vmatprep.subr.mxu0 0.0
  %83 = vmatpush1.msra.mxu0 0.0
  %84 = vmatprep.subr.mxu0 0.0
  %85 = vmatpush1.msra.mxu0 0.0
  %86 = vmatprep.subr.mxu0 0.0
  %87 = vmatpush1.msra.mxu0 0.0
  %88 = vmatprep.subr.mxu0 0.0
  %89 = vmatpush1.msra.mxu0 0.0
  %90 = vmatprep.subr.mxu0 0.0
  %91 = vmatpush1.msra.mxu0 0.0
  %92 = vmatprep.subr.mxu0 0.0
  %93 = vmatpush1.msra.mxu0 0.0
  %94 = vmatprep.subr.mxu0 0.0
  %95 = vmatpush1.msra.mxu0 0.0
  %96 = vmatprep.subr.mxu0 0.0
  %97 = vmatpush1.msra.mxu0 0.0
  %98 = vmatprep.subr.mxu0 0.0
  %99 = vmatpush1.msra.mxu0 0.0
  %100 = vmatprep.subr.mxu0 0.0
  %101 = vmatpush1.msra.mxu0 0.0
  %102 = vmatprep.subr.mxu0 0.0
  %103 = vmatpush1.msra.mxu0 0.0
  %104 = vmatprep.subr.mxu0 0.0
  %105 = vmatpush1.msra.mxu0 0.0
  %106 = vmatprep.mubr.f32.mxu0 0.0
  %107 = vmatmul.mubr.f32.gmra.mrb[0].mxu0 %v31
  %v108 = vpop.f32.mrb[0].mxu0
  %v109 = vadd.f32 %v27, %v108
  %v110 = vpop.f32.mrb[0].mxu0
  %111 = vmatprep.mubr.f32.mxu0 0.0
  %112 = vmatmul.mubr.f32.gmra.mrb[0].mxu0 %v34
  %v113 = vpop.f32.mrb[0].mxu0
  %v114 = vadd.f32 %v27, %v113
  %v115 = vpop.f32.mrb[0].mxu0
  %116 = vmatprep.mubr.f32.mxu0 0.0
  %117 = vmatmul.mubr.f32.gmra.mrb[0].mxu0 %v37
  %v118 = vpop.f32.mrb[0].mxu0
  %v119 = vadd.f32 %v27, %v118
  %v120 = vpop.f32.mrb[0].mxu0
  %121 = vmatprep.mubr.f32.mxu0 0.0
  %122 = vmatmul.mubr.f32.gmra.mrb[0].mxu0 %v40
  %v123 = vpop.f32.mrb[0].mxu0
  %v124 = vadd.f32 %v27, %v123
  %v125 = vpop.f32.mrb[0].mxu0
  %126 = vdwg.mxu0
  %127 = vst.msk [vmem:[%s3] sm:$0xff] %vm29, %v109
  %128 = vst.msk [vmem:[%s3 + $0x8] sm:$0xff] %vm29, %v114
  %129 = vst.msk [vmem:[%s3 + $0x10] sm:$0xff] %vm29, %v119
  %130 = vst.msk [vmem:[%s3 + $0x18] sm:$0xff] %vm29, %v124
  // Predicated region
  $region14: #{glow_forward.31} parent=0 // pred_check
    _
  $region15: #{glow_forward.31} parent=0 // pred_check_branch
    %132 = sbr.rel (0) target = $region17
  $region16: #{glow_forward.31} parent=0 // pred_region
    _
  $region17: #{glow_forward.31} parent=0 // pred_fallthru
    _
  // Predicated region
  $region18: #{glow_forward.31} parent=0 // pred_check
    _
  $region19: #{glow_forward.31} parent=0 // pred_check_branch
    %134 = sbr.rel (0) target = $region21
  $region20: #{glow_forward.31} parent=0 // pred_region
    _
  $region21: #{glow_forward.31} parent=0 // pred_fallthru
    _

// kernel: glow_forward.32
$region0: #{glow_forward.32}
  #allocation0 [shape = 'u32[]', space=smem, size = 0x4, offset = 0x4, fixed_abs, tag = 'smem constant byte address 0x4 - core index']
  #allocation1 [shape = 'u32[144,128]{1,0:T(1,128)}', space=vmem, size = 0x12000, scoped, tag = 'internal scratch']
  %s0 = inlined_call_operand.vmem [shape: f32[32,144], index: 0, kind: input, shape index: {}]
  %s1 = inlined_call_operand.vmem [shape: f32[144,32], index: 1, kind: input, shape index: {}]
  %s2 = inlined_call_operand.vmem [shape: f32[32,32], index: 2, kind: output, shape index: {0}]
  %s3 = inlined_call_operand.vmem [shape: f32[2,32], index: 3, kind: output, shape index: {1}]
  %4 = xla_tuple %s2, %s3
  %s5 = sld [smem:[#allocation0]]
  $region30: #{glow_forward.32} parent=0
    _
  %s7 = ssub.s32 1, %s5
  %s8 = scalar_select 0, %s7, %s5
  // Predicated region
  $region2: #{glow_forward.32} parent=0 // pred_check
    _
  $region3: #{glow_forward.32} parent=0 // pred_check_branch
    %10 = sbr.rel (0) target = $region5
  $region4: #{glow_forward.32} parent=0 // pred_region
    _
  $region5: #{glow_forward.32} parent=0 // pred_fallthru
    _
  // Predicated region
  $region6: #{glow_forward.32} parent=0 // pred_check
    _
  $region7: #{glow_forward.32} parent=0 // pred_check_branch
    %12 = sbr.rel (0) target = $region9
  $region8: #{glow_forward.32} parent=0 // pred_region
    _
  $region9: #{glow_forward.32} parent=0 // pred_fallthru
    _
  %p13 = scmp.eq.s32.totalorder 0, 0
  // Predicated region
  $region10: #{glow_forward.32} parent=0 // pred_check
    %p14 = pneg %p13
  $region11: #{glow_forward.32} parent=0 // pred_check_branch
    %16 = sbr.rel (%p14) target = $region13
  $region12: #{glow_forward.32} parent=0 // pred_region
    %vm17 = vcmask 254976
    %18 = vst.msk [vmem:[%s3] sm:$0x3] %vm17, 0.0
  $region13: #{glow_forward.32} parent=0 // pred_fallthru
    _
  %v19 = vld [vmem:[%s0] sm:$0xff]
  %v20 = vld [vmem:[%s0 + $0x8] sm:$0xff]
  %v21 = vld [vmem:[%s0 + $0x10] sm:$0xff]
  %v22 = vld [vmem:[%s0 + $0x18] sm:$0xff]
  %v23 = vld [vmem:[%s0 + $0x20] sm:$0xff]
  %v24 = vld [vmem:[%s0 + $0x28] sm:$0xff]
  %v25 = vld [vmem:[%s0 + $0x30] sm:$0xff]
  %v26 = vld [vmem:[%s0 + $0x38] sm:$0xff]
  %v27 = vld [vmem:[%s1] sm:$0xff]
  %v28 = vld [vmem:[%s1 + $0x8] sm:$0xff]
  %v29 = vld [vmem:[%s1 + $0x10] sm:$0xff]
  %v30 = vld [vmem:[%s1 + $0x18] sm:$0xff]
  %v31 = vld [vmem:[%s1 + $0x20] sm:$0xff]
  %v32 = vld [vmem:[%s1 + $0x28] sm:$0xff]
  %v33 = vld [vmem:[%s1 + $0x30] sm:$0xff]
  %v34 = vld [vmem:[%s1 + $0x38] sm:$0xff]
  %v35 = vld [vmem:[%s1 + $0x40] sm:$0xff]
  %v36 = vld [vmem:[%s1 + $0x48] sm:$0xff]
  %v37 = vld [vmem:[%s1 + $0x50] sm:$0xff]
  %v38 = vld [vmem:[%s1 + $0x58] sm:$0xff]
  %v39 = vld [vmem:[%s1 + $0x60] sm:$0xff]
  %v40 = vld [vmem:[%s1 + $0x68] sm:$0xff]
  %v41 = vld [vmem:[%s1 + $0x70] sm:$0xff]
  %v42 = vld [vmem:[%s1 + $0x78] sm:$0xff]
  %v43 = vld [vmem:[%s1 + $0x80] sm:$0xff]
  %v44 = vld [vmem:[%s1 + $0x88] sm:$0xff]
  %vm45 = vcmask 130048
  %v47 = vsel %vm45, %v20, 0
  %v50 = vsel %vm45, %v22, 0
  %v53 = vsel %vm45, %v24, 0
  %v56 = vsel %vm45, %v26, 0
  %58 = vmatprep.subr.mxu0 0.0
  %59 = vmatpush1.msra.mxu0 %v27
  %60 = vmatprep.subr.mxu0 0.0
  %61 = vmatpush1.msra.mxu0 %v28
  %62 = vmatprep.subr.mxu0 0.0
  %63 = vmatpush1.msra.mxu0 %v29
  %64 = vmatprep.subr.mxu0 0.0
  %65 = vmatpush1.msra.mxu0 %v30
  %66 = vmatprep.subr.mxu0 0.0
  %67 = vmatpush1.msra.mxu0 %v31
  %68 = vmatprep.subr.mxu0 0.0
  %69 = vmatpush1.msra.mxu0 %v32
  %70 = vmatprep.subr.mxu0 0.0
  %71 = vmatpush1.msra.mxu0 %v33
  %72 = vmatprep.subr.mxu0 0.0
  %73 = vmatpush1.msra.mxu0 %v34
  %74 = vmatprep.subr.mxu0 0.0
  %75 = vmatpush1.msra.mxu0 %v35
  %76 = vmatprep.subr.mxu0 0.0
  %77 = vmatpush1.msra.mxu0 %v36
  %78 = vmatprep.subr.mxu0 0.0
  %79 = vmatpush1.msra.mxu0 %v37
  %80 = vmatprep.subr.mxu0 0.0
  %81 = vmatpush1.msra.mxu0 %v38
  %82 = vmatprep.subr.mxu0 0.0
  %83 = vmatpush1.msra.mxu0 %v39
  %84 = vmatprep.subr.mxu0 0.0
  %85 = vmatpush1.msra.mxu0 %v40
  %86 = vmatprep.subr.mxu0 0.0
  %87 = vmatpush1.msra.mxu0 %v41
  %88 = vmatprep.subr.mxu0 0.0
  %89 = vmatpush1.msra.mxu0 %v42
  %90 = vmatprep.subr.mxu0 0.0
  %91 = vmatpush1.msra.mxu0 %v43
  %92 = vmatprep.subr.mxu0 0.0
  %93 = vmatpush1.msra.mxu0 %v44
  %94 = vmatprep.subr.mxu0 0.0
  %95 = vmatpush1.msra.mxu0 0.0
  %96 = vmatprep.subr.mxu0 0.0
  %97 = vmatpush1.msra.mxu0 0.0
  %98 = vmatprep.subr.mxu0 0.0
  %99 = vmatpush1.msra.mxu0 0.0
  %100 = vmatprep.subr.mxu0 0.0
  %101 = vmatpush1.msra.mxu0 0.0
  %102 = vmatprep.subr.mxu0 0.0
  %103 = vmatpush1.msra.mxu0 0.0
  %104 = vmatprep.subr.mxu0 0.0
  %105 = vmatpush1.msra.mxu0 0.0
  %106 = vmatprep.subr.mxu0 0.0
  %107 = vmatpush1.msra.mxu0 0.0
  %108 = vmatprep.subr.mxu0 0.0
  %109 = vmatpush1.msra.mxu0 0.0
  %110 = vmatprep.subr.mxu0 0.0
  %111 = vmatpush1.msra.mxu0 0.0
  %112 = vmatprep.subr.mxu0 0.0
  %113 = vmatpush1.msra.mxu0 0.0
  %114 = vmatprep.subr.mxu0 0.0
  %115 = vmatpush1.msra.mxu0 0.0
  %116 = vmatprep.subr.mxu0 0.0
  %117 = vmatpush1.msra.mxu0 0.0
  %118 = vmatprep.subr.mxu0 0.0
  %119 = vmatpush1.msra.mxu0 0.0
  %120 = vmatprep.subr.mxu0 0.0
  %121 = vmatpush1.msra.mxu0 0.0
  %122 = vmatprep.mubr.f32.mxu0 %v47
  %123 = vmatmul.mubr.f32.gmra.mrb[0].mxu0 %v19
  %v124 = vpop.f32.mrb[0].mxu0
  %v125 = vadd.f32 0.0, %v124
  %v126 = vpop.f32.mrb[0].mxu0
  %127 = vmatprep.mubr.f32.mxu0 %v50
  %128 = vmatmul.mubr.f32.gmra.mrb[0].mxu0 %v21
  %v129 = vpop.f32.mrb[0].mxu0
  %v130 = vadd.f32 0.0, %v129
  %v131 = vpop.f32.mrb[0].mxu0
  %132 = vmatprep.mubr.f32.mxu0 %v53
  %133 = vmatmul.mubr.f32.gmra.mrb[0].mxu0 %v23
  %v134 = vpop.f32.mrb[0].mxu0
  %v135 = vadd.f32 0.0, %v134
  %v136 = vpop.f32.mrb[0].mxu0
  %137 = vmatprep.mubr.f32.mxu0 %v56
  %138 = vmatmul.mubr.f32.gmra.mrb[0].mxu0 %v25
  %v139 = vpop.f32.mrb[0].mxu0
  %v140 = vadd.f32 0.0, %v139
  %v141 = vpop.f32.mrb[0].mxu0
  %142 = vdwg.mxu0
  %vm143 = vcmask 261120
  %144 = vst.msk [vmem:[%s2] sm:$0xff] %vm143, %v125
  %145 = vst.msk [vmem:[%s2 + $0x8] sm:$0xff] %vm143, %v130
  %146 = vst.msk [vmem:[%s2 + $0x10] sm:$0xff] %vm143, %v135
  %147 = vst.msk [vmem:[%s2 + $0x18] sm:$0xff] %vm143, %v140
  %v148 = vsel %vm143, %v125, 0.0
  %v149 = vsel %vm143, %v130, 0.0
  %v150 = vadd.f32 %v148, %v149
  %v151 = vsel %vm143, %v135, 0.0
  %v152 = vadd.f32 %v150, %v151
  %v153 = vsel %vm143, %v140, 0.0
  %v154 = vadd.f32 %v152, %v153
  %v155 = vrot.slane %v154, 4
  %v156 = vadd.f32 %v154, %v155
  %v157 = vrot.slane %v156, 2
  %v158 = vadd.f32 %v156, %v157
  %v159 = vrot.slane %v158, 1
  %v160 = vadd.f32 %v158, %v159
  %v161 = vmul.f32 %v125, %v125
  %v162 = vmul.f32 %v130, %v130
  %v163 = vmul.f32 %v135, %v135
  %v164 = vmul.f32 %v140, %v140
  %v165 = vsel %vm143, %v161, 0.0
  %v166 = vsel %vm143, %v162, 0.0
  %v167 = vadd.f32 %v165, %v166
  %v168 = vsel %vm143, %v163, 0.0
  %v169 = vadd.f32 %v167, %v168
  %v170 = vsel %vm143, %v164, 0.0
  %v171 = vadd.f32 %v169, %v170
  %v172 = vrot.slane %v171, 4
  %v173 = vadd.f32 %v171, %v172
  %v174 = vrot.slane %v173, 2
  %v175 = vadd.f32 %v173, %v174
  %v176 = vrot.slane %v175, 1
  %v177 = vadd.f32 %v175, %v176
  %v178 = vld [vmem:[%s3] sm:$0x3]
  %vm179 = vcmask 1040384
  %v180 = vsel %vm179, %v160, %v177
  %v181 = vadd.f32 %v178, %v180
  %vm182 = vcmask 254976
  %183 = vst.msk [vmem:[%s3] sm:$0x3] %vm182, %v181
  // Predicated region
  $region14: #{glow_forward.32} parent=0 // pred_check
    _
  $region15: #{glow_forward.32} parent=0 // pred_check_branch
    %185 = sbr.rel (0) target = $region17
  $region16: #{glow_forward.32} parent=0 // pred_region
    _
  $region17: #{glow_forward.32} parent=0 // pred_fallthru
    _
  // Predicated region
  $region18: #{glow_forward.32} parent=0 // pred_check
    _
  $region19: #{glow_forward.32} parent=0 // pred_check_branch
    %187 = sbr.rel (0) target = $region21
  $region20: #{glow_forward.32} parent=0 // pred_region
    _
  $region21: #{glow_forward.32} parent=0 // pred_fallthru
    _
  // Predicated region
  $region22: #{glow_forward.32} parent=0 // pred_check
    _
  $region23: #{glow_forward.32} parent=0 // pred_check_branch
    %189 = sbr.rel (0) target = $region25
  $region24: #{glow_forward.32} parent=0 // pred_region
    _
  $region25: #{glow_forward.32} parent=0 // pred_fallthru
    _
  // Predicated region
  $region26: #{glow_forward.32} parent=0 // pred_check
    _
  $region27: #{glow_forward.32} parent=0 // pred_check_branch
    %191 = sbr.rel (0) target = $region29
  $region28: #{glow_forward.32} parent=0 // pred_region
    _
  $region29: #{glow_forward.32} parent=0 // pred_fallthru
    _

// kernel: glow_forward.33
$region0: #{glow_forward.33}
  #allocation0 [shape = 'u32[]', space=smem, size = 0x4, offset = 0x4, fixed_abs, tag = 'smem constant byte address 0x4 - core index']
  #allocation1 [shape = 'u32[144,128]{1,0:T(1,128)}', space=vmem, size = 0x12000, scoped, tag = 'internal scratch']
  %s0 = inlined_call_operand.vmem [shape: f32[32,32], index: 0, kind: input, shape index: {}]
  %s1 = inlined_call_operand.vmem [shape: f32[1,32], index: 1, kind: input, shape index: {}]
  %s2 = inlined_call_operand.vmem [shape: f32[1,32], index: 2, kind: input, shape index: {}]
  %s3 = inlined_call_operand.vmem [shape: f32[32,32], index: 3, kind: input, shape index: {}]
  %s4 = inlined_call_operand.vmem [shape: f32[32,32], index: 4, kind: output, shape index: {0}]
  %s5 = inlined_call_operand.vmem [shape: f32[2,32], index: 5, kind: output, shape index: {1}]
  %6 = xla_tuple %s4, %s5
  %s7 = sld [smem:[#allocation0]]
  $region38: #{glow_forward.33} parent=0
    _
  %s9 = ssub.s32 1, %s7
  %s10 = scalar_select 0, %s9, %s7
  // Predicated region
  $region2: #{glow_forward.33} parent=0 // pred_check
    _
  $region3: #{glow_forward.33} parent=0 // pred_check_branch
    %12 = sbr.rel (0) target = $region5
  $region4: #{glow_forward.33} parent=0 // pred_region
    _
  $region5: #{glow_forward.33} parent=0 // pred_fallthru
    _
  // Predicated region
  $region6: #{glow_forward.33} parent=0 // pred_check
    _
  $region7: #{glow_forward.33} parent=0 // pred_check_branch
    %14 = sbr.rel (0) target = $region9
  $region8: #{glow_forward.33} parent=0 // pred_region
    _
  $region9: #{glow_forward.33} parent=0 // pred_fallthru
    _
  // Predicated region
  $region10: #{glow_forward.33} parent=0 // pred_check
    _
  $region11: #{glow_forward.33} parent=0 // pred_check_branch
    %16 = sbr.rel (0) target = $region13
  $region12: #{glow_forward.33} parent=0 // pred_region
    _
  $region13: #{glow_forward.33} parent=0 // pred_fallthru
    _
  // Predicated region
  $region14: #{glow_forward.33} parent=0 // pred_check
    _
  $region15: #{glow_forward.33} parent=0 // pred_check_branch
    %18 = sbr.rel (0) target = $region17
  $region16: #{glow_forward.33} parent=0 // pred_region
    _
  $region17: #{glow_forward.33} parent=0 // pred_fallthru
    _
  %p19 = scmp.eq.s32.totalorder 0, 0
  // Predicated region
  $region18: #{glow_forward.33} parent=0 // pred_check
    %p20 = pneg %p19
  $region19: #{glow_forward.33} parent=0 // pred_check_branch
    %22 = sbr.rel (%p20) target = $region21
  $region20: #{glow_forward.33} parent=0 // pred_region
    %vm23 = vcmask 254976
    %24 = vst.msk [vmem:[%s5] sm:$0x3] %vm23, 0.0
  $region21: #{glow_forward.33} parent=0 // pred_fallthru
    _
  %v25 = vld [vmem:[%s0] sm:$0xff]
  %v26 = vld [vmem:[%s0 + $0x8] sm:$0xff]
  %v27 = vld [vmem:[%s0 + $0x10] sm:$0xff]
  %v28 = vld [vmem:[%s0 + $0x18] sm:$0xff]
  %v29 = vld [vmem:[%s1] sm:$0x1]
  %v31 = vlaneseq
  %v32 = vshrl.u32 %v31, 7
  %v33 = vsub.s32 0, %v32
  %v34 = vrot.slane %v29, %v33
  %v36 = vmul.f32 %v25, %v34
  %v37 = vmul.f32 %v26, %v34
  %v38 = vmul.f32 %v27, %v34
  %v39 = vmul.f32 %v28, %v34
  %v40 = vld [vmem:[%s2] sm:$0x1]
  %v42 = vlaneseq
  %v43 = vshrl.u32 %v42, 7
  %v44 = vsub.s32 0, %v43
  %v45 = vrot.slane %v40, %v44
  %v47 = vadd.f32 %v36, %v45
  %v48 = vadd.f32 %v37, %v45
  %v49 = vadd.f32 %v38, %v45
  %v50 = vadd.f32 %v39, %v45
  %v51 = vmax.f32 %v47, 0.0
  %v52 = vmax.f32 %v48, 0.0
  %v53 = vmax.f32 %v49, 0.0
  %v54 = vmax.f32 %v50, 0.0
  %v55 = vld [vmem:[%s3] sm:$0xff]
  %v56 = vld [vmem:[%s3 + $0x8] sm:$0xff]
  %v57 = vld [vmem:[%s3 + $0x10] sm:$0xff]
  %v58 = vld [vmem:[%s3 + $0x18] sm:$0xff]
  %vm59 = vcmask 261120
  %v61 = vsel %vm59, %v51, 0
  %v64 = vsel %vm59, %v52, 0
  %v67 = vsel %vm59, %v53, 0
  %v70 = vsel %vm59, %v54, 0
  %72 = vmatprep.subr.mxu0 0.0
  %73 = vmatpush1.msra.mxu0 %v55
  %74 = vmatprep.subr.mxu0 0.0
  %75 = vmatpush1.msra.mxu0 %v56
  %76 = vmatprep.subr.mxu0 0.0
  %77 = vmatpush1.msra.mxu0 %v57
  %78 = vmatprep.subr.mxu0 0.0
  %79 = vmatpush1.msra.mxu0 %v58
  %80 = vmatprep.subr.mxu0 0.0
  %81 = vmatpush1.msra.mxu0 0.0
  %82 = vmatprep.subr.mxu0 0.0
  %83 = vmatpush1.msra.mxu0 0.0
  %84 = vmatprep.subr.mxu0 0.0
  %85 = vmatpush1.msra.mxu0 0.0
  %86 = vmatprep.subr.mxu0 0.0
  %87 = vmatpush1.msra.mxu0 0.0
  %88 = vmatprep.subr.mxu0 0.0
  %89 = vmatpush1.msra.mxu0 0.0
  %90 = vmatprep.subr.mxu0 0.0
  %91 = vmatpush1.msra.mxu0 0.0
  %92 = vmatprep.subr.mxu0 0.0
  %93 = vmatpush1.msra.mxu0 0.0
  %94 = vmatprep.subr.mxu0 0.0
  %95 = vmatpush1.msra.mxu0 0.0
  %96 = vmatprep.subr.mxu0 0.0
  %97 = vmatpush1.msra.mxu0 0.0
  %98 = vmatprep.subr.mxu0 0.0
  %99 = vmatpush1.msra.mxu0 0.0
  %100 = vmatprep.subr.mxu0 0.0
  %101 = vmatpush1.msra.mxu0 0.0
  %102 = vmatprep.subr.mxu0 0.0
  %103 = vmatpush1.msra.mxu0 0.0
  %104 = vmatprep.subr.mxu0 0.0
  %105 = vmatpush1.msra.mxu0 0.0
  %106 = vmatprep.subr.mxu0 0.0
  %107 = vmatpush1.msra.mxu0 0.0
  %108 = vmatprep.subr.mxu0 0.0
  %109 = vmatpush1.msra.mxu0 0.0
  %110 = vmatprep.subr.mxu0 0.0
  %111 = vmatpush1.msra.mxu0 0.0
  %112 = vmatprep.subr.mxu0 0.0
  %113 = vmatpush1.msra.mxu0 0.0
  %114 = vmatprep.subr.mxu0 0.0
  %115 = vmatpush1.msra.mxu0 0.0
  %116 = vmatprep.subr.mxu0 0.0
  %117 = vmatpush1.msra.mxu0 0.0
  %118 = vmatprep.subr.mxu0 0.0
  %119 = vmatpush1.msra.mxu0 0.0
  %120 = vmatprep.subr.mxu0 0.0
  %121 = vmatpush1.msra.mxu0 0.0
  %122 = vmatprep.subr.mxu0 0.0
  %123 = vmatpush1.msra.mxu0 0.0
  %124 = vmatprep.subr.mxu0 0.0
  %125 = vmatpush1.msra.mxu0 0.0
  %126 = vmatprep.subr.mxu0 0.0
  %127 = vmatpush1.msra.mxu0 0.0
  %128 = vmatprep.subr.mxu0 0.0
  %129 = vmatpush1.msra.mxu0 0.0
  %130 = vmatprep.subr.mxu0 0.0
  %131 = vmatpush1.msra.mxu0 0.0
  %132 = vmatprep.subr.mxu0 0.0
  %133 = vmatpush1.msra.mxu0 0.0
  %134 = vmatprep.subr.mxu0 0.0
  %135 = vmatpush1.msra.mxu0 0.0
  %136 = vmatprep.mubr.f32.mxu0 0.0
  %137 = vmatmul.mubr.f32.gmra.mrb[0].mxu0 %v61
  %v138 = vpop.f32.mrb[0].mxu0
  %v139 = vadd.f32 0.0, %v138
  %v140 = vpop.f32.mrb[0].mxu0
  %141 = vmatprep.mubr.f32.mxu0 0.0
  %142 = vmatmul.mubr.f32.gmra.mrb[0].mxu0 %v64
  %v143 = vpop.f32.mrb[0].mxu0
  %v144 = vadd.f32 0.0, %v143
  %v145 = vpop.f32.mrb[0].mxu0
  %146 = vmatprep.mubr.f32.mxu0 0.0
  %147 = vmatmul.mubr.f32.gmra.mrb[0].mxu0 %v67
  %v148 = vpop.f32.mrb[0].mxu0
  %v149 = vadd.f32 0.0, %v148
  %v150 = vpop.f32.mrb[0].mxu0
  %151 = vmatprep.mubr.f32.mxu0 0.0
  %152 = vmatmul.mubr.f32.gmra.mrb[0].mxu0 %v70
  %v153 = vpop.f32.mrb[0].mxu0
  %v154 = vadd.f32 0.0, %v153
  %v155 = vpop.f32.mrb[0].mxu0
  %156 = vdwg.mxu0
  %157 = vst.msk [vmem:[%s4] sm:$0xff] %vm59, %v139
  %158 = vst.msk [vmem:[%s4 + $0x8] sm:$0xff] %vm59, %v144
  %159 = vst.msk [vmem:[%s4 + $0x10] sm:$0xff] %vm59, %v149
  %160 = vst.msk [vmem:[%s4 + $0x18] sm:$0xff] %vm59, %v154
  %v161 = vsel %vm59, %v139, 0.0
  %v162 = vsel %vm59, %v144, 0.0
  %v163 = vadd.f32 %v161, %v162
  %v164 = vsel %vm59, %v149, 0.0
  %v165 = vadd.f32 %v163, %v164
  %v166 = vsel %vm59, %v154, 0.0
  %v167 = vadd.f32 %v165, %v166
  %v168 = vrot.slane %v167, 4
  %v169 = vadd.f32 %v167, %v168
  %v170 = vrot.slane %v169, 2
  %v171 = vadd.f32 %v169, %v170
  %v172 = vrot.slane %v171, 1
  %v173 = vadd.f32 %v171, %v172
  %v174 = vmul.f32 %v139, %v139
  %v175 = vmul.f32 %v144, %v144
  %v176 = vmul.f32 %v149, %v149
  %v177 = vmul.f32 %v154, %v154
  %v178 = vsel %vm59, %v174, 0.0
  %v179 = vsel %vm59, %v175, 0.0
  %v180 = vadd.f32 %v178, %v179
  %v181 = vsel %vm59, %v176, 0.0
  %v182 = vadd.f32 %v180, %v181
  %v183 = vsel %vm59, %v177, 0.0
  %v184 = vadd.f32 %v182, %v183
  %v185 = vrot.slane %v184, 4
  %v186 = vadd.f32 %v184, %v185
  %v187 = vrot.slane %v186, 2
  %v188 = vadd.f32 %v186, %v187
  %v189 = vrot.slane %v188, 1
  %v190 = vadd.f32 %v188, %v189
  %v191 = vld [vmem:[%s5] sm:$0x3]
  %vm192 = vcmask 1040384
  %v193 = vsel %vm192, %v173, %v190
  %v194 = vadd.f32 %v191, %v193
  %vm195 = vcmask 254976
  %196 = vst.msk [vmem:[%s5] sm:$0x3] %vm195, %v194
  // Predicated region
  $region22: #{glow_forward.33} parent=0 // pred_check
    _
  $region23: #{glow_forward.33} parent=0 // pred_check_branch
    %198 = sbr.rel (0) target = $region25
  $region24: #{glow_forward.33} parent=0 // pred_region
    _
  $region25: #{glow_forward.33} parent=0 // pred_fallthru
    _
  // Predicated region
  $region26: #{glow_forward.33} parent=0 // pred_check
    _
  $region27: #{glow_forward.33} parent=0 // pred_check_branch
    %200 = sbr.rel (0) target = $region29
  $region28: #{glow_forward.33} parent=0 // pred_region
    _
  $region29: #{glow_forward.33} parent=0 // pred_fallthru
    _
  // Predicated region
  $region30: #{glow_forward.33} parent=0 // pred_check
    _
  $region31: #{glow_forward.33} parent=0 // pred_check_branch
    %202 = sbr.rel (0) target = $region33
  $region32: #{glow_forward.33} parent=0 // pred_region
    _
  $region33: #{glow_forward.33} parent=0 // pred_fallthru
    _
  // Predicated region
  $region34: #{glow_forward.33} parent=0 // pred_check
    _
  $region35: #{glow_forward.33} parent=0 // pred_check_branch
    %204 = sbr.rel (0) target = $region37
  $region36: #{glow_forward.33} parent=0 // pred_region
    _
  $region37: #{glow_forward.33} parent=0 // pred_fallthru
    _

// kernel: glow_forward.34
$region0: #{glow_forward.34}
  #allocation0 [shape = 'u32[]', space=smem, size = 0x4, offset = 0x4, fixed_abs, tag = 'smem constant byte address 0x4 - core index']
  #allocation1 [shape = 'u32[144,128]{1,0:T(1,128)}', space=vmem, size = 0x12000, scoped, tag = 'internal scratch']
  %s0 = inlined_call_operand.vmem [shape: f32[32,288], index: 0, kind: input, shape index: {}]
  %s1 = inlined_call_operand.vmem [shape: f32[32,32], index: 1, kind: input, shape index: {}]
  %s2 = inlined_call_operand.vmem [shape: f32[1,288], index: 2, kind: input, shape index: {}]
  %s3 = inlined_call_operand.vmem [shape: f32[1,288], index: 3, kind: input, shape index: {}]
  %s4 = inlined_call_operand.vmem [shape: f32[288,16], index: 4, kind: input, shape index: {}]
  %s5 = inlined_call_operand.vmem [shape: f32[288,16], index: 5, kind: input, shape index: {}]
  %s6 = inlined_call_operand.vmem [shape: f32[1,16], index: 6, kind: input, shape index: {}]
  %s7 = inlined_call_operand.vmem [shape: f32[1,16], index: 7, kind: input, shape index: {}]
  %s8 = inlined_call_operand.vmem [shape: f32[32,32], index: 8, kind: output, shape index: {}]
  %s9 = sld [smem:[#allocation0]]
  $region42: #{glow_forward.34} parent=0
    _
  %s11 = ssub.s32 1, %s9
  %s12 = scalar_select 0, %s11, %s9
  // Predicated region
  $region2: #{glow_forward.34} parent=0 // pred_check
    _
  $region3: #{glow_forward.34} parent=0 // pred_check_branch
    %14 = sbr.rel (0) target = $region5
  $region4: #{glow_forward.34} parent=0 // pred_region
    _
  $region5: #{glow_forward.34} parent=0 // pred_fallthru
    _
  // Predicated region
  $region6: #{glow_forward.34} parent=0 // pred_check
    _
  $region7: #{glow_forward.34} parent=0 // pred_check_branch
    %16 = sbr.rel (0) target = $region9
  $region8: #{glow_forward.34} parent=0 // pred_region
    _
  $region9: #{glow_forward.34} parent=0 // pred_fallthru
    _
  // Predicated region
  $region10: #{glow_forward.34} parent=0 // pred_check
    _
  $region11: #{glow_forward.34} parent=0 // pred_check_branch
    %18 = sbr.rel (0) target = $region13
  $region12: #{glow_forward.34} parent=0 // pred_region
    _
  $region13: #{glow_forward.34} parent=0 // pred_fallthru
    _
  // Predicated region
  $region14: #{glow_forward.34} parent=0 // pred_check
    _
  $region15: #{glow_forward.34} parent=0 // pred_check_branch
    %20 = sbr.rel (0) target = $region17
  $region16: #{glow_forward.34} parent=0 // pred_region
    _
  $region17: #{glow_forward.34} parent=0 // pred_fallthru
    _
  // Predicated region
  $region18: #{glow_forward.34} parent=0 // pred_check
    _
  $region19: #{glow_forward.34} parent=0 // pred_check_branch
    %22 = sbr.rel (0) target = $region21
  $region20: #{glow_forward.34} parent=0 // pred_region
    _
  $region21: #{glow_forward.34} parent=0 // pred_fallthru
    _
  // Predicated region
  $region22: #{glow_forward.34} parent=0 // pred_check
    _
  $region23: #{glow_forward.34} parent=0 // pred_check_branch
    %24 = sbr.rel (0) target = $region25
  $region24: #{glow_forward.34} parent=0 // pred_region
    _
  $region25: #{glow_forward.34} parent=0 // pred_fallthru
    _
  // Predicated region
  $region26: #{glow_forward.34} parent=0 // pred_check
    _
  $region27: #{glow_forward.34} parent=0 // pred_check_branch
    %26 = sbr.rel (0) target = $region29
  $region28: #{glow_forward.34} parent=0 // pred_region
    _
  $region29: #{glow_forward.34} parent=0 // pred_fallthru
    _
  // Predicated region
  $region30: #{glow_forward.34} parent=0 // pred_check
    _
  $region31: #{glow_forward.34} parent=0 // pred_check_branch
    %28 = sbr.rel (0) target = $region33
  $region32: #{glow_forward.34} parent=0 // pred_region
    _
  $region33: #{glow_forward.34} parent=0 // pred_fallthru
    _
  %v29 = vld [vmem:[%s0] sm:$0xff]
  %v30 = vld [vmem:[%s0 + $0x8] sm:$0xff]
  %v31 = vld [vmem:[%s0 + $0x10] sm:$0xff]
  %v32 = vld [vmem:[%s0 + $0x18] sm:$0xff]
  %v33 = vld [vmem:[%s0 + $0x20] sm:$0xff]
  %v34 = vld [vmem:[%s0 + $0x28] sm:$0xff]
  %v35 = vld [vmem:[%s0 + $0x30] sm:$0xff]
  %v36 = vld [vmem:[%s0 + $0x38] sm:$0xff]
  %v37 = vld [vmem:[%s0 + $0x40] sm:$0xff]
  %v38 = vld [vmem:[%s0 + $0x48] sm:$0xff]
  %v39 = vld [vmem:[%s0 + $0x50] sm:$0xff]
  %v40 = vld [vmem:[%s0 + $0x58] sm:$0xff]
  %v41 = vld [vmem:[%s2] sm:$0x7]
  %v43 = vlaneseq
  %v44 = vshrl.u32 %v43, 7
  %v45 = vsub.s32 0, %v44
  %v46 = vrot.slane %v41, %v45
  %v47 = vlaneseq
  %v48 = vshrl.u32 %v47, 7
  %v49 = vsub.s32 1, %v48
  %v50 = vrot.slane %v41, %v49
  %v51 = vlaneseq
  %v52 = vshrl.u32 %v51, 7
  %v53 = vsub.s32 2, %v52
  %v54 = vrot.slane %v41, %v53
  %v58 = vmul.f32 %v29, %v46
  %v59 = vmul.f32 %v30, %v50
  %v60 = vmul.f32 %v31, %v54
  %v61 = vmul.f32 %v32, %v46
  %v62 = vmul.f32 %v33, %v50
  %v63 = vmul.f32 %v34, %v54
  %v64 = vmul.f32 %v35, %v46
  %v65 = vmul.f32 %v36, %v50
  %v66 = vmul.f32 %v37, %v54
  %v67 = vmul.f32 %v38, %v46
  %v68 = vmul.f32 %v39, %v50
  %v69 = vmul.f32 %v40, %v54
  %v70 = vld [vmem:[%s3] sm:$0x7]
  %v72 = vlaneseq
  %v73 = vshrl.u32 %v72, 7
  %v74 = vsub.s32 0, %v73
  %v75 = vrot.slane %v70, %v74
  %v76 = vlaneseq
  %v77 = vshrl.u32 %v76, 7
  %v78 = vsub.s32 1, %v77
  %v79 = vrot.slane %v70, %v78
  %v80 = vlaneseq
  %v81 = vshrl.u32 %v80, 7
  %v82 = vsub.s32 2, %v81
  %v83 = vrot.slane %v70, %v82
  %v87 = vadd.f32 %v58, %v75
  %v88 = vadd.f32 %v59, %v79
  %v89 = vadd.f32 %v60, %v83
  %v90 = vadd.f32 %v61, %v75
  %v91 = vadd.f32 %v62, %v79
  %v92 = vadd.f32 %v63, %v83
  %v93 = vadd.f32 %v64, %v75
  %v94 = vadd.f32 %v65, %v79
  %v95 = vadd.f32 %v66, %v83
  %v96 = vadd.f32 %v67, %v75
  %v97 = vadd.f32 %v68, %v79
  %v98 = vadd.f32 %v69, %v83
  %v99 = vmax.f32 %v87, 0.0
  %v100 = vmax.f32 %v88, 0.0
  %v101 = vmax.f32 %v89, 0.0
  %v102 = vmax.f32 %v90, 0.0
  %v103 = vmax.f32 %v91, 0.0
  %v104 = vmax.f32 %v92, 0.0
  %v105 = vmax.f32 %v93, 0.0
  %v106 = vmax.f32 %v94, 0.0
  %v107 = vmax.f32 %v95, 0.0
  %v108 = vmax.f32 %v96, 0.0
  %v109 = vmax.f32 %v97, 0.0
  %v110 = vmax.f32 %v98, 0.0
  %v111 = vld [vmem:[%s4] sm:$0xff]
  %v112 = vld [vmem:[%s4 + $0x8] sm:$0xff]
  %v113 = vld [vmem:[%s4 + $0x10] sm:$0xff]
  %v114 = vld [vmem:[%s4 + $0x18] sm:$0xff]
  %v115 = vld [vmem:[%s4 + $0x20] sm:$0xff]
  %v116 = vld [vmem:[%s4 + $0x28] sm:$0xff]
  %v117 = vld [vmem:[%s4 + $0x30] sm:$0xff]
  %v118 = vld [vmem:[%s4 + $0x38] sm:$0xff]
  %v119 = vld [vmem:[%s4 + $0x40] sm:$0xff]
  %v120 = vld [vmem:[%s4 + $0x48] sm:$0xff]
  %v121 = vld [vmem:[%s4 + $0x50] sm:$0xff]
  %v122 = vld [vmem:[%s4 + $0x58] sm:$0xff]
  %v123 = vld [vmem:[%s4 + $0x60] sm:$0xff]
  %v124 = vld [vmem:[%s4 + $0x68] sm:$0xff]
  %v125 = vld [vmem:[%s4 + $0x70] sm:$0xff]
  %v126 = vld [vmem:[%s4 + $0x78] sm:$0xff]
  %v127 = vld [vmem:[%s4 + $0x80] sm:$0xff]
  %v128 = vld [vmem:[%s4 + $0x88] sm:$0xff]
  %v129 = vld [vmem:[%s4 + $0x90] sm:$0xff]
  %v130 = vld [vmem:[%s4 + $0x98] sm:$0xff]
  %v131 = vld [vmem:[%s4 + $0xa0] sm:$0xff]
  %v132 = vld [vmem:[%s4 + $0xa8] sm:$0xff]
  %v133 = vld [vmem:[%s4 + $0xb0] sm:$0xff]
  %v134 = vld [vmem:[%s4 + $0xb8] sm:$0xff]
  %v135 = vld [vmem:[%s4 + $0xc0] sm:$0xff]
  %v136 = vld [vmem:[%s4 + $0xc8] sm:$0xff]
  %v137 = vld [vmem:[%s4 + $0xd0] sm:$0xff]
  %v138 = vld [vmem:[%s4 + $0xd8] sm:$0xff]
  %v139 = vld [vmem:[%s4 + $0xe0] sm:$0xff]
  %v140 = vld [vmem:[%s4 + $0xe8] sm:$0xff]
  %v141 = vld [vmem:[%s4 + $0xf0] sm:$0xff]
  %v142 = vld [vmem:[%s4 + $0xf8] sm:$0xff]
  %v143 = vld [vmem:[%s4 + $0x100] sm:$0xff]
  %v144 = vld [vmem:[%s4 + $0x108] sm:$0xff]
  %v145 = vld [vmem:[%s4 + $0x110] sm:$0xff]
  %v146 = vld [vmem:[%s4 + $0x118] sm:$0xff]
  %v147 = vld [vmem:[%s6] sm:$0x1]
  %v149 = vlaneseq
  %v150 = vshrl.u32 %v149, 7
  %v151 = vsub.s32 0, %v150
  %v152 = vrot.slane %v147, %v151
  %vm154 = vcmask 261120
  %v156 = vsel %vm154, %v101, 0
  %v159 = vsel %vm154, %v104, 0
  %v162 = vsel %vm154, %v107, 0
  %v165 = vsel %vm154, %v110, 0
  %167 = vmatprep.subr.mxu0 0.0
  %168 = vmatpush1.msra.mxu0 %v111
  %169 = vmatprep.subr.mxu0 0.0
  %170 = vmatpush1.msra.mxu0 %v112
  %171 = vmatprep.subr.mxu0 0.0
  %172 = vmatpush1.msra.mxu0 %v113
  %173 = vmatprep.subr.mxu0 0.0
  %174 = vmatpush1.msra.mxu0 %v114
  %175 = vmatprep.subr.mxu0 0.0
  %176 = vmatpush1.msra.mxu0 %v115
  %177 = vmatprep.subr.mxu0 0.0
  %178 = vmatpush1.msra.mxu0 %v116
  %179 = vmatprep.subr.mxu0 0.0
  %180 = vmatpush1.msra.mxu0 %v117
  %181 = vmatprep.subr.mxu0 0.0
  %182 = vmatpush1.msra.mxu0 %v118
  %183 = vmatprep.subr.mxu0 0.0
  %184 = vmatpush1.msra.mxu0 %v119
  %185 = vmatprep.subr.mxu0 0.0
  %186 = vmatpush1.msra.mxu0 %v120
  %187 = vmatprep.subr.mxu0 0.0
  %188 = vmatpush1.msra.mxu0 %v121
  %189 = vmatprep.subr.mxu0 0.0
  %190 = vmatpush1.msra.mxu0 %v122
  %191 = vmatprep.subr.mxu0 0.0
  %192 = vmatpush1.msra.mxu0 %v123
  %193 = vmatprep.subr.mxu0 0.0
  %194 = vmatpush1.msra.mxu0 %v124
  %195 = vmatprep.subr.mxu0 0.0
  %196 = vmatpush1.msra.mxu0 %v125
  %197 = vmatprep.subr.mxu0 0.0
  %198 = vmatpush1.msra.mxu0 %v126
  %199 = vmatprep.subr.mxu0 0.0
  %200 = vmatpush1.msra.mxu0 %v127
  %201 = vmatprep.subr.mxu0 0.0
  %202 = vmatpush1.msra.mxu0 %v128
  %203 = vmatprep.subr.mxu0 0.0
  %204 = vmatpush1.msra.mxu0 %v129
  %205 = vmatprep.subr.mxu0 0.0
  %206 = vmatpush1.msra.mxu0 %v130
  %207 = vmatprep.subr.mxu0 0.0
  %208 = vmatpush1.msra.mxu0 %v131
  %209 = vmatprep.subr.mxu0 0.0
  %210 = vmatpush1.msra.mxu0 %v132
  %211 = vmatprep.subr.mxu0 0.0
  %212 = vmatpush1.msra.mxu0 %v133
  %213 = vmatprep.subr.mxu0 0.0
  %214 = vmatpush1.msra.mxu0 %v134
  %215 = vmatprep.subr.mxu0 0.0
  %216 = vmatpush1.msra.mxu0 %v135
  %217 = vmatprep.subr.mxu0 0.0
  %218 = vmatpush1.msra.mxu0 %v136
  %219 = vmatprep.subr.mxu0 0.0
  %220 = vmatpush1.msra.mxu0 %v137
  %221 = vmatprep.subr.mxu0 0.0
  %222 = vmatpush1.msra.mxu0 %v138
  %223 = vmatprep.subr.mxu0 0.0
  %224 = vmatpush1.msra.mxu0 %v139
  %225 = vmatprep.subr.mxu0 0.0
  %226 = vmatpush1.msra.mxu0 %v140
  %227 = vmatprep.subr.mxu0 0.0
  %228 = vmatpush1.msra.mxu0 %v141
  %229 = vmatprep.subr.mxu0 0.0
  %230 = vmatpush1.msra.mxu0 %v142
  %231 = vmatprep.mubr.f32.mxu0 %v100
  %232 = vmatmul.mubr.f32.gmra.mrb[0].mxu0 %v99
  %v233 = vpop.f32.mrb[0].mxu0
  %v234 = vadd.f32 %v152, %v233
  %v235 = vpop.f32.mrb[0].mxu0
  %236 = vmatprep.mubr.f32.mxu0 %v103
  %237 = vmatmul.mubr.f32.gmra.mrb[0].mxu0 %v102
  %v238 = vpop.f32.mrb[0].mxu0
  %v239 = vadd.f32 %v152, %v238
  %v240 = vpop.f32.mrb[0].mxu0
  %241 = vmatprep.mubr.f32.mxu0 %v106
  %242 = vmatmul.mubr.f32.gmra.mrb[0].mxu0 %v105
  %v243 = vpop.f32.mrb[0].mxu0
  %v244 = vadd.f32 %v152, %v243
  %v245 = vpop.f32.mrb[0].mxu0
  %246 = vmatprep.mubr.f32.mxu0 %v109
  %247 = vmatmul.mubr.f32.gmra.mrb[0].mxu0 %v108
  %v248 = vpop.f32.mrb[0].mxu0
  %v249 = vadd.f32 %v152, %v248
  %v250 = vpop.f32.mrb[0].mxu0
  %251 = vdwg.mxu0
  %252 = vmatprep.subr.mxu0 0.0
  %253 = vmatpush1.msra.mxu0 %v143
  %254 = vmatprep.subr.mxu0 0.0
  %255 = vmatpush1.msra.mxu0 %v144
  %256 = vmatprep.subr.mxu0 0.0
  %257 = vmatpush1.msra.mxu0 %v145
  %258 = vmatprep.subr.mxu0 0.0
  %259 = vmatpush1.msra.mxu0 %v146
  %260 = vmatprep.subr.mxu0 0.0
  %261 = vmatpush1.msra.mxu0 0.0
  %262 = vmatprep.subr.mxu0 0.0
  %263 = vmatpush1.msra.mxu0 0.0
  %264 = vmatprep.subr.mxu0 0.0
  %265 = vmatpush1.msra.mxu0 0.0
  %266 = vmatprep.subr.mxu0 0.0
  %267 = vmatpush1.msra.mxu0 0.0
  %268 = vmatprep.subr.mxu0 0.0
  %269 = vmatpush1.msra.mxu0 0.0
  %270 = vmatprep.subr.mxu0 0.0
  %271 = vmatpush1.msra.mxu0 0.0
  %272 = vmatprep.subr.mxu0 0.0
  %273 = vmatpush1.msra.mxu0 0.0
  %274 = vmatprep.subr.mxu0 0.0
  %275 = vmatpush1.msra.mxu0 0.0
  %276 = vmatprep.subr.mxu0 0.0
  %277 = vmatpush1.msra.mxu0 0.0
  %278 = vmatprep.subr.mxu0 0.0
  %279 = vmatpush1.msra.mxu0 0.0
  %280 = vmatprep.subr.mxu0 0.0
  %281 = vmatpush1.msra.mxu0 0.0
  %282 = vmatprep.subr.mxu0 0.0
  %283 = vmatpush1.msra.mxu0 0.0
  %284 = vmatprep.subr.mxu0 0.0
  %285 = vmatpush1.msra.mxu0 0.0
  %286 = vmatprep.subr.mxu0 0.0
  %287 = vmatpush1.msra.mxu0 0.0
  %288 = vmatprep.subr.mxu0 0.0
  %289 = vmatpush1.msra.mxu0 0.0
  %290 = vmatprep.subr.mxu0 0.0
  %291 = vmatpush1.msra.mxu0 0.0
  %292 = vmatprep.subr.mxu0 0.0
  %293 = vmatpush1.msra.mxu0 0.0
  %294 = vmatprep.subr.mxu0 0.0
  %295 = vmatpush1.msra.mxu0 0.0
  %296 = vmatprep.subr.mxu0 0.0
  %297 = vmatpush1.msra.mxu0 0.0
  %298 = vmatprep.subr.mxu0 0.0
  %299 = vmatpush1.msra.mxu0 0.0
  %300 = vmatprep.subr.mxu0 0.0
  %301 = vmatpush1.msra.mxu0 0.0
  %302 = vmatprep.subr.mxu0 0.0
  %303 = vmatpush1.msra.mxu0 0.0
  %304 = vmatprep.subr.mxu0 0.0
  %305 = vmatpush1.msra.mxu0 0.0
  %306 = vmatprep.subr.mxu0 0.0
  %307 = vmatpush1.msra.mxu0 0.0
  %308 = vmatprep.subr.mxu0 0.0
  %309 = vmatpush1.msra.mxu0 0.0
  %310 = vmatprep.subr.mxu0 0.0
  %311 = vmatpush1.msra.mxu0 0.0
  %312 = vmatprep.subr.mxu0 0.0
  %313 = vmatpush1.msra.mxu0 0.0
  %314 = vmatprep.subr.mxu0 0.0
  %315 = vmatpush1.msra.mxu0 0.0
  %316 = vmatprep.mubr.f32.mxu0 0.0
  %317 = vmatmul.mubr.f32.gmra.mrb[0].mxu0 %v156
  %v318 = vpop.f32.mrb[0].mxu0
  %v319 = vadd.f32 %v234, %v318
  %v320 = vpop.f32.mrb[0].mxu0
  %321 = vmatprep.mubr.f32.mxu0 0.0
  %322 = vmatmul.mubr.f32.gmra.mrb[0].mxu0 %v159
  %v323 = vpop.f32.mrb[0].mxu0
  %v324 = vadd.f32 %v239, %v323
  %v325 = vpop.f32.mrb[0].mxu0
  %326 = vmatprep.mubr.f32.mxu0 0.0
  %327 = vmatmul.mubr.f32.gmra.mrb[0].mxu0 %v162
  %v328 = vpop.f32.mrb[0].mxu0
  %v329 = vadd.f32 %v244, %v328
  %v330 = vpop.f32.mrb[0].mxu0
  %331 = vmatprep.mubr.f32.mxu0 0.0
  %332 = vmatmul.mubr.f32.gmra.mrb[0].mxu0 %v165
  %v333 = vpop.f32.mrb[0].mxu0
  %v334 = vadd.f32 %v249, %v333
  %v335 = vpop.f32.mrb[0].mxu0
  %336 = vdwg.mxu0
  %v337 = vld [vmem:[%s5] sm:$0xff]
  %v338 = vld [vmem:[%s5 + $0x8] sm:$0xff]
  %v339 = vld [vmem:[%s5 + $0x10] sm:$0xff]
  %v340 = vld [vmem:[%s5 + $0x18] sm:$0xff]
  %v341 = vld [vmem:[%s5 + $0x20] sm:$0xff]
  %v342 = vld [vmem:[%s5 + $0x28] sm:$0xff]
  %v343 = vld [vmem:[%s5 + $0x30] sm:$0xff]
  %v344 = vld [vmem:[%s5 + $0x38] sm:$0xff]
  %v345 = vld [vmem:[%s5 + $0x40] sm:$0xff]
  %v346 = vld [vmem:[%s5 + $0x48] sm:$0xff]
  %v347 = vld [vmem:[%s5 + $0x50] sm:$0xff]
  %v348 = vld [vmem:[%s5 + $0x58] sm:$0xff]
  %v349 = vld [vmem:[%s5 + $0x60] sm:$0xff]
  %v350 = vld [vmem:[%s5 + $0x68] sm:$0xff]
  %v351 = vld [vmem:[%s5 + $0x70] sm:$0xff]
  %v352 = vld [vmem:[%s5 + $0x78] sm:$0xff]
  %v353 = vld [vmem:[%s5 + $0x80] sm:$0xff]
  %v354 = vld [vmem:[%s5 + $0x88] sm:$0xff]
  %v355 = vld [vmem:[%s5 + $0x90] sm:$0xff]
  %v356 = vld [vmem:[%s5 + $0x98] sm:$0xff]
  %v357 = vld [vmem:[%s5 + $0xa0] sm:$0xff]
  %v358 = vld [vmem:[%s5 + $0xa8] sm:$0xff]
  %v359 = vld [vmem:[%s5 + $0xb0] sm:$0xff]
  %v360 = vld [vmem:[%s5 + $0xb8] sm:$0xff]
  %v361 = vld [vmem:[%s5 + $0xc0] sm:$0xff]
  %v362 = vld [vmem:[%s5 + $0xc8] sm:$0xff]
  %v363 = vld [vmem:[%s5 + $0xd0] sm:$0xff]
  %v364 = vld [vmem:[%s5 + $0xd8] sm:$0xff]
  %v365 = vld [vmem:[%s5 + $0xe0] sm:$0xff]
  %v366 = vld [vmem:[%s5 + $0xe8] sm:$0xff]
  %v367 = vld [vmem:[%s5 + $0xf0] sm:$0xff]
  %v368 = vld [vmem:[%s5 + $0xf8] sm:$0xff]
  %v369 = vld [vmem:[%s5 + $0x100] sm:$0xff]
  %v370 = vld [vmem:[%s5 + $0x108] sm:$0xff]
  %v371 = vld [vmem:[%s5 + $0x110] sm:$0xff]
  %v372 = vld [vmem:[%s5 + $0x118] sm:$0xff]
  %v373 = vld [vmem:[%s7] sm:$0x1]
  %v375 = vlaneseq
  %v376 = vshrl.u32 %v375, 7
  %v377 = vsub.s32 0, %v376
  %v378 = vrot.slane %v373, %v377
  %380 = vmatprep.subr.mxu0 0.0
  %381 = vmatpush1.msra.mxu0 %v337
  %382 = vmatprep.subr.mxu0 0.0
  %383 = vmatpush1.msra.mxu0 %v338
  %384 = vmatprep.subr.mxu0 0.0
  %385 = vmatpush1.msra.mxu0 %v339
  %386 = vmatprep.subr.mxu0 0.0
  %387 = vmatpush1.msra.mxu0 %v340
  %388 = vmatprep.subr.mxu0 0.0
  %389 = vmatpush1.msra.mxu0 %v341
  %390 = vmatprep.subr.mxu0 0.0
  %391 = vmatpush1.msra.mxu0 %v342
  %392 = vmatprep.subr.mxu0 0.0
  %393 = vmatpush1.msra.mxu0 %v343
  %394 = vmatprep.subr.mxu0 0.0
  %395 = vmatpush1.msra.mxu0 %v344
  %396 = vmatprep.subr.mxu0 0.0
  %397 = vmatpush1.msra.mxu0 %v345
  %398 = vmatprep.subr.mxu0 0.0
  %399 = vmatpush1.msra.mxu0 %v346
  %400 = vmatprep.subr.mxu0 0.0
  %401 = vmatpush1.msra.mxu0 %v347
  %402 = vmatprep.subr.mxu0 0.0
  %403 = vmatpush1.msra.mxu0 %v348
  %404 = vmatprep.subr.mxu0 0.0
  %405 = vmatpush1.msra.mxu0 %v349
  %406 = vmatprep.subr.mxu0 0.0
  %407 = vmatpush1.msra.mxu0 %v350
  %408 = vmatprep.subr.mxu0 0.0
  %409 = vmatpush1.msra.mxu0 %v351
  %410 = vmatprep.subr.mxu0 0.0
  %411 = vmatpush1.msra.mxu0 %v352
  %412 = vmatprep.subr.mxu0 0.0
  %413 = vmatpush1.msra.mxu0 %v353
  %414 = vmatprep.subr.mxu0 0.0
  %415 = vmatpush1.msra.mxu0 %v354
  %416 = vmatprep.subr.mxu0 0.0
  %417 = vmatpush1.msra.mxu0 %v355
  %418 = vmatprep.subr.mxu0 0.0
  %419 = vmatpush1.msra.mxu0 %v356
  %420 = vmatprep.subr.mxu0 0.0
  %421 = vmatpush1.msra.mxu0 %v357
  %422 = vmatprep.subr.mxu0 0.0
  %423 = vmatpush1.msra.mxu0 %v358
  %424 = vmatprep.subr.mxu0 0.0
  %425 = vmatpush1.msra.mxu0 %v359
  %426 = vmatprep.subr.mxu0 0.0
  %427 = vmatpush1.msra.mxu0 %v360
  %428 = vmatprep.subr.mxu0 0.0
  %429 = vmatpush1.msra.mxu0 %v361
  %430 = vmatprep.subr.mxu0 0.0
  %431 = vmatpush1.msra.mxu0 %v362
  %432 = vmatprep.subr.mxu0 0.0
  %433 = vmatpush1.msra.mxu0 %v363
  %434 = vmatprep.subr.mxu0 0.0
  %435 = vmatpush1.msra.mxu0 %v364
  %436 = vmatprep.subr.mxu0 0.0
  %437 = vmatpush1.msra.mxu0 %v365
  %438 = vmatprep.subr.mxu0 0.0
  %439 = vmatpush1.msra.mxu0 %v366
  %440 = vmatprep.subr.mxu0 0.0
  %441 = vmatpush1.msra.mxu0 %v367
  %442 = vmatprep.subr.mxu0 0.0
  %443 = vmatpush1.msra.mxu0 %v368
  %444 = vmatprep.mubr.f32.mxu0 %v100
  %445 = vmatmul.mubr.f32.gmra.mrb[0].mxu0 %v99
  %v446 = vpop.f32.mrb[0].mxu0
  %v447 = vadd.f32 %v378, %v446
  %v448 = vpop.f32.mrb[0].mxu0
  %449 = vmatprep.mubr.f32.mxu0 %v103
  %450 = vmatmul.mubr.f32.gmra.mrb[0].mxu0 %v102
  %v451 = vpop.f32.mrb[0].mxu0
  %v452 = vadd.f32 %v378, %v451
  %v453 = vpop.f32.mrb[0].mxu0
  %454 = vmatprep.mubr.f32.mxu0 %v106
  %455 = vmatmul.mubr.f32.gmra.mrb[0].mxu0 %v105
  %v456 = vpop.f32.mrb[0].mxu0
  %v457 = vadd.f32 %v378, %v456
  %v458 = vpop.f32.mrb[0].mxu0
  %459 = vmatprep.mubr.f32.mxu0 %v109
  %460 = vmatmul.mubr.f32.gmra.mrb[0].mxu0 %v108
  %v461 = vpop.f32.mrb[0].mxu0
  %v462 = vadd.f32 %v378, %v461
  %v463 = vpop.f32.mrb[0].mxu0
  %464 = vdwg.mxu0
  %465 = vmatprep.subr.mxu0 0.0
  %466 = vmatpush1.msra.mxu0 %v369
  %467 = vmatprep.subr.mxu0 0.0
  %468 = vmatpush1.msra.mxu0 %v370
  %469 = vmatprep.subr.mxu0 0.0
  %470 = vmatpush1.msra.mxu0 %v371
  %471 = vmatprep.subr.mxu0 0.0
  %472 = vmatpush1.msra.mxu0 %v372
  %473 = vmatprep.subr.mxu0 0.0
  %474 = vmatpush1.msra.mxu0 0.0
  %475 = vmatprep.subr.mxu0 0.0
  %476 = vmatpush1.msra.mxu0 0.0
  %477 = vmatprep.subr.mxu0 0.0
  %478 = vmatpush1.msra.mxu0 0.0
  %479 = vmatprep.subr.mxu0 0.0
  %480 = vmatpush1.msra.mxu0 0.0
  %481 = vmatprep.subr.mxu0 0.0
  %482 = vmatpush1.msra.mxu0 0.0
  %483 = vmatprep.subr.mxu0 0.0
  %484 = vmatpush1.msra.mxu0 0.0
  %485 = vmatprep.subr.mxu0 0.0
  %486 = vmatpush1.msra.mxu0 0.0
  %487 = vmatprep.subr.mxu0 0.0
  %488 = vmatpush1.msra.mxu0 0.0
  %489 = vmatprep.subr.mxu0 0.0
  %490 = vmatpush1.msra.mxu0 0.0
  %491 = vmatprep.subr.mxu0 0.0
  %492 = vmatpush1.msra.mxu0 0.0
  %493 = vmatprep.subr.mxu0 0.0
  %494 = vmatpush1.msra.mxu0 0.0
  %495 = vmatprep.subr.mxu0 0.0
  %496 = vmatpush1.msra.mxu0 0.0
  %497 = vmatprep.subr.mxu0 0.0
  %498 = vmatpush1.msra.mxu0 0.0
  %499 = vmatprep.subr.mxu0 0.0
  %500 = vmatpush1.msra.mxu0 0.0
  %501 = vmatprep.subr.mxu0 0.0
  %502 = vmatpush1.msra.mxu0 0.0
  %503 = vmatprep.subr.mxu0 0.0
  %504 = vmatpush1.msra.mxu0 0.0
  %505 = vmatprep.subr.mxu0 0.0
  %506 = vmatpush1.msra.mxu0 0.0
  %507 = vmatprep.subr.mxu0 0.0
  %508 = vmatpush1.msra.mxu0 0.0
  %509 = vmatprep.subr.mxu0 0.0
  %510 = vmatpush1.msra.mxu0 0.0
  %511 = vmatprep.subr.mxu0 0.0
  %512 = vmatpush1.msra.mxu0 0.0
  %513 = vmatprep.subr.mxu0 0.0
  %514 = vmatpush1.msra.mxu0 0.0
  %515 = vmatprep.subr.mxu0 0.0
  %516 = vmatpush1.msra.mxu0 0.0
  %517 = vmatprep.subr.mxu0 0.0
  %518 = vmatpush1.msra.mxu0 0.0
  %519 = vmatprep.subr.mxu0 0.0
  %520 = vmatpush1.msra.mxu0 0.0
  %521 = vmatprep.subr.mxu0 0.0
  %522 = vmatpush1.msra.mxu0 0.0
  %523 = vmatprep.subr.mxu0 0.0
  %524 = vmatpush1.msra.mxu0 0.0
  %525 = vmatprep.subr.mxu0 0.0
  %526 = vmatpush1.msra.mxu0 0.0
  %527 = vmatprep.subr.mxu0 0.0
  %528 = vmatpush1.msra.mxu0 0.0
  %529 = vmatprep.mubr.f32.mxu0 0.0
  %530 = vmatmul.mubr.f32.gmra.mrb[0].mxu0 %v156
  %v531 = vpop.f32.mrb[0].mxu0
  %v532 = vadd.f32 %v447, %v531
  %v533 = vpop.f32.mrb[0].mxu0
  %534 = vmatprep.mubr.f32.mxu0 0.0
  %535 = vmatmul.mubr.f32.gmra.mrb[0].mxu0 %v159
  %v536 = vpop.f32.mrb[0].mxu0
  %v537 = vadd.f32 %v452, %v536
  %v538 = vpop.f32.mrb[0].mxu0
  %539 = vmatprep.mubr.f32.mxu0 0.0
  %540 = vmatmul.mubr.f32.gmra.mrb[0].mxu0 %v162
  %v541 = vpop.f32.mrb[0].mxu0
  %v542 = vadd.f32 %v457, %v541
  %v543 = vpop.f32.mrb[0].mxu0
  %544 = vmatprep.mubr.f32.mxu0 0.0
  %545 = vmatmul.mubr.f32.gmra.mrb[0].mxu0 %v165
  %v546 = vpop.f32.mrb[0].mxu0
  %v547 = vadd.f32 %v462, %v546
  %v548 = vpop.f32.mrb[0].mxu0
  %549 = vdwg.mxu0
  %v550 = vadd.f32 %v532, 2.0
  %v551 = vadd.f32 %v537, 2.0
  %v552 = vadd.f32 %v542, 2.0
  %v553 = vadd.f32 %v547, 2.0
  %v554 = vsub.f32 0.0, %v550
  %v555 = vsub.f32 0.0, %v551
  %v556 = vsub.f32 0.0, %v552
  %v557 = vsub.f32 0.0, %v553
  %v558 = vmul.f32 %v554, 1.442695
  %v559 = vpow.pop %v558
  %v560 = vmul.f32 %v555, 1.442695
  %v561 = vpow.pop %v560
  %v562 = vmul.f32 %v556, 1.442695
  %v563 = vpow.pop %v562
  %v564 = vmul.f32 %v557, 1.442695
  %v565 = vpow.pop %v564
  %v566 = vadd.f32 %v559, 1.0
  %v567 = vadd.f32 %v561, 1.0
  %v568 = vadd.f32 %v563, 1.0
  %v569 = vadd.f32 %v565, 1.0
  %v570 = vrcp.pop %v566
  %v571 = vmul.f32 1.0, %v570
  %v572 = vrcp.pop %v567
  %v573 = vmul.f32 1.0, %v572
  %v574 = vrcp.pop %v568
  %v575 = vmul.f32 1.0, %v574
  %v576 = vrcp.pop %v569
  %v577 = vmul.f32 1.0, %v576
  %v578 = vld [vmem:[%s1] sm:$0xff]
  %v579 = vld [vmem:[%s1 + $0x8] sm:$0xff]
  %v580 = vld [vmem:[%s1 + $0x10] sm:$0xff]
  %v581 = vld [vmem:[%s1 + $0x18] sm:$0xff]
  %v582 = vmul.f32 %v571, %v578
  %v583 = vmul.f32 %v573, %v579
  %v584 = vmul.f32 %v575, %v580
  %v585 = vmul.f32 %v577, %v581
  %v586 = vadd.f32 %v582, %v319
  %v587 = vadd.f32 %v583, %v324
  %v588 = vadd.f32 %v584, %v329
  %v589 = vadd.f32 %v585, %v334
  %v590 = vmax.f32 %v586, -1e+09
  %v591 = vmax.f32 %v587, -1e+09
  %v592 = vmax.f32 %v588, -1e+09
  %v593 = vmax.f32 %v589, -1e+09
  %v594 = vmin.f32 %v590, 1e+09
  %v595 = vmin.f32 %v591, 1e+09
  %v596 = vmin.f32 %v592, 1e+09
  %v597 = vmin.f32 %v593, 1e+09
  %vm598 = vcmask 130048
  %v599 = vsel %vm598, %v594, %v578
  %v600 = vsel %vm598, %v595, %v579
  %v601 = vsel %vm598, %v596, %v580
  %v602 = vsel %vm598, %v597, %v581
  %603 = vst.msk [vmem:[%s8] sm:$0xff] %vm154, %v599
  %604 = vst.msk [vmem:[%s8 + $0x8] sm:$0xff] %vm154, %v600
  %605 = vst.msk [vmem:[%s8 + $0x10] sm:$0xff] %vm154, %v601
  %606 = vst.msk [vmem:[%s8 + $0x18] sm:$0xff] %vm154, %v602
  // Predicated region
  $region34: #{glow_forward.34} parent=0 // pred_check
    _
  $region35: #{glow_forward.34} parent=0 // pred_check_branch
    %608 = sbr.rel (0) target = $region37
  $region36: #{glow_forward.34} parent=0 // pred_region
    _
  $region37: #{glow_forward.34} parent=0 // pred_fallthru
    _
  // Predicated region
  $region38: #{glow_forward.34} parent=0 // pred_check
    _
  $region39: #{glow_forward.34} parent=0 // pred_check_branch
    %610 = sbr.rel (0) target = $region41
  $region40: #{glow_forward.34} parent=0 // pred_region
    _
  $region41: #{glow_forward.34} parent=0 // pred_fallthru
    _

</llo_original>
